<compile_context>
chip_gen: v6e
topology: v6e:2x2x1
jax: 0.10.0
libtpu: 0.0.40
codegen_flags: <defaults>
</compile_context>

<pallas_src>
import functools
import math

import jax
import jax.numpy as jnp
import numpy as np
from jax.experimental import pallas as pl
from jax.experimental.pallas import tpu as pltpu

NEG_SLOPE = 0.2     # LeakyReLU negative slope (module default)
MASK_VAL = -1e30    # "-inf" for non-edges (finite so exp/max stay well-defined)


def _round_up(x, m):
    return ((x + m - 1) // m) * m


def _padded_bytes(shape, itemsize):
    """Approximate VMEM footprint of one block, rounded to (8, 128) tiling."""
    if len(shape) == 1:
        r, c = 1, shape[0]
    else:
        r, c = shape[-2], shape[-1]
    lead = 1
    for d in shape[:-2]:
        lead *= d
    return lead * _round_up(r, 8) * _round_up(c, 128) * itemsize


def _choose_tiles(n, dst_tile, src_tile):
    """Pick (dst_tile, src_tile); both multiples of 128."""
    n128 = max(128, _round_up(n, 128))
    if n <= 256:
        return n128, n128
    td = min(dst_tile, n128)
    ts = min(src_tile, n128)
    if n128 <= td:
        # Guarantee >=2 dst tiles so the "parallel" dst axis can shard across
        # both TensorCores on v7x-class chips.
        td = max(128, _round_up(n128 // 2, 128))
    return td, ts


def _vmem_limit_bytes(td, ts, H, HF):
    """Generation-aware scoped-VMEM budget (double-buffered blocks + scratch)."""
    io = (_padded_bytes((H, ts), 4)            # el_t block
          + _padded_bytes((td, H), 4)          # er block
          + _padded_bytes((td, ts), 1)         # tmap block (int8)
          + _padded_bytes((ts, HF), 2)         # fs block (bf16)
          + _padded_bytes((td, HF), 4)         # rst block
          + 2 * _padded_bytes((td, H), 4))     # m, l blocks
    scratch = 2 * _padded_bytes((td, H), 4) + _padded_bytes((td, HF), 4)
    need = 2 * io + scratch + (4 << 20)        # double-buffering + headroom
    try:
        info = pltpu.get_tpu_info()
        cap = getattr(info, "vmem_capacity_bytes", None) or (64 << 20)
    except Exception:  # noqa: BLE001  (CPU interpret / older runtimes)
        cap = 64 << 20
    cap = (cap * 3) // 4                       # leave compiler-internal headroom
    return int(min(cap, max(32 << 20, need)))


# ----------------------------------------------------------------------------
# Pallas kernel: tiled masked attention + aggregation, all H heads per step.
# Grid = (dst_tiles [parallel], src_tiles [arbitrary / reduction]).
# ----------------------------------------------------------------------------
def gat_attn_kernel(ee_ref, bmask_ref, el_ref, er_ref, tmap_ref, fs_ref,
                    rst_ref, m_out_ref, l_out_ref,
                    m_sc, l_sc, acc_sc, *,
                    num_heads, out_feats, num_etypes, n_src_tiles):
    H, F, T = num_heads, out_feats, num_etypes
    i = pl.program_id(0)
    j = pl.program_id(1)
    nj = pl.num_programs(1)

    @pl.when(j == 0)
    def _init():
        m_sc[...] = jnp.full_like(m_sc, MASK_VAL)
        l_sc[...] = jnp.zeros_like(l_sc)
        acc_sc[...] = jnp.zeros_like(acc_sc)

    # Skip all compute for (dst-tile, src-tile) blocks containing no edges.
    @pl.when(bmask_ref[i * n_src_tiles + j] > 0)
    def _compute():
        # One int8 -> f32 upcast of the type map per tile, shared across heads.
        tmap = tmap_ref[...].astype(jnp.float32)                      # [TD, TS]

        for h in range(H):                          # H tiny -> static unroll
            # Edge-type bias + non-edge mask in one nested select chain.
            bias = jnp.float32(MASK_VAL)
            for t in range(T):
                bias = jnp.where(tmap == jnp.float32(t + 1), ee_ref[t, h], bias)

            logits = el_ref[h:h + 1, :] + er_ref[:, h:h + 1] + bias   # [TD, TS]
            logits = jnp.maximum(logits, NEG_SLOPE * logits)          # leaky relu

            # Online (flash-style) masked softmax across src tiles.
            m_prev = m_sc[:, h:h + 1]                                 # [TD, 1]
            m_new = jnp.maximum(m_prev, jnp.max(logits, axis=-1, keepdims=True))
            corr = jnp.exp(m_prev - m_new)
            p = jnp.exp(logits - m_new)                               # 0 at non-edges
            l_sc[:, h:h + 1] = corr * l_sc[:, h:h + 1] + jnp.sum(
                p, axis=-1, keepdims=True)
            m_sc[:, h:h + 1] = m_new

            # Message passing: bf16 operands on the MXU, f32 accumulation into
            # the lane-dense [TD, H*F] accumulator.
            pv = jnp.dot(p.astype(jnp.bfloat16), fs_ref[:, h * F:(h + 1) * F],
                         preferred_element_type=jnp.float32)          # [TD, F]
            acc_sc[:, h * F:(h + 1) * F] = (
                corr * acc_sc[:, h * F:(h + 1) * F] + pv)

    @pl.when(j == nj - 1)
    def _finalize():
        inv = 1.0 / l_sc[...]              # exact divide; once per dst tile
        for h in range(H):
            acc_sc[:, h * F:(h + 1) * F] = (
                acc_sc[:, h * F:(h + 1) * F] * inv[:, h:h + 1])
        rst_ref[...] = acc_sc[...].astype(rst_ref.dtype)   # one lane-dense store
        m_out_ref[...] = m_sc[...]
        l_out_ref[...] = l_sc[...]


def my_gat_conv_pallas(fs_bf16, el, er, ee, src, dst, etype,
                       num_heads, out_feats, num_etypes,
                       dst_tile=512, src_tile=2048):
    """Tiled masked attention + aggregation.

    Returns (rst [N, H*F] f32, m [N, H] f32, l [N, H] f32) where (m, l) are the
    per-destination online-softmax statistics (row max / row sum).
    """
    N = er.shape[0]
    H, F, T = num_heads, out_feats, num_etypes
    HF = H * F

    td, ts = _choose_tiles(N, dst_tile, src_tile)
    n_pd, n_ps = _round_up(N, td), _round_up(N, ts)
    nd, ns = n_pd // td, n_ps // ts

    # Graph structure built on device: ONE int8 type map (0 = no edge,
    # t+1 = type t) and a tiny block-nonempty bitmap for tile skipping.
    tmap = jnp.zeros((n_pd, n_ps), jnp.int8).at[dst, src].set(
        (etype + 1).astype(jnp.int8))
    bmask = jnp.zeros((nd * ns,), jnp.int32).at[
        (dst // td) * ns + (src // ts)].set(1)

    if n_ps != N:
        fs_bf16 = jnp.pad(fs_bf16, ((0, n_ps - N), (0, 0)))
        el = jnp.pad(el, ((0, n_ps - N), (0, 0)))
    if n_pd != N:
        er = jnp.pad(er, ((0, n_pd - N), (0, 0)))
    el_t = el.T                                   # [H, n_ps] lane-dense over src

    kernel = functools.partial(gat_attn_kernel, num_heads=H, out_feats=F,
                               num_etypes=T, n_src_tiles=ns)

    rst, m_n, l_n = pl.pallas_call(
        kernel,
        out_shape=(jax.ShapeDtypeStruct((n_pd, HF), jnp.float32),
                   jax.ShapeDtypeStruct((n_pd, H), jnp.float32),
                   jax.ShapeDtypeStruct((n_pd, H), jnp.float32)),
        grid_spec=pltpu.PrefetchScalarGridSpec(
            num_scalar_prefetch=0,
            grid=(nd, ns),
            in_specs=[
                pl.BlockSpec(memory_space=pltpu.MemorySpace.SMEM),   # ee [T, H]
                pl.BlockSpec(memory_space=pltpu.MemorySpace.SMEM),   # bmask
                pl.BlockSpec((H, ts), lambda i, j: (0, j)),          # el_t
                pl.BlockSpec((td, H), lambda i, j: (i, 0)),          # er
                pl.BlockSpec((td, ts), lambda i, j: (i, j)),         # tmap (int8)
                pl.BlockSpec((ts, HF), lambda i, j: (j, 0)),         # fs (bf16)
            ],
            out_specs=[
                pl.BlockSpec((td, HF), lambda i, j: (i, 0)),         # rst
                pl.BlockSpec((td, H), lambda i, j: (i, 0)),          # m
                pl.BlockSpec((td, H), lambda i, j: (i, 0)),          # l
            ],
            scratch_shapes=[
                pltpu.VMEM((td, H), jnp.float32),                    # running max
                pltpu.VMEM((td, H), jnp.float32),                    # running sum
                pltpu.VMEM((td, HF), jnp.float32),                   # lane-dense acc
            ],
        ),
        compiler_params=pltpu.CompilerParams(
            dimension_semantics=("parallel", "arbitrary"),
            vmem_limit_bytes=_vmem_limit_bytes(td, ts, H, HF)),
    )(ee, bmask, el_t, er, tmap, fs_bf16)

    return rst[:N], m_n[:N], l_n[:N]


def my_gat_conv_forward(feat, src, dst, etype, params, num_nodes):
    """Full forward: returns (rst [N, H, F], a [E, H, 1]) like the PyTorch module."""
    N = num_nodes
    W_fc = params["W_fc"]                      # [H*F, Din]
    W_e = params["W_e"]                        # [H*Fe, Fe]
    attn_l = params["attn_l"]                  # [1, H, F]
    attn_r = params["attn_r"]                  # [1, H, F]
    attn_e = params["attn_e"]                  # [1, H, Fe]
    edge_emb = params["edge_emb"]              # [T, Fe]
    H, F = attn_l.shape[1], attn_l.shape[2]
    Fe = attn_e.shape[2]
    T = edge_emb.shape[0]

    src_j = jnp.asarray(src, dtype=jnp.int32)
    dst_j = jnp.asarray(dst, dtype=jnp.int32)
    et_j = jnp.asarray(etype, dtype=jnp.int32)

    # Hoisted projection: one lane-dense [N, Din] x [Din, H*F] matmul (XLA)
    # instead of H narrow 16-wide matmuls inside the kernel.
    fs_all = jnp.dot(feat, W_fc.T)                              # [N, H*F] f32
    fs_hf = fs_all.reshape(N, H, F)
    el = jnp.sum(fs_hf * attn_l, axis=-1)                       # [N, H]
    er = jnp.sum(fs_hf * attn_r, axis=-1)                       # [N, H]
    ee = jnp.sum((edge_emb @ W_e.T).reshape(T, H, Fe) * attn_e, axis=-1)  # [T, H]

    # TODO(synk): feat_drop/attn_drop are identity at p=0.0 (module default);
    #             residual / bias / activation / res_attn blending are disabled
    #             by default and therefore omitted.
    rst_flat, m_n, l_n = my_gat_conv_pallas(
        fs_all.astype(jnp.bfloat16), el, er, ee, src_j, dst_j, et_j, H, F, T)

    rst = rst_flat.reshape(N, H, F)

    # Per-edge attention reconstructed exactly from the kernel's softmax stats
    # (row max m, row sum l); the dense [H, N, N] attention never touches HBM.
    e_logit = el[src_j] + er[dst_j] + ee[et_j]                  # [E, H]
    e_logit = jnp.maximum(e_logit, NEG_SLOPE * e_logit)
    a_edges = jnp.exp(e_logit - m_n[dst_j]) / l_n[dst_j]        # [E, H]
    return rst, a_edges[:, :, None]


# ----------------------------------------------------------------------------
# Pure-JAX edge-list reference (mirrors the PyTorch/DGL code path).
# ----------------------------------------------------------------------------
def reference_forward(feat, src, dst, etype, params, num_nodes):
    N = num_nodes
    W_fc, W_e = params["W_fc"], params["W_e"]
    H = params["attn_l"].shape[1]
    F = params["attn_l"].shape[2]
    Fe = params["attn_e"].shape[2]

    feat_src = (feat @ W_fc.T).reshape(N, H, F)
    e_emb = params["edge_emb"][etype]
    e_proj = (e_emb @ W_e.T).reshape(-1, H, Fe)
    ee = jnp.sum(e_proj * params["attn_e"], axis=-1)            # [E, H]
    el = jnp.sum(feat_src * params["attn_l"], axis=-1)          # [N, H]
    er = jnp.sum(feat_src * params["attn_r"], axis=-1)          # [N, H]
    e = el[src] + er[dst] + ee
    e = jnp.where(e >= 0, e, NEG_SLOPE * e)
    m = jax.ops.segment_max(e, dst, num_segments=N)
    p = jnp.exp(e - m[dst])
    denom = jax.ops.segment_sum(p, dst, num_segments=N)
    a = p / denom[dst]                                          # [E, H]
    msg = feat_src[src] * a[:, :, None]
    rst = jax.ops.segment_sum(msg, dst, num_segments=N)         # [N, H, F]
    return rst, a[:, :, None]


# ----------------------------------------------------------------------------
if __name__ == "__main__":
    # Small shapes consistent with the module's __init__.
    N = 16            # number of nodes
    Din = 32          # in_feats
    F = 16            # out_feats
    H = 4             # num_heads
    Fe = 8            # edge_feats
    T = 3             # num_etypes

    key = jax.random.PRNGKey(0)
    k_feat, k_fc, k_fce, k_al, k_ar, k_ae, k_emb = jax.random.split(key, 7)

    gain = math.sqrt(2.0)  # calculate_gain('relu')

    def xavier_normal(k, shape, fan_in, fan_out):
        std = gain * math.sqrt(2.0 / (fan_in + fan_out))
        return (std * jax.random.normal(k, shape)).astype(jnp.float32)

    # Parameters (deterministic synthetic init, matching PyTorch shapes).
    W_fc = xavier_normal(k_fc, (H * F, Din), Din, H * F)    # nn.Linear(Din, H*F).weight
    W_e = xavier_normal(k_fce, (H * Fe, Fe), Fe, H * Fe)    # nn.Linear(Fe, H*Fe).weight
    attn_l = xavier_normal(k_al, (1, H, F), H * F, F)
    attn_r = xavier_normal(k_ar, (1, H, F), H * F, F)
    attn_e = xavier_normal(k_ae, (1, H, Fe), H * Fe, Fe)
    edge_emb = jax.random.normal(k_emb, (T, Fe)).astype(jnp.float32)

    params = {
        "W_fc": W_fc,
        "W_e": W_e,
        "attn_l": attn_l,
        "attn_r": attn_r,
        "attn_e": attn_e,
        "edge_emb": edge_emb,
    }

    # Synthetic graph: self-loop (type 0), ring edge (type 1), skip edge (type 2).
    src_l, dst_l, et_l = [], [], []
    for i in range(N):
        src_l += [i, i, i]
        dst_l += [i, (i + 1) % N, (i + 5) % N]
        et_l += [0, 1, 2]
    src = np.asarray(src_l, dtype=np.int32)
    dst = np.asarray(dst_l, dtype=np.int32)
    etype = np.asarray(et_l, dtype=np.int32)

    feat = jax.random.normal(k_feat, (N, Din)).astype(jnp.float32)

    rst_k, a_k = my_gat_conv_forward(feat, src, dst, etype, params, N)
    rst_k = jax.block_until_ready(rst_k)
    a_k = jax.block_until_ready(a_k)

    rst_ref, a_ref = reference_forward(feat, jnp.asarray(src), jnp.asarray(dst),
                                       jnp.asarray(etype), params, N)

    assert rst_k.shape == (N, H, F) and a_k.shape == (len(src), H, 1)
    # rst uses a bf16 MXU path (f32 accumulate) -> ~1e-2 agreement (perf knob).
    assert jnp.allclose(rst_k, rst_ref, atol=2e-2, rtol=2e-2), "rst mismatch"
    # attention is reconstructed fully in f32 -> tight agreement.
    assert jnp.allclose(a_k, a_ref, atol=1e-3, rtol=1e-3), "attention mismatch"

    print("KERNEL_OK")
</pallas_src>

<mosaic_0001>
module attributes {stable_mosaic.version = 11 : i64} {
  func.func @gat_attn_kernel(%arg0: i32, %arg1: i32, %arg2: memref<3x4xf32, #tpu.memory_space<smem>>, %arg3: memref<1xi32, #tpu.memory_space<smem>>, %arg4: memref<4x128xf32, #tpu.memory_space<vmem>>, %arg5: memref<128x4xf32, #tpu.memory_space<vmem>>, %arg6: memref<128x128xi8, #tpu.memory_space<vmem>>, %arg7: memref<128x64xbf16, #tpu.memory_space<vmem>>, %arg8: memref<128x64xf32, #tpu.memory_space<vmem>>, %arg9: memref<128x4xf32, #tpu.memory_space<vmem>>, %arg10: memref<128x4xf32, #tpu.memory_space<vmem>>, %arg11: memref<128x4xf32, #tpu.memory_space<vmem>>, %arg12: memref<128x4xf32, #tpu.memory_space<vmem>>, %arg13: memref<128x64xf32, #tpu.memory_space<vmem>>) attributes {dimension_semantics = [#tpu.dimension_semantics<parallel>, #tpu.dimension_semantics<arbitrary>], iteration_bounds = array<i64: 1, 1>, scalar_prefetch = 0 : i64, scratch_operands = 3 : i64, tpu.core_type = #tpu.core_type<tc>, window_params = [{transform_indices = @transform_0, window_bounds = array<i64: 3, 4>}, {transform_indices = @transform_1, window_bounds = array<i64: 1>}, {transform_indices = @transform_2, window_bounds = array<i64: 4, 128>}, {transform_indices = @transform_3, window_bounds = array<i64: 128, 4>}, {transform_indices = @transform_4, window_bounds = array<i64: 128, 128>}, {transform_indices = @transform_5, window_bounds = array<i64: 128, 64>}, {transform_indices = @transform_6, window_bounds = array<i64: 128, 64>}, {transform_indices = @transform_7, window_bounds = array<i64: 128, 4>}, {transform_indices = @transform_8, window_bounds = array<i64: 128, 4>}]} {
    %c0_i32 = arith.constant 0 : i32
    %0 = arith.cmpi eq, %arg1, %c0_i32 : i32
    %1 = arith.extui %0 : i1 to i32
    %c0_i32_0 = arith.constant 0 : i32
    %2 = arith.cmpi ne, %1, %c0_i32_0 : i32
    scf.if %2 {
      %cst = arith.constant -1.000000e+30 : f32
      %13 = vector.broadcast %cst : f32 to vector<128x4xf32>
      %c0 = arith.constant 0 : index
      %c0_5 = arith.constant 0 : index
      %14 = vector.load %arg11[%c0, %c0_5] : memref<128x4xf32, #tpu.memory_space<vmem>>, vector<128x4xf32>
      tpu.vector_store %arg11[%c0, %c0_5], %13 {strides = array<i32>} : memref<128x4xf32, #tpu.memory_space<vmem>>, vector<128x4xf32>,
      %cst_6 = arith.constant 0.000000e+00 : f32
      %15 = vector.broadcast %cst_6 : f32 to vector<128x4xf32>
      %c0_7 = arith.constant 0 : index
      %c0_8 = arith.constant 0 : index
      %16 = vector.load %arg12[%c0_7, %c0_8] : memref<128x4xf32, #tpu.memory_space<vmem>>, vector<128x4xf32>
      tpu.vector_store %arg12[%c0_7, %c0_8], %15 {strides = array<i32>} : memref<128x4xf32, #tpu.memory_space<vmem>>, vector<128x4xf32>,
      %cst_9 = arith.constant 0.000000e+00 : f32
      %17 = vector.broadcast %cst_9 : f32 to vector<128x64xf32>
      %c0_10 = arith.constant 0 : index
      %c0_11 = arith.constant 0 : index
      %18 = vector.load %arg13[%c0_10, %c0_11] : memref<128x64xf32, #tpu.memory_space<vmem>>, vector<128x64xf32>
      tpu.vector_store %arg13[%c0_10, %c0_11], %17 {strides = array<i32>} : memref<128x64xf32, #tpu.memory_space<vmem>>, vector<128x64xf32>,
    } else {
    }
    %c1_i32 = arith.constant 1 : i32
    %3 = arith.muli %arg0, %c1_i32 : i32
    %4 = arith.addi %3, %arg1 : i32
    %5 = arith.index_cast %4 : i32 to index
    %6 = memref.load %arg3[%5] : memref<1xi32, #tpu.memory_space<smem>>
    %c0_i32_1 = arith.constant 0 : i32
    %7 = arith.cmpi sgt, %6, %c0_i32_1 : i32
    %8 = arith.extui %7 : i1 to i32
    %c0_i32_2 = arith.constant 0 : i32
    %9 = arith.cmpi ne, %8, %c0_i32_2 : i32
    scf.if %9 {
      %c0 = arith.constant 0 : index
      %c0_5 = arith.constant 0 : index
      %13 = vector.load %arg6[%c0, %c0_5] : memref<128x128xi8, #tpu.memory_space<vmem>>, vector<128x128xi8>
      %14 = arith.sitofp %13 : vector<128x128xi8> to vector<128x128xf32>
      %cst = arith.constant 1.000000e+00 : f32
      %15 = vector.broadcast %cst : f32 to vector<128x128xf32>
      %16 = arith.cmpf oeq, %14, %15 : vector<128x128xf32>
      %c0_6 = arith.constant 0 : index
      %c0_7 = arith.constant 0 : index
      %17 = memref.load %arg2[%c0_6, %c0_7] : memref<3x4xf32, #tpu.memory_space<smem>>
      %cst_8 = arith.constant -1.000000e+30 : f32
      %18 = vector.broadcast %17 : f32 to vector<128x128xf32>
      %19 = vector.broadcast %cst_8 : f32 to vector<128x128xf32>
      %20 = arith.select %16, %18, %19 : vector<128x128xi1>, vector<128x128xf32>
      %cst_9 = arith.constant 2.000000e+00 : f32
      %21 = vector.broadcast %cst_9 : f32 to vector<128x128xf32>
      %22 = arith.cmpf oeq, %14, %21 : vector<128x128xf32>
      %c1 = arith.constant 1 : index
      %c0_10 = arith.constant 0 : index
      %23 = memref.load %arg2[%c1, %c0_10] : memref<3x4xf32, #tpu.memory_space<smem>>
      %24 = vector.broadcast %23 : f32 to vector<128x128xf32>
      %25 = arith.select %22, %24, %20 : vector<128x128xi1>, vector<128x128xf32>
      %cst_11 = arith.constant 3.000000e+00 : f32
      %26 = vector.broadcast %cst_11 : f32 to vector<128x128xf32>
      %27 = arith.cmpf oeq, %14, %26 : vector<128x128xf32>
      %c2 = arith.constant 2 : index
      %c0_12 = arith.constant 0 : index
      %28 = memref.load %arg2[%c2, %c0_12] : memref<3x4xf32, #tpu.memory_space<smem>>
      %29 = vector.broadcast %28 : f32 to vector<128x128xf32>
      %30 = arith.select %27, %29, %25 : vector<128x128xi1>, vector<128x128xf32>
      %c0_13 = arith.constant 0 : index
      %c0_14 = arith.constant 0 : index
      %31 = vector.load %arg4[%c0_13, %c0_14] : memref<4x128xf32, #tpu.memory_space<vmem>>, vector<1x128xf32>
      %c0_15 = arith.constant 0 : index
      %c0_16 = arith.constant 0 : index
      %32 = vector.load %arg5[%c0_15, %c0_16] : memref<128x4xf32, #tpu.memory_space<vmem>>, vector<128x1xf32>
      %33 = vector.broadcast %31 : vector<1x128xf32> to vector<128x128xf32>
      %34 = vector.broadcast %32 : vector<128x1xf32> to vector<128x128xf32>
      %35 = arith.addf %33, %34 : vector<128x128xf32>
      %36 = arith.addf %35, %30 : vector<128x128xf32>
      %cst_17 = arith.constant 2.000000e-01 : f32
      %37 = vector.broadcast %cst_17 : f32 to vector<128x128xf32>
      %38 = arith.mulf %37, %36 : vector<128x128xf32>
      %39 = arith.maximumf %36, %38 : vector<128x128xf32>
      %c0_18 = arith.constant 0 : index
      %c0_19 = arith.constant 0 : index
      %40 = vector.load %arg11[%c0_18, %c0_19] : memref<128x4xf32, #tpu.memory_space<vmem>>, vector<128x1xf32>
      %cst_20 = arith.constant dense<0xFF800000> : vector<128xf32>
      %41 = vector.multi_reduction <maximumf>, %39, %cst_20 [1] : vector<128x128xf32> to vector<128xf32>
      %42 = vector.shape_cast %41 : vector<128xf32> to vector<128x1xf32>
      %43 = arith.maximumf %40, %42 : vector<128x1xf32>
      %44 = arith.subf %40, %43 : vector<128x1xf32>
      %45 = math.exp %44 : vector<128x1xf32>
      %46 = vector.broadcast %43 : vector<128x1xf32> to vector<128x128xf32>
      %47 = arith.subf %39, %46 : vector<128x128xf32>
      %48 = math.exp %47 : vector<128x128xf32>
      %c0_21 = arith.constant 0 : index
      %c0_22 = arith.constant 0 : index
      %49 = vector.load %arg12[%c0_21, %c0_22] : memref<128x4xf32, #tpu.memory_space<vmem>>, vector<128x1xf32>
      %50 = arith.mulf %45, %49 : vector<128x1xf32>
      %cst_23 = arith.constant dense<0.000000e+00> : vector<128xf32>
      %51 = vector.multi_reduction <add>, %48, %cst_23 [1] : vector<128x128xf32> to vector<128xf32>
      %52 = vector.shape_cast %51 : vector<128xf32> to vector<128x1xf32>
      %53 = arith.addf %50, %52 : vector<128x1xf32>
      %c0_24 = arith.constant 0 : index
      %c0_25 = arith.constant 0 : index
      %54 = vector.load %arg12[%c0_24, %c0_25] : memref<128x4xf32, #tpu.memory_space<vmem>>, vector<128x1xf32>
      tpu.vector_store %arg12[%c0_24, %c0_25], %53 {strides = array<i32>} : memref<128x4xf32, #tpu.memory_space<vmem>>, vector<128x1xf32>,
      %c0_26 = arith.constant 0 : index
      %c0_27 = arith.constant 0 : index
      %55 = vector.load %arg11[%c0_26, %c0_27] : memref<128x4xf32, #tpu.memory_space<vmem>>, vector<128x1xf32>
      tpu.vector_store %arg11[%c0_26, %c0_27], %43 {strides = array<i32>} : memref<128x4xf32, #tpu.memory_space<vmem>>, vector<128x1xf32>,
      %56 = arith.truncf %48 : vector<128x128xf32> to vector<128x128xbf16>
      %c0_28 = arith.constant 0 : index
      %c0_29 = arith.constant 0 : index
      %57 = vector.load %arg7[%c0_28, %c0_29] : memref<128x64xbf16, #tpu.memory_space<vmem>>, vector<128x16xbf16>
      %cst_30 = arith.constant dense<0.000000e+00> : vector<128x16xf32>
      %58 = tpu.matmul %56, %57, %cst_30 {dimension_numbers = #tpu.dot_dimension_numbers<[1], [0], [0], [1], [0, 0, 1, 1], [], []>} : vector<128x128xbf16>, vector<128x16xbf16>, vector<128x16xf32> -> vector<128x16xf32>
      %c0_31 = arith.constant 0 : index
      %c0_32 = arith.constant 0 : index
      %59 = vector.load %arg13[%c0_31, %c0_32] : memref<128x64xf32, #tpu.memory_space<vmem>>, vector<128x16xf32>
      %60 = vector.broadcast %45 : vector<128x1xf32> to vector<128x16xf32>
      %61 = arith.mulf %60, %59 : vector<128x16xf32>
      %62 = arith.addf %61, %58 : vector<128x16xf32>
      %c0_33 = arith.constant 0 : index
      %c0_34 = arith.constant 0 : index
      %63 = vector.load %arg13[%c0_33, %c0_34] : memref<128x64xf32, #tpu.memory_space<vmem>>, vector<128x16xf32>
      tpu.vector_store %arg13[%c0_33, %c0_34], %62 {strides = array<i32>} : memref<128x64xf32, #tpu.memory_space<vmem>>, vector<128x16xf32>,
      %cst_35 = arith.constant 1.000000e+00 : f32
      %64 = vector.broadcast %cst_35 : f32 to vector<128x128xf32>
      %65 = arith.cmpf oeq, %14, %64 : vector<128x128xf32>
      %c0_36 = arith.constant 0 : index
      %c1_37 = arith.constant 1 : index
      %66 = memref.load %arg2[%c0_36, %c1_37] : memref<3x4xf32, #tpu.memory_space<smem>>
      %cst_38 = arith.constant -1.000000e+30 : f32
      %67 = vector.broadcast %66 : f32 to vector<128x128xf32>
      %68 = vector.broadcast %cst_38 : f32 to vector<128x128xf32>
      %69 = arith.select %65, %67, %68 : vector<128x128xi1>, vector<128x128xf32>
      %cst_39 = arith.constant 2.000000e+00 : f32
      %70 = vector.broadcast %cst_39 : f32 to vector<128x128xf32>
      %71 = arith.cmpf oeq, %14, %70 : vector<128x128xf32>
      %c1_40 = arith.constant 1 : index
      %c1_41 = arith.constant 1 : index
      %72 = memref.load %arg2[%c1_40, %c1_41] : memref<3x4xf32, #tpu.memory_space<smem>>
      %73 = vector.broadcast %72 : f32 to vector<128x128xf32>
      %74 = arith.select %71, %73, %69 : vector<128x128xi1>, vector<128x128xf32>
      %cst_42 = arith.constant 3.000000e+00 : f32
      %75 = vector.broadcast %cst_42 : f32 to vector<128x128xf32>
      %76 = arith.cmpf oeq, %14, %75 : vector<128x128xf32>
      %c2_43 = arith.constant 2 : index
      %c1_44 = arith.constant 1 : index
      %77 = memref.load %arg2[%c2_43, %c1_44] : memref<3x4xf32, #tpu.memory_space<smem>>
      %78 = vector.broadcast %77 : f32 to vector<128x128xf32>
      %79 = arith.select %76, %78, %74 : vector<128x128xi1>, vector<128x128xf32>
      %c1_45 = arith.constant 1 : index
      %c0_46 = arith.constant 0 : index
      %80 = vector.load %arg4[%c1_45, %c0_46] : memref<4x128xf32, #tpu.memory_space<vmem>>, vector<1x128xf32>
      %c0_47 = arith.constant 0 : index
      %c1_48 = arith.constant 1 : index
      %81 = vector.load %arg5[%c0_47, %c1_48] : memref<128x4xf32, #tpu.memory_space<vmem>>, vector<128x1xf32>
      %82 = vector.broadcast %80 : vector<1x128xf32> to vector<128x128xf32>
      %83 = vector.broadcast %81 : vector<128x1xf32> to vector<128x128xf32>
      %84 = arith.addf %82, %83 : vector<128x128xf32>
      %85 = arith.addf %84, %79 : vector<128x128xf32>
      %cst_49 = arith.constant 2.000000e-01 : f32
      %86 = vector.broadcast %cst_49 : f32 to vector<128x128xf32>
      %87 = arith.mulf %86, %85 : vector<128x128xf32>
      %88 = arith.maximumf %85, %87 : vector<128x128xf32>
      %c0_50 = arith.constant 0 : index
      %c1_51 = arith.constant 1 : index
      %89 = vector.load %arg11[%c0_50, %c1_51] : memref<128x4xf32, #tpu.memory_space<vmem>>, vector<128x1xf32>
      %cst_52 = arith.constant dense<0xFF800000> : vector<128xf32>
      %90 = vector.multi_reduction <maximumf>, %88, %cst_52 [1] : vector<128x128xf32> to vector<128xf32>
      %91 = vector.shape_cast %90 : vector<128xf32> to vector<128x1xf32>
      %92 = arith.maximumf %89, %91 : vector<128x1xf32>
      %93 = arith.subf %89, %92 : vector<128x1xf32>
      %94 = math.exp %93 : vector<128x1xf32>
      %95 = vector.broadcast %92 : vector<128x1xf32> to vector<128x128xf32>
      %96 = arith.subf %88, %95 : vector<128x128xf32>
      %97 = math.exp %96 : vector<128x128xf32>
      %c0_53 = arith.constant 0 : index
      %c1_54 = arith.constant 1 : index
      %98 = vector.load %arg12[%c0_53, %c1_54] : memref<128x4xf32, #tpu.memory_space<vmem>>, vector<128x1xf32>
      %99 = arith.mulf %94, %98 : vector<128x1xf32>
      %cst_55 = arith.constant dense<0.000000e+00> : vector<128xf32>
      %100 = vector.multi_reduction <add>, %97, %cst_55 [1] : vector<128x128xf32> to vector<128xf32>
      %101 = vector.shape_cast %100 : vector<128xf32> to vector<128x1xf32>
      %102 = arith.addf %99, %101 : vector<128x1xf32>
      %c0_56 = arith.constant 0 : index
      %c1_57 = arith.constant 1 : index
      %103 = vector.load %arg12[%c0_56, %c1_57] : memref<128x4xf32, #tpu.memory_space<vmem>>, vector<128x1xf32>
      tpu.vector_store %arg12[%c0_56, %c1_57], %102 {strides = array<i32>} : memref<128x4xf32, #tpu.memory_space<vmem>>, vector<128x1xf32>,
      %c0_58 = arith.constant 0 : index
      %c1_59 = arith.constant 1 : index
      %104 = vector.load %arg11[%c0_58, %c1_59] : memref<128x4xf32, #tpu.memory_space<vmem>>, vector<128x1xf32>
      tpu.vector_store %arg11[%c0_58, %c1_59], %92 {strides = array<i32>} : memref<128x4xf32, #tpu.memory_space<vmem>>, vector<128x1xf32>,
      %105 = arith.truncf %97 : vector<128x128xf32> to vector<128x128xbf16>
      %c0_60 = arith.constant 0 : index
      %c16 = arith.constant 16 : index
      %106 = vector.load %arg7[%c0_60, %c16] : memref<128x64xbf16, #tpu.memory_space<vmem>>, vector<128x16xbf16>
      %cst_61 = arith.constant dense<0.000000e+00> : vector<128x16xf32>
      %107 = tpu.matmul %105, %106, %cst_61 {dimension_numbers = #tpu.dot_dimension_numbers<[1], [0], [0], [1], [0, 0, 1, 1], [], []>} : vector<128x128xbf16>, vector<128x16xbf16>, vector<128x16xf32> -> vector<128x16xf32>
      %c0_62 = arith.constant 0 : index
      %c16_63 = arith.constant 16 : index
      %108 = vector.load %arg13[%c0_62, %c16_63] : memref<128x64xf32, #tpu.memory_space<vmem>>, vector<128x16xf32>
      %109 = vector.broadcast %94 : vector<128x1xf32> to vector<128x16xf32>
      %110 = arith.mulf %109, %108 : vector<128x16xf32>
      %111 = arith.addf %110, %107 : vector<128x16xf32>
      %c0_64 = arith.constant 0 : index
      %c16_65 = arith.constant 16 : index
      %112 = vector.load %arg13[%c0_64, %c16_65] : memref<128x64xf32, #tpu.memory_space<vmem>>, vector<128x16xf32>
      tpu.vector_store %arg13[%c0_64, %c16_65], %111 {strides = array<i32>} : memref<128x64xf32, #tpu.memory_space<vmem>>, vector<128x16xf32>,
      %cst_66 = arith.constant 1.000000e+00 : f32
      %113 = vector.broadcast %cst_66 : f32 to vector<128x128xf32>
      %114 = arith.cmpf oeq, %14, %113 : vector<128x128xf32>
      %c0_67 = arith.constant 0 : index
      %c2_68 = arith.constant 2 : index
      %115 = memref.load %arg2[%c0_67, %c2_68] : memref<3x4xf32, #tpu.memory_space<smem>>
      %cst_69 = arith.constant -1.000000e+30 : f32
      %116 = vector.broadcast %115 : f32 to vector<128x128xf32>
      %117 = vector.broadcast %cst_69 : f32 to vector<128x128xf32>
      %118 = arith.select %114, %116, %117 : vector<128x128xi1>, vector<128x128xf32>
      %cst_70 = arith.constant 2.000000e+00 : f32
      %119 = vector.broadcast %cst_70 : f32 to vector<128x128xf32>
      %120 = arith.cmpf oeq, %14, %119 : vector<128x128xf32>
      %c1_71 = arith.constant 1 : index
      %c2_72 = arith.constant 2 : index
      %121 = memref.load %arg2[%c1_71, %c2_72] : memref<3x4xf32, #tpu.memory_space<smem>>
      %122 = vector.broadcast %121 : f32 to vector<128x128xf32>
      %123 = arith.select %120, %122, %118 : vector<128x128xi1>, vector<128x128xf32>
      %cst_73 = arith.constant 3.000000e+00 : f32
      %124 = vector.broadcast %cst_73 : f32 to vector<128x128xf32>
      %125 = arith.cmpf oeq, %14, %124 : vector<128x128xf32>
      %c2_74 = arith.constant 2 : index
      %c2_75 = arith.constant 2 : index
      %126 = memref.load %arg2[%c2_74, %c2_75] : memref<3x4xf32, #tpu.memory_space<smem>>
      %127 = vector.broadcast %126 : f32 to vector<128x128xf32>
      %128 = arith.select %125, %127, %123 : vector<128x128xi1>, vector<128x128xf32>
      %c2_76 = arith.constant 2 : index
      %c0_77 = arith.constant 0 : index
      %129 = vector.load %arg4[%c2_76, %c0_77] : memref<4x128xf32, #tpu.memory_space<vmem>>, vector<1x128xf32>
      %c0_78 = arith.constant 0 : index
      %c2_79 = arith.constant 2 : index
      %130 = vector.load %arg5[%c0_78, %c2_79] : memref<128x4xf32, #tpu.memory_space<vmem>>, vector<128x1xf32>
      %131 = vector.broadcast %129 : vector<1x128xf32> to vector<128x128xf32>
      %132 = vector.broadcast %130 : vector<128x1xf32> to vector<128x128xf32>
      %133 = arith.addf %131, %132 : vector<128x128xf32>
      %134 = arith.addf %133, %128 : vector<128x128xf32>
      %cst_80 = arith.constant 2.000000e-01 : f32
      %135 = vector.broadcast %cst_80 : f32 to vector<128x128xf32>
      %136 = arith.mulf %135, %134 : vector<128x128xf32>
      %137 = arith.maximumf %134, %136 : vector<128x128xf32>
      %c0_81 = arith.constant 0 : index
      %c2_82 = arith.constant 2 : index
      %138 = vector.load %arg11[%c0_81, %c2_82] : memref<128x4xf32, #tpu.memory_space<vmem>>, vector<128x1xf32>
      %cst_83 = arith.constant dense<0xFF800000> : vector<128xf32>
      %139 = vector.multi_reduction <maximumf>, %137, %cst_83 [1] : vector<128x128xf32> to vector<128xf32>
      %140 = vector.shape_cast %139 : vector<128xf32> to vector<128x1xf32>
      %141 = arith.maximumf %138, %140 : vector<128x1xf32>
      %142 = arith.subf %138, %141 : vector<128x1xf32>
      %143 = math.exp %142 : vector<128x1xf32>
      %144 = vector.broadcast %141 : vector<128x1xf32> to vector<128x128xf32>
      %145 = arith.subf %137, %144 : vector<128x128xf32>
      %146 = math.exp %145 : vector<128x128xf32>
      %c0_84 = arith.constant 0 : index
      %c2_85 = arith.constant 2 : index
      %147 = vector.load %arg12[%c0_84, %c2_85] : memref<128x4xf32, #tpu.memory_space<vmem>>, vector<128x1xf32>
      %148 = arith.mulf %143, %147 : vector<128x1xf32>
      %cst_86 = arith.constant dense<0.000000e+00> : vector<128xf32>
      %149 = vector.multi_reduction <add>, %146, %cst_86 [1] : vector<128x128xf32> to vector<128xf32>
      %150 = vector.shape_cast %149 : vector<128xf32> to vector<128x1xf32>
      %151 = arith.addf %148, %150 : vector<128x1xf32>
      %c0_87 = arith.constant 0 : index
      %c2_88 = arith.constant 2 : index
      %152 = vector.load %arg12[%c0_87, %c2_88] : memref<128x4xf32, #tpu.memory_space<vmem>>, vector<128x1xf32>
      tpu.vector_store %arg12[%c0_87, %c2_88], %151 {strides = array<i32>} : memref<128x4xf32, #tpu.memory_space<vmem>>, vector<128x1xf32>,
      %c0_89 = arith.constant 0 : index
      %c2_90 = arith.constant 2 : index
      %153 = vector.load %arg11[%c0_89, %c2_90] : memref<128x4xf32, #tpu.memory_space<vmem>>, vector<128x1xf32>
      tpu.vector_store %arg11[%c0_89, %c2_90], %141 {strides = array<i32>} : memref<128x4xf32, #tpu.memory_space<vmem>>, vector<128x1xf32>,
      %154 = arith.truncf %146 : vector<128x128xf32> to vector<128x128xbf16>
      %c0_91 = arith.constant 0 : index
      %c32 = arith.constant 32 : index
      %155 = vector.load %arg7[%c0_91, %c32] : memref<128x64xbf16, #tpu.memory_space<vmem>>, vector<128x16xbf16>
      %cst_92 = arith.constant dense<0.000000e+00> : vector<128x16xf32>
      %156 = tpu.matmul %154, %155, %cst_92 {dimension_numbers = #tpu.dot_dimension_numbers<[1], [0], [0], [1], [0, 0, 1, 1], [], []>} : vector<128x128xbf16>, vector<128x16xbf16>, vector<128x16xf32> -> vector<128x16xf32>
      %c0_93 = arith.constant 0 : index
      %c32_94 = arith.constant 32 : index
      %157 = vector.load %arg13[%c0_93, %c32_94] : memref<128x64xf32, #tpu.memory_space<vmem>>, vector<128x16xf32>
      %158 = vector.broadcast %143 : vector<128x1xf32> to vector<128x16xf32>
      %159 = arith.mulf %158, %157 : vector<128x16xf32>
      %160 = arith.addf %159, %156 : vector<128x16xf32>
      %c0_95 = arith.constant 0 : index
      %c32_96 = arith.constant 32 : index
      %161 = vector.load %arg13[%c0_95, %c32_96] : memref<128x64xf32, #tpu.memory_space<vmem>>, vector<128x16xf32>
      tpu.vector_store %arg13[%c0_95, %c32_96], %160 {strides = array<i32>} : memref<128x64xf32, #tpu.memory_space<vmem>>, vector<128x16xf32>,
      %cst_97 = arith.constant 1.000000e+00 : f32
      %162 = vector.broadcast %cst_97 : f32 to vector<128x128xf32>
      %163 = arith.cmpf oeq, %14, %162 : vector<128x128xf32>
      %c0_98 = arith.constant 0 : index
      %c3 = arith.constant 3 : index
      %164 = memref.load %arg2[%c0_98, %c3] : memref<3x4xf32, #tpu.memory_space<smem>>
      %cst_99 = arith.constant -1.000000e+30 : f32
      %165 = vector.broadcast %164 : f32 to vector<128x128xf32>
      %166 = vector.broadcast %cst_99 : f32 to vector<128x128xf32>
      %167 = arith.select %163, %165, %166 : vector<128x128xi1>, vector<128x128xf32>
      %cst_100 = arith.constant 2.000000e+00 : f32
      %168 = vector.broadcast %cst_100 : f32 to vector<128x128xf32>
      %169 = arith.cmpf oeq, %14, %168 : vector<128x128xf32>
      %c1_101 = arith.constant 1 : index
      %c3_102 = arith.constant 3 : index
      %170 = memref.load %arg2[%c1_101, %c3_102] : memref<3x4xf32, #tpu.memory_space<smem>>
      %171 = vector.broadcast %170 : f32 to vector<128x128xf32>
      %172 = arith.select %169, %171, %167 : vector<128x128xi1>, vector<128x128xf32>
      %cst_103 = arith.constant 3.000000e+00 : f32
      %173 = vector.broadcast %cst_103 : f32 to vector<128x128xf32>
      %174 = arith.cmpf oeq, %14, %173 : vector<128x128xf32>
      %c2_104 = arith.constant 2 : index
      %c3_105 = arith.constant 3 : index
      %175 = memref.load %arg2[%c2_104, %c3_105] : memref<3x4xf32, #tpu.memory_space<smem>>
      %176 = vector.broadcast %175 : f32 to vector<128x128xf32>
      %177 = arith.select %174, %176, %172 : vector<128x128xi1>, vector<128x128xf32>
      %c3_106 = arith.constant 3 : index
      %c0_107 = arith.constant 0 : index
      %178 = vector.load %arg4[%c3_106, %c0_107] : memref<4x128xf32, #tpu.memory_space<vmem>>, vector<1x128xf32>
      %c0_108 = arith.constant 0 : index
      %c3_109 = arith.constant 3 : index
      %179 = vector.load %arg5[%c0_108, %c3_109] : memref<128x4xf32, #tpu.memory_space<vmem>>, vector<128x1xf32>
      %180 = vector.broadcast %178 : vector<1x128xf32> to vector<128x128xf32>
      %181 = vector.broadcast %179 : vector<128x1xf32> to vector<128x128xf32>
      %182 = arith.addf %180, %181 : vector<128x128xf32>
      %183 = arith.addf %182, %177 : vector<128x128xf32>
      %cst_110 = arith.constant 2.000000e-01 : f32
      %184 = vector.broadcast %cst_110 : f32 to vector<128x128xf32>
      %185 = arith.mulf %184, %183 : vector<128x128xf32>
      %186 = arith.maximumf %183, %185 : vector<128x128xf32>
      %c0_111 = arith.constant 0 : index
      %c3_112 = arith.constant 3 : index
      %187 = vector.load %arg11[%c0_111, %c3_112] : memref<128x4xf32, #tpu.memory_space<vmem>>, vector<128x1xf32>
      %cst_113 = arith.constant dense<0xFF800000> : vector<128xf32>
      %188 = vector.multi_reduction <maximumf>, %186, %cst_113 [1] : vector<128x128xf32> to vector<128xf32>
      %189 = vector.shape_cast %188 : vector<128xf32> to vector<128x1xf32>
      %190 = arith.maximumf %187, %189 : vector<128x1xf32>
      %191 = arith.subf %187, %190 : vector<128x1xf32>
      %192 = math.exp %191 : vector<128x1xf32>
      %193 = vector.broadcast %190 : vector<128x1xf32> to vector<128x128xf32>
      %194 = arith.subf %186, %193 : vector<128x128xf32>
      %195 = math.exp %194 : vector<128x128xf32>
      %c0_114 = arith.constant 0 : index
      %c3_115 = arith.constant 3 : index
      %196 = vector.load %arg12[%c0_114, %c3_115] : memref<128x4xf32, #tpu.memory_space<vmem>>, vector<128x1xf32>
      %197 = arith.mulf %192, %196 : vector<128x1xf32>
      %cst_116 = arith.constant dense<0.000000e+00> : vector<128xf32>
      %198 = vector.multi_reduction <add>, %195, %cst_116 [1] : vector<128x128xf32> to vector<128xf32>
      %199 = vector.shape_cast %198 : vector<128xf32> to vector<128x1xf32>
      %200 = arith.addf %197, %199 : vector<128x1xf32>
      %c0_117 = arith.constant 0 : index
      %c3_118 = arith.constant 3 : index
      %201 = vector.load %arg12[%c0_117, %c3_118] : memref<128x4xf32, #tpu.memory_space<vmem>>, vector<128x1xf32>
      tpu.vector_store %arg12[%c0_117, %c3_118], %200 {strides = array<i32>} : memref<128x4xf32, #tpu.memory_space<vmem>>, vector<128x1xf32>,
      %c0_119 = arith.constant 0 : index
      %c3_120 = arith.constant 3 : index
      %202 = vector.load %arg11[%c0_119, %c3_120] : memref<128x4xf32, #tpu.memory_space<vmem>>, vector<128x1xf32>
      tpu.vector_store %arg11[%c0_119, %c3_120], %190 {strides = array<i32>} : memref<128x4xf32, #tpu.memory_space<vmem>>, vector<128x1xf32>,
      %203 = arith.truncf %195 : vector<128x128xf32> to vector<128x128xbf16>
      %c0_121 = arith.constant 0 : index
      %c48 = arith.constant 48 : index
      %204 = vector.load %arg7[%c0_121, %c48] : memref<128x64xbf16, #tpu.memory_space<vmem>>, vector<128x16xbf16>
      %cst_122 = arith.constant dense<0.000000e+00> : vector<128x16xf32>
      %205 = tpu.matmul %203, %204, %cst_122 {dimension_numbers = #tpu.dot_dimension_numbers<[1], [0], [0], [1], [0, 0, 1, 1], [], []>} : vector<128x128xbf16>, vector<128x16xbf16>, vector<128x16xf32> -> vector<128x16xf32>
      %c0_123 = arith.constant 0 : index
      %c48_124 = arith.constant 48 : index
      %206 = vector.load %arg13[%c0_123, %c48_124] : memref<128x64xf32, #tpu.memory_space<vmem>>, vector<128x16xf32>
      %207 = vector.broadcast %192 : vector<128x1xf32> to vector<128x16xf32>
      %208 = arith.mulf %207, %206 : vector<128x16xf32>
      %209 = arith.addf %208, %205 : vector<128x16xf32>
      %c0_125 = arith.constant 0 : index
      %c48_126 = arith.constant 48 : index
      %210 = vector.load %arg13[%c0_125, %c48_126] : memref<128x64xf32, #tpu.memory_space<vmem>>, vector<128x16xf32>
      tpu.vector_store %arg13[%c0_125, %c48_126], %209 {strides = array<i32>} : memref<128x64xf32, #tpu.memory_space<vmem>>, vector<128x16xf32>,
    } else {
    }
    %c0_i32_3 = arith.constant 0 : i32
    %10 = arith.cmpi eq, %arg1, %c0_i32_3 : i32
    %11 = arith.extui %10 : i1 to i32
    %c0_i32_4 = arith.constant 0 : i32
    %12 = arith.cmpi ne, %11, %c0_i32_4 : i32
    scf.if %12 {
      %c0 = arith.constant 0 : index
      %c0_5 = arith.constant 0 : index
      %13 = vector.load %arg12[%c0, %c0_5] : memref<128x4xf32, #tpu.memory_space<vmem>>, vector<128x4xf32>
      %cst = arith.constant 1.000000e+00 : f32
      %14 = vector.broadcast %cst : f32 to vector<128x4xf32>
      %15 = arith.divf %14, %13 : vector<128x4xf32>
      %c0_6 = arith.constant 0 : index
      %c0_7 = arith.constant 0 : index
      %16 = vector.load %arg13[%c0_6, %c0_7] : memref<128x64xf32, #tpu.memory_space<vmem>>, vector<128x16xf32>
      %17 = vector.extract_strided_slice %15 {offsets = [0, 0], sizes = [128, 1], strides = [1, 1]} : vector<128x4xf32> to vector<128x1xf32>
      %18 = vector.broadcast %17 : vector<128x1xf32> to vector<128x16xf32>
      %19 = arith.mulf %16, %18 : vector<128x16xf32>
      %c0_8 = arith.constant 0 : index
      %c0_9 = arith.constant 0 : index
      %20 = vector.load %arg13[%c0_8, %c0_9] : memref<128x64xf32, #tpu.memory_space<vmem>>, vector<128x16xf32>
      tpu.vector_store %arg13[%c0_8, %c0_9], %19 {strides = array<i32>} : memref<128x64xf32, #tpu.memory_space<vmem>>, vector<128x16xf32>,
      %c0_10 = arith.constant 0 : index
      %c16 = arith.constant 16 : index
      %21 = vector.load %arg13[%c0_10, %c16] : memref<128x64xf32, #tpu.memory_space<vmem>>, vector<128x16xf32>
      %22 = vector.extract_strided_slice %15 {offsets = [0, 1], sizes = [128, 1], strides = [1, 1]} : vector<128x4xf32> to vector<128x1xf32>
      %23 = vector.broadcast %22 : vector<128x1xf32> to vector<128x16xf32>
      %24 = arith.mulf %21, %23 : vector<128x16xf32>
      %c0_11 = arith.constant 0 : index
      %c16_12 = arith.constant 16 : index
      %25 = vector.load %arg13[%c0_11, %c16_12] : memref<128x64xf32, #tpu.memory_space<vmem>>, vector<128x16xf32>
      tpu.vector_store %arg13[%c0_11, %c16_12], %24 {strides = array<i32>} : memref<128x64xf32, #tpu.memory_space<vmem>>, vector<128x16xf32>,
      %c0_13 = arith.constant 0 : index
      %c32 = arith.constant 32 : index
      %26 = vector.load %arg13[%c0_13, %c32] : memref<128x64xf32, #tpu.memory_space<vmem>>, vector<128x16xf32>
      %27 = vector.extract_strided_slice %15 {offsets = [0, 2], sizes = [128, 1], strides = [1, 1]} : vector<128x4xf32> to vector<128x1xf32>
      %28 = vector.broadcast %27 : vector<128x1xf32> to vector<128x16xf32>
      %29 = arith.mulf %26, %28 : vector<128x16xf32>
      %c0_14 = arith.constant 0 : index
      %c32_15 = arith.constant 32 : index
      %30 = vector.load %arg13[%c0_14, %c32_15] : memref<128x64xf32, #tpu.memory_space<vmem>>, vector<128x16xf32>
      tpu.vector_store %arg13[%c0_14, %c32_15], %29 {strides = array<i32>} : memref<128x64xf32, #tpu.memory_space<vmem>>, vector<128x16xf32>,
      %c0_16 = arith.constant 0 : index
      %c48 = arith.constant 48 : index
      %31 = vector.load %arg13[%c0_16, %c48] : memref<128x64xf32, #tpu.memory_space<vmem>>, vector<128x16xf32>
      %32 = vector.extract_strided_slice %15 {offsets = [0, 3], sizes = [128, 1], strides = [1, 1]} : vector<128x4xf32> to vector<128x1xf32>
      %33 = vector.broadcast %32 : vector<128x1xf32> to vector<128x16xf32>
      %34 = arith.mulf %31, %33 : vector<128x16xf32>
      %c0_17 = arith.constant 0 : index
      %c48_18 = arith.constant 48 : index
      %35 = vector.load %arg13[%c0_17, %c48_18] : memref<128x64xf32, #tpu.memory_space<vmem>>, vector<128x16xf32>
      tpu.vector_store %arg13[%c0_17, %c48_18], %34 {strides = array<i32>} : memref<128x64xf32, #tpu.memory_space<vmem>>, vector<128x16xf32>,
      %c0_19 = arith.constant 0 : index
      %c0_20 = arith.constant 0 : index
      %36 = vector.load %arg13[%c0_19, %c0_20] : memref<128x64xf32, #tpu.memory_space<vmem>>, vector<128x64xf32>
      %c0_21 = arith.constant 0 : index
      %c0_22 = arith.constant 0 : index
      %37 = vector.load %arg8[%c0_21, %c0_22] : memref<128x64xf32, #tpu.memory_space<vmem>>, vector<128x64xf32>
      tpu.vector_store %arg8[%c0_21, %c0_22], %36 {strides = array<i32>} : memref<128x64xf32, #tpu.memory_space<vmem>>, vector<128x64xf32>,
      %c0_23 = arith.constant 0 : index
      %c0_24 = arith.constant 0 : index
      %38 = vector.load %arg11[%c0_23, %c0_24] : memref<128x4xf32, #tpu.memory_space<vmem>>, vector<128x4xf32>
      %c0_25 = arith.constant 0 : index
      %c0_26 = arith.constant 0 : index
      %39 = vector.load %arg9[%c0_25, %c0_26] : memref<128x4xf32, #tpu.memory_space<vmem>>, vector<128x4xf32>
      tpu.vector_store %arg9[%c0_25, %c0_26], %38 {strides = array<i32>} : memref<128x4xf32, #tpu.memory_space<vmem>>, vector<128x4xf32>,
      %c0_27 = arith.constant 0 : index
      %c0_28 = arith.constant 0 : index
      %40 = vector.load %arg12[%c0_27, %c0_28] : memref<128x4xf32, #tpu.memory_space<vmem>>, vector<128x4xf32>
      %c0_29 = arith.constant 0 : index
      %c0_30 = arith.constant 0 : index
      %41 = vector.load %arg10[%c0_29, %c0_30] : memref<128x4xf32, #tpu.memory_space<vmem>>, vector<128x4xf32>
      tpu.vector_store %arg10[%c0_29, %c0_30], %40 {strides = array<i32>} : memref<128x4xf32, #tpu.memory_space<vmem>>, vector<128x4xf32>,
    } else {
    }
    return
  }
  func.func @transform_0(%arg0: i32, %arg1: i32) -> (i32, i32) {
    %c0_i32 = arith.constant 0 : i32
    %c0_i32_0 = arith.constant 0 : i32
    %c0_i32_1 = arith.constant 0 : i32
    return %c0_i32, %c0_i32_0 : i32, i32
  }
  func.func @transform_1(%arg0: i32, %arg1: i32) -> i32 {
    %c0_i32 = arith.constant 0 : i32
    %c0_i32_0 = arith.constant 0 : i32
    return %c0_i32 : i32
  }
  func.func @transform_2(%arg0: i32, %arg1: i32) -> (i32, i32) {
    %c0_i32 = arith.constant 0 : i32
    %c0_i32_0 = arith.constant 0 : i32
    return %c0_i32, %arg1 : i32, i32
  }
  func.func @transform_3(%arg0: i32, %arg1: i32) -> (i32, i32) {
    %c0_i32 = arith.constant 0 : i32
    %c0_i32_0 = arith.constant 0 : i32
    return %arg0, %c0_i32 : i32, i32
  }
  func.func @transform_4(%arg0: i32, %arg1: i32) -> (i32, i32) {
    %c0_i32 = arith.constant 0 : i32
    return %arg0, %arg1 : i32, i32
  }
  func.func @transform_5(%arg0: i32, %arg1: i32) -> (i32, i32) {
    %c0_i32 = arith.constant 0 : i32
    %c0_i32_0 = arith.constant 0 : i32
    return %arg1, %c0_i32 : i32, i32
  }
  func.func @transform_6(%arg0: i32, %arg1: i32) -> (i32, i32) {
    %c0_i32 = arith.constant 0 : i32
    %c0_i32_0 = arith.constant 0 : i32
    return %arg0, %c0_i32 : i32, i32
  }
  func.func @transform_7(%arg0: i32, %arg1: i32) -> (i32, i32) {
    %c0_i32 = arith.constant 0 : i32
    %c0_i32_0 = arith.constant 0 : i32
    return %arg0, %c0_i32 : i32, i32
  }
  func.func @transform_8(%arg0: i32, %arg1: i32) -> (i32, i32) {
    %c0_i32 = arith.constant 0 : i32
    %c0_i32_0 = arith.constant 0 : i32
    return %arg0, %c0_i32 : i32, i32
  }
}

</mosaic_0001>

<llo_original>
// kernel: tpu_custom_call.1
$region0: #{tpu_custom_call.1}
  #allocation0 [shape = 'u32[]', space=smem, size = 0x4, offset = 0x4, fixed_abs, tag = 'smem constant byte address 0x4 - core index']
  #allocation1 [shape = 'u32[144,128]{1,0:T(1,128)}', space=vmem, size = 0x12000, scoped, tag = 'internal scratch']
  #allocation2 [shape = 'f32[128,4]{1,0:T(8,128)}', space=vmem, size = 0x10000, scoped, tag = 'scratch operand']
  #allocation3 [shape = 'f32[128,4]{1,0:T(8,128)}', space=vmem, size = 0x10000, scoped, tag = 'scratch operand']
  #allocation4 [shape = 'f32[128,64]{1,0:T(8,128)}', space=vmem, size = 0x10000, scoped, tag = 'scratch operand']
  #allocation5 [shape = 's32[1]{0:T(128)S(6)}', space=smem, size = 0x200, scoped, tag = 'scoped memory for tpu_custom_call.1']
  %s0 = inlined_call_operand.vmem [shape: f32[3,4], index: 0, kind: input, shape index: {}]
  %s1 = inlined_call_operand.<no memory space> [shape: s32[1], index: 1, kind: input, shape index: {}]
  %s2 = inlined_call_operand.vmem [shape: f32[4,128], index: 2, kind: input, shape index: {}]
  %s3 = inlined_call_operand.vmem [shape: f32[128,4], index: 3, kind: input, shape index: {}]
  %s4 = inlined_call_operand.vmem [shape: s8[128,128], index: 4, kind: input, shape index: {}]
  %s5 = inlined_call_operand.vmem [shape: bf16[128,64], index: 5, kind: input, shape index: {}]
  %s6 = inlined_call_operand.vmem [shape: f32[128,64], index: 6, kind: output, shape index: {0}]
  %s7 = inlined_call_operand.vmem [shape: f32[128,4], index: 7, kind: output, shape index: {1}]
  %s8 = inlined_call_operand.vmem [shape: f32[128,4], index: 8, kind: output, shape index: {2}]
  %9 = xla_tuple %s6, %s7, %s8
  %s10 = sld [smem:[#allocation0]]
  $region66: #{tpu_custom_call.1} parent=0
    _
  %s12 = ssub.s32 1, %s10
  %s13 = scalar_select 0, %s12, %s10
  %14 = sst [smem:[#allocation5]] %s1
  $region1: #{tpu_custom_call.1} parent=0
    #allocation6 [shape = 'u8[2048]{0}', space=smem, size = 0x800, scoped, tag = 'input window, operand 0, single buffered']
    #allocation7 [shape = 's32[1]{0}', space=sflag, size = 0x4, scoped, tag = 'scoped memory for tpu_custom_call.1']
    %15 = vsyncpa [#allocation7], 0
    // Predicated region
    $region2: #{tpu_custom_call.1} parent=1 // pred_check
      _
    $region3: #{tpu_custom_call.1} parent=1 // pred_check_branch
      %17 = sbr.rel (0) target = $region5
    $region4: #{tpu_custom_call.1} parent=1 // pred_region
      %s19 = ssub.s32 64, 64
      %20 = vsyncadd [#allocation7], %s19
      %s22 = sshll.u32 %s0, 4
      %s23 = int_to_ptr.vmem [resolvable:$true] %s22
      %25 = dma.vmem_to_smem %s23, 64, [#allocation6], [#allocation7]
    $region5: #{tpu_custom_call.1} parent=1 // pred_fallthru
      _
    // Predicated region
    $region6: #{tpu_custom_call.1} parent=1 // pred_check
      _
    $region7: #{tpu_custom_call.1} parent=1 // pred_check_branch
      %27 = sbr.rel (0) target = $region9
    $region8: #{tpu_custom_call.1} parent=1 // pred_region
      _
    $region9: #{tpu_custom_call.1} parent=1 // pred_fallthru
      _
    // Predicated region
    $region10: #{tpu_custom_call.1} parent=1 // pred_check
      _
    $region11: #{tpu_custom_call.1} parent=1 // pred_check_branch
      %29 = sbr.rel (0) target = $region13
    $region12: #{tpu_custom_call.1} parent=1 // pred_region
      _
    $region13: #{tpu_custom_call.1} parent=1 // pred_fallthru
      _
    // Predicated region
    $region14: #{tpu_custom_call.1} parent=1 // pred_check
      _
    $region15: #{tpu_custom_call.1} parent=1 // pred_check_branch
      %31 = sbr.rel (0) target = $region17
    $region16: #{tpu_custom_call.1} parent=1 // pred_region
      _
    $region17: #{tpu_custom_call.1} parent=1 // pred_fallthru
      _
    // Predicated region
    $region18: #{tpu_custom_call.1} parent=1 // pred_check
      _
    $region19: #{tpu_custom_call.1} parent=1 // pred_check_branch
      %33 = sbr.rel (0) target = $region21
    $region20: #{tpu_custom_call.1} parent=1 // pred_region
      _
    $region21: #{tpu_custom_call.1} parent=1 // pred_fallthru
      _
    // Predicated region
    $region22: #{tpu_custom_call.1} parent=1 // pred_check
      _
    $region23: #{tpu_custom_call.1} parent=1 // pred_check_branch
      %35 = sbr.rel (0) target = $region25
    $region24: #{tpu_custom_call.1} parent=1 // pred_region
      _
    $region25: #{tpu_custom_call.1} parent=1 // pred_fallthru
      _
    // Predicated region
    $region26: #{tpu_custom_call.1} parent=1 // pred_check
      _
    $region27: #{tpu_custom_call.1} parent=1 // pred_check_branch
      %37 = sbr.rel (0) target = $region29
    $region28: #{tpu_custom_call.1} parent=1 // pred_region
      %38 = dma.done [#allocation7], 64
    $region29: #{tpu_custom_call.1} parent=1 // pred_fallthru
      _
    %39 = sfence
    %p41 = scmp.eq.s32.totalorder 0, 0
    // Predicated region
    $region30: #{tpu_custom_call.1} parent=1 // pred_check
      %p42 = pneg %p41
    $region31: #{tpu_custom_call.1} parent=1 // pred_check_branch
      %44 = sbr.rel (%p42) target = $region33
    $region32: #{tpu_custom_call.1} parent=1 // pred_region
      %vm45 = vcmask 31744
      %46 = vst.msk [vmem:[#allocation2] sm:$0xff] %vm45, -1e+30
      %47 = vst.msk [vmem:[#allocation2 + $0x8] sm:$0xff] %vm45, -1e+30
      %48 = vst.msk [vmem:[#allocation2 + $0x10] sm:$0xff] %vm45, -1e+30
      %49 = vst.msk [vmem:[#allocation2 + $0x18] sm:$0xff] %vm45, -1e+30
      %50 = vst.msk [vmem:[#allocation2 + $0x20] sm:$0xff] %vm45, -1e+30
      %51 = vst.msk [vmem:[#allocation2 + $0x28] sm:$0xff] %vm45, -1e+30
      %52 = vst.msk [vmem:[#allocation2 + $0x30] sm:$0xff] %vm45, -1e+30
      %53 = vst.msk [vmem:[#allocation2 + $0x38] sm:$0xff] %vm45, -1e+30
      %54 = vst.msk [vmem:[#allocation2 + $0x40] sm:$0xff] %vm45, -1e+30
      %55 = vst.msk [vmem:[#allocation2 + $0x48] sm:$0xff] %vm45, -1e+30
      %56 = vst.msk [vmem:[#allocation2 + $0x50] sm:$0xff] %vm45, -1e+30
      %57 = vst.msk [vmem:[#allocation2 + $0x58] sm:$0xff] %vm45, -1e+30
      %58 = vst.msk [vmem:[#allocation2 + $0x60] sm:$0xff] %vm45, -1e+30
      %59 = vst.msk [vmem:[#allocation2 + $0x68] sm:$0xff] %vm45, -1e+30
      %60 = vst.msk [vmem:[#allocation2 + $0x70] sm:$0xff] %vm45, -1e+30
      %61 = vst.msk [vmem:[#allocation2 + $0x78] sm:$0xff] %vm45, -1e+30
      %62 = vst.msk [vmem:[#allocation3] sm:$0xff] %vm45, 0.0
      %63 = vst.msk [vmem:[#allocation3 + $0x8] sm:$0xff] %vm45, 0.0
      %64 = vst.msk [vmem:[#allocation3 + $0x10] sm:$0xff] %vm45, 0.0
      %65 = vst.msk [vmem:[#allocation3 + $0x18] sm:$0xff] %vm45, 0.0
      %66 = vst.msk [vmem:[#allocation3 + $0x20] sm:$0xff] %vm45, 0.0
      %67 = vst.msk [vmem:[#allocation3 + $0x28] sm:$0xff] %vm45, 0.0
      %68 = vst.msk [vmem:[#allocation3 + $0x30] sm:$0xff] %vm45, 0.0
      %69 = vst.msk [vmem:[#allocation3 + $0x38] sm:$0xff] %vm45, 0.0
      %70 = vst.msk [vmem:[#allocation3 + $0x40] sm:$0xff] %vm45, 0.0
      %71 = vst.msk [vmem:[#allocation3 + $0x48] sm:$0xff] %vm45, 0.0
      %72 = vst.msk [vmem:[#allocation3 + $0x50] sm:$0xff] %vm45, 0.0
      %73 = vst.msk [vmem:[#allocation3 + $0x58] sm:$0xff] %vm45, 0.0
      %74 = vst.msk [vmem:[#allocation3 + $0x60] sm:$0xff] %vm45, 0.0
      %75 = vst.msk [vmem:[#allocation3 + $0x68] sm:$0xff] %vm45, 0.0
      %76 = vst.msk [vmem:[#allocation3 + $0x70] sm:$0xff] %vm45, 0.0
      %77 = vst.msk [vmem:[#allocation3 + $0x78] sm:$0xff] %vm45, 0.0
      %vm78 = vcmask 523264
      %79 = vst.msk [vmem:[#allocation4] sm:$0xff] %vm78, 0.0
      %80 = vst.msk [vmem:[#allocation4 + $0x8] sm:$0xff] %vm78, 0.0
      %81 = vst.msk [vmem:[#allocation4 + $0x10] sm:$0xff] %vm78, 0.0
      %82 = vst.msk [vmem:[#allocation4 + $0x18] sm:$0xff] %vm78, 0.0
      %83 = vst.msk [vmem:[#allocation4 + $0x20] sm:$0xff] %vm78, 0.0
      %84 = vst.msk [vmem:[#allocation4 + $0x28] sm:$0xff] %vm78, 0.0
      %85 = vst.msk [vmem:[#allocation4 + $0x30] sm:$0xff] %vm78, 0.0
      %86 = vst.msk [vmem:[#allocation4 + $0x38] sm:$0xff] %vm78, 0.0
      %87 = vst.msk [vmem:[#allocation4 + $0x40] sm:$0xff] %vm78, 0.0
      %88 = vst.msk [vmem:[#allocation4 + $0x48] sm:$0xff] %vm78, 0.0
      %89 = vst.msk [vmem:[#allocation4 + $0x50] sm:$0xff] %vm78, 0.0
      %90 = vst.msk [vmem:[#allocation4 + $0x58] sm:$0xff] %vm78, 0.0
      %91 = vst.msk [vmem:[#allocation4 + $0x60] sm:$0xff] %vm78, 0.0
      %92 = vst.msk [vmem:[#allocation4 + $0x68] sm:$0xff] %vm78, 0.0
      %93 = vst.msk [vmem:[#allocation4 + $0x70] sm:$0xff] %vm78, 0.0
      %94 = vst.msk [vmem:[#allocation4 + $0x78] sm:$0xff] %vm78, 0.0
    $region33: #{tpu_custom_call.1} parent=1 // pred_fallthru
      _
    %s95 = sadd.s32 0, 0
    %s96 = sld [smem:[#allocation5 + %s95]]
    %p97 = scmp.gt.s32.totalorder %s96, 0
    // Predicated region
    $region34: #{tpu_custom_call.1} parent=1 // pred_check
      %p98 = pneg %p97
    $region35: #{tpu_custom_call.1} parent=1 // pred_check_branch
      %100 = sbr.rel (%p98) target = $region37
    $region36: #{tpu_custom_call.1} parent=1 // pred_region
      %v101 = vld [vmem:[%s4] sm:$0xff]
      %v102 = vld [vmem:[%s4 + $0x8] sm:$0xff]
      %v103 = vld [vmem:[%s4 + $0x10] sm:$0xff]
      %v104 = vld [vmem:[%s4 + $0x18] sm:$0xff]
      %v105 = vunpack.c.0.s8 %v101
      %v106 = vunpack.c.1.s8 %v101
      %v107 = vunpack.c.2.s8 %v101
      %v108 = vunpack.c.3.s8 %v101
      %v109 = vunpack.c.0.s8 %v102
      %v110 = vunpack.c.1.s8 %v102
      %v111 = vunpack.c.2.s8 %v102
      %v112 = vunpack.c.3.s8 %v102
      %v113 = vunpack.c.0.s8 %v103
      %v114 = vunpack.c.1.s8 %v103
      %v115 = vunpack.c.2.s8 %v103
      %v116 = vunpack.c.3.s8 %v103
      %v117 = vunpack.c.0.s8 %v104
      %v118 = vunpack.c.1.s8 %v104
      %v119 = vunpack.c.2.s8 %v104
      %v120 = vunpack.c.3.s8 %v104
      %v121 = vcvt.s32.f32 %v105
      %v122 = vcvt.s32.f32 %v106
      %v123 = vcvt.s32.f32 %v107
      %v124 = vcvt.s32.f32 %v108
      %v125 = vcvt.s32.f32 %v109
      %v126 = vcvt.s32.f32 %v110
      %v127 = vcvt.s32.f32 %v111
      %v128 = vcvt.s32.f32 %v112
      %v129 = vcvt.s32.f32 %v113
      %v130 = vcvt.s32.f32 %v114
      %v131 = vcvt.s32.f32 %v115
      %v132 = vcvt.s32.f32 %v116
      %v133 = vcvt.s32.f32 %v117
      %v134 = vcvt.s32.f32 %v118
      %v135 = vcvt.s32.f32 %v119
      %v136 = vcvt.s32.f32 %v120
      %vm137 = vcmp.eq.f32.partialorder %v121, 1.0
      %vm138 = vcmp.eq.f32.partialorder %v122, 1.0
      %vm139 = vcmp.eq.f32.partialorder %v123, 1.0
      %vm140 = vcmp.eq.f32.partialorder %v124, 1.0
      %vm141 = vcmp.eq.f32.partialorder %v125, 1.0
      %vm142 = vcmp.eq.f32.partialorder %v126, 1.0
      %vm143 = vcmp.eq.f32.partialorder %v127, 1.0
      %vm144 = vcmp.eq.f32.partialorder %v128, 1.0
      %vm145 = vcmp.eq.f32.partialorder %v129, 1.0
      %vm146 = vcmp.eq.f32.partialorder %v130, 1.0
      %vm147 = vcmp.eq.f32.partialorder %v131, 1.0
      %vm148 = vcmp.eq.f32.partialorder %v132, 1.0
      %vm149 = vcmp.eq.f32.partialorder %v133, 1.0
      %vm150 = vcmp.eq.f32.partialorder %v134, 1.0
      %vm151 = vcmp.eq.f32.partialorder %v135, 1.0
      %vm152 = vcmp.eq.f32.partialorder %v136, 1.0
      %s153 = sld [smem:[#allocation6]]
      %v154 = vstv %s153
      %v155 = vsel %vm137, %v154, -1e+30
      %v156 = vsel %vm138, %v154, -1e+30
      %v157 = vsel %vm139, %v154, -1e+30
      %v158 = vsel %vm140, %v154, -1e+30
      %v159 = vsel %vm141, %v154, -1e+30
      %v160 = vsel %vm142, %v154, -1e+30
      %v161 = vsel %vm143, %v154, -1e+30
      %v162 = vsel %vm144, %v154, -1e+30
      %v163 = vsel %vm145, %v154, -1e+30
      %v164 = vsel %vm146, %v154, -1e+30
      %v165 = vsel %vm147, %v154, -1e+30
      %v166 = vsel %vm148, %v154, -1e+30
      %v167 = vsel %vm149, %v154, -1e+30
      %v168 = vsel %vm150, %v154, -1e+30
      %v169 = vsel %vm151, %v154, -1e+30
      %v170 = vsel %vm152, %v154, -1e+30
      %vm171 = vcmp.eq.f32.partialorder %v121, 2.0
      %vm172 = vcmp.eq.f32.partialorder %v122, 2.0
      %vm173 = vcmp.eq.f32.partialorder %v123, 2.0
      %vm174 = vcmp.eq.f32.partialorder %v124, 2.0
      %vm175 = vcmp.eq.f32.partialorder %v125, 2.0
      %vm176 = vcmp.eq.f32.partialorder %v126, 2.0
      %vm177 = vcmp.eq.f32.partialorder %v127, 2.0
      %vm178 = vcmp.eq.f32.partialorder %v128, 2.0
      %vm179 = vcmp.eq.f32.partialorder %v129, 2.0
      %vm180 = vcmp.eq.f32.partialorder %v130, 2.0
      %vm181 = vcmp.eq.f32.partialorder %v131, 2.0
      %vm182 = vcmp.eq.f32.partialorder %v132, 2.0
      %vm183 = vcmp.eq.f32.partialorder %v133, 2.0
      %vm184 = vcmp.eq.f32.partialorder %v134, 2.0
      %vm185 = vcmp.eq.f32.partialorder %v135, 2.0
      %vm186 = vcmp.eq.f32.partialorder %v136, 2.0
      %s187 = sld [smem:[#allocation6 + $0x80]]
      %v188 = vstv %s187
      %v189 = vsel %vm171, %v188, %v155
      %v190 = vsel %vm172, %v188, %v156
      %v191 = vsel %vm173, %v188, %v157
      %v192 = vsel %vm174, %v188, %v158
      %v193 = vsel %vm175, %v188, %v159
      %v194 = vsel %vm176, %v188, %v160
      %v195 = vsel %vm177, %v188, %v161
      %v196 = vsel %vm178, %v188, %v162
      %v197 = vsel %vm179, %v188, %v163
      %v198 = vsel %vm180, %v188, %v164
      %v199 = vsel %vm181, %v188, %v165
      %v200 = vsel %vm182, %v188, %v166
      %v201 = vsel %vm183, %v188, %v167
      %v202 = vsel %vm184, %v188, %v168
      %v203 = vsel %vm185, %v188, %v169
      %v204 = vsel %vm186, %v188, %v170
      %vm205 = vcmp.eq.f32.partialorder %v121, 3.0
      %vm206 = vcmp.eq.f32.partialorder %v122, 3.0
      %vm207 = vcmp.eq.f32.partialorder %v123, 3.0
      %vm208 = vcmp.eq.f32.partialorder %v124, 3.0
      %vm209 = vcmp.eq.f32.partialorder %v125, 3.0
      %vm210 = vcmp.eq.f32.partialorder %v126, 3.0
      %vm211 = vcmp.eq.f32.partialorder %v127, 3.0
      %vm212 = vcmp.eq.f32.partialorder %v128, 3.0
      %vm213 = vcmp.eq.f32.partialorder %v129, 3.0
      %vm214 = vcmp.eq.f32.partialorder %v130, 3.0
      %vm215 = vcmp.eq.f32.partialorder %v131, 3.0
      %vm216 = vcmp.eq.f32.partialorder %v132, 3.0
      %vm217 = vcmp.eq.f32.partialorder %v133, 3.0
      %vm218 = vcmp.eq.f32.partialorder %v134, 3.0
      %vm219 = vcmp.eq.f32.partialorder %v135, 3.0
      %vm220 = vcmp.eq.f32.partialorder %v136, 3.0
      %s221 = sld [smem:[#allocation6 + $0x100]]
      %v222 = vstv %s221
      %v223 = vsel %vm205, %v222, %v189
      %v224 = vsel %vm206, %v222, %v190
      %v225 = vsel %vm207, %v222, %v191
      %v226 = vsel %vm208, %v222, %v192
      %v227 = vsel %vm209, %v222, %v193
      %v228 = vsel %vm210, %v222, %v194
      %v229 = vsel %vm211, %v222, %v195
      %v230 = vsel %vm212, %v222, %v196
      %v231 = vsel %vm213, %v222, %v197
      %v232 = vsel %vm214, %v222, %v198
      %v233 = vsel %vm215, %v222, %v199
      %v234 = vsel %vm216, %v222, %v200
      %v235 = vsel %vm217, %v222, %v201
      %v236 = vsel %vm218, %v222, %v202
      %v237 = vsel %vm219, %v222, %v203
      %v238 = vsel %vm220, %v222, %v204
      %v239 = vld [vmem:[%s2] sm:$0x1]
      %v240 = vld [vmem:[%s3] sm:$0xff]
      %v241 = vld [vmem:[%s3 + $0x8] sm:$0xff]
      %v242 = vld [vmem:[%s3 + $0x10] sm:$0xff]
      %v243 = vld [vmem:[%s3 + $0x18] sm:$0xff]
      %v244 = vld [vmem:[%s3 + $0x20] sm:$0xff]
      %v245 = vld [vmem:[%s3 + $0x28] sm:$0xff]
      %v246 = vld [vmem:[%s3 + $0x30] sm:$0xff]
      %v247 = vld [vmem:[%s3 + $0x38] sm:$0xff]
      %v248 = vld [vmem:[%s3 + $0x40] sm:$0xff]
      %v249 = vld [vmem:[%s3 + $0x48] sm:$0xff]
      %v250 = vld [vmem:[%s3 + $0x50] sm:$0xff]
      %v251 = vld [vmem:[%s3 + $0x58] sm:$0xff]
      %v252 = vld [vmem:[%s3 + $0x60] sm:$0xff]
      %v253 = vld [vmem:[%s3 + $0x68] sm:$0xff]
      %v254 = vld [vmem:[%s3 + $0x70] sm:$0xff]
      %v255 = vld [vmem:[%s3 + $0x78] sm:$0xff]
      %v256 = vlaneseq
      %v257 = vshrl.u32 %v256, 7
      %v258 = vsub.s32 0, %v257
      %v259 = vrot.slane %v239, %v258
      %261 = vset.pattern.permute.xlu0 0
      %262 = vperm.xlu0 %261, %v240
      %v263 = vpop.permute.xlu0 %262
      %266 = vset.pattern.permute.xlu0 0
      %267 = vperm.xlu0 %266, %v241
      %v268 = vpop.permute.xlu0 %267
      %271 = vset.pattern.permute.xlu0 0
      %272 = vperm.xlu0 %271, %v242
      %v273 = vpop.permute.xlu0 %272
      %276 = vset.pattern.permute.xlu0 0
      %277 = vperm.xlu0 %276, %v243
      %v278 = vpop.permute.xlu0 %277
      %281 = vset.pattern.permute.xlu0 0
      %282 = vperm.xlu0 %281, %v244
      %v283 = vpop.permute.xlu0 %282
      %286 = vset.pattern.permute.xlu0 0
      %287 = vperm.xlu0 %286, %v245
      %v288 = vpop.permute.xlu0 %287
      %291 = vset.pattern.permute.xlu0 0
      %292 = vperm.xlu0 %291, %v246
      %v293 = vpop.permute.xlu0 %292
      %296 = vset.pattern.permute.xlu0 0
      %297 = vperm.xlu0 %296, %v247
      %v298 = vpop.permute.xlu0 %297
      %301 = vset.pattern.permute.xlu0 0
      %302 = vperm.xlu0 %301, %v248
      %v303 = vpop.permute.xlu0 %302
      %306 = vset.pattern.permute.xlu0 0
      %307 = vperm.xlu0 %306, %v249
      %v308 = vpop.permute.xlu0 %307
      %311 = vset.pattern.permute.xlu0 0
      %312 = vperm.xlu0 %311, %v250
      %v313 = vpop.permute.xlu0 %312
      %316 = vset.pattern.permute.xlu0 0
      %317 = vperm.xlu0 %316, %v251
      %v318 = vpop.permute.xlu0 %317
      %321 = vset.pattern.permute.xlu0 0
      %322 = vperm.xlu0 %321, %v252
      %v323 = vpop.permute.xlu0 %322
      %326 = vset.pattern.permute.xlu0 0
      %327 = vperm.xlu0 %326, %v253
      %v328 = vpop.permute.xlu0 %327
      %331 = vset.pattern.permute.xlu0 0
      %332 = vperm.xlu0 %331, %v254
      %v333 = vpop.permute.xlu0 %332
      %336 = vset.pattern.permute.xlu0 0
      %337 = vperm.xlu0 %336, %v255
      %v338 = vpop.permute.xlu0 %337
      %v340 = vadd.f32 %v259, %v263
      %v341 = vadd.f32 %v259, %v268
      %v342 = vadd.f32 %v259, %v273
      %v343 = vadd.f32 %v259, %v278
      %v344 = vadd.f32 %v259, %v283
      %v345 = vadd.f32 %v259, %v288
      %v346 = vadd.f32 %v259, %v293
      %v347 = vadd.f32 %v259, %v298
      %v348 = vadd.f32 %v259, %v303
      %v349 = vadd.f32 %v259, %v308
      %v350 = vadd.f32 %v259, %v313
      %v351 = vadd.f32 %v259, %v318
      %v352 = vadd.f32 %v259, %v323
      %v353 = vadd.f32 %v259, %v328
      %v354 = vadd.f32 %v259, %v333
      %v355 = vadd.f32 %v259, %v338
      %v356 = vadd.f32 %v340, %v223
      %v357 = vadd.f32 %v341, %v224
      %v358 = vadd.f32 %v342, %v225
      %v359 = vadd.f32 %v343, %v226
      %v360 = vadd.f32 %v344, %v227
      %v361 = vadd.f32 %v345, %v228
      %v362 = vadd.f32 %v346, %v229
      %v363 = vadd.f32 %v347, %v230
      %v364 = vadd.f32 %v348, %v231
      %v365 = vadd.f32 %v349, %v232
      %v366 = vadd.f32 %v350, %v233
      %v367 = vadd.f32 %v351, %v234
      %v368 = vadd.f32 %v352, %v235
      %v369 = vadd.f32 %v353, %v236
      %v370 = vadd.f32 %v354, %v237
      %v371 = vadd.f32 %v355, %v238
      %v372 = vmul.f32 %v356, 0.2
      %v373 = vmul.f32 %v357, 0.2
      %v374 = vmul.f32 %v358, 0.2
      %v375 = vmul.f32 %v359, 0.2
      %v376 = vmul.f32 %v360, 0.2
      %v377 = vmul.f32 %v361, 0.2
      %v378 = vmul.f32 %v362, 0.2
      %v379 = vmul.f32 %v363, 0.2
      %v380 = vmul.f32 %v364, 0.2
      %v381 = vmul.f32 %v365, 0.2
      %v382 = vmul.f32 %v366, 0.2
      %v383 = vmul.f32 %v367, 0.2
      %v384 = vmul.f32 %v368, 0.2
      %v385 = vmul.f32 %v369, 0.2
      %v386 = vmul.f32 %v370, 0.2
      %v387 = vmul.f32 %v371, 0.2
      %v388 = vmax.f32 %v356, %v372
      %v389 = vmax.f32 %v357, %v373
      %v390 = vmax.f32 %v358, %v374
      %v391 = vmax.f32 %v359, %v375
      %v392 = vmax.f32 %v360, %v376
      %v393 = vmax.f32 %v361, %v377
      %v394 = vmax.f32 %v362, %v378
      %v395 = vmax.f32 %v363, %v379
      %v396 = vmax.f32 %v364, %v380
      %v397 = vmax.f32 %v365, %v381
      %v398 = vmax.f32 %v366, %v382
      %v399 = vmax.f32 %v367, %v383
      %v400 = vmax.f32 %v368, %v384
      %v401 = vmax.f32 %v369, %v385
      %v402 = vmax.f32 %v370, %v386
      %v403 = vmax.f32 %v371, %v387
      %v404 = vld [vmem:[#allocation2] sm:$0xff]
      %v405 = vld [vmem:[#allocation2 + $0x8] sm:$0xff]
      %v406 = vld [vmem:[#allocation2 + $0x10] sm:$0xff]
      %v407 = vld [vmem:[#allocation2 + $0x18] sm:$0xff]
      %v408 = vld [vmem:[#allocation2 + $0x20] sm:$0xff]
      %v409 = vld [vmem:[#allocation2 + $0x28] sm:$0xff]
      %v410 = vld [vmem:[#allocation2 + $0x30] sm:$0xff]
      %v411 = vld [vmem:[#allocation2 + $0x38] sm:$0xff]
      %v412 = vld [vmem:[#allocation2 + $0x40] sm:$0xff]
      %v413 = vld [vmem:[#allocation2 + $0x48] sm:$0xff]
      %v414 = vld [vmem:[#allocation2 + $0x50] sm:$0xff]
      %v415 = vld [vmem:[#allocation2 + $0x58] sm:$0xff]
      %v416 = vld [vmem:[#allocation2 + $0x60] sm:$0xff]
      %v417 = vld [vmem:[#allocation2 + $0x68] sm:$0xff]
      %v418 = vld [vmem:[#allocation2 + $0x70] sm:$0xff]
      %v419 = vld [vmem:[#allocation2 + $0x78] sm:$0xff]
      %420 = vmax.xlane.f32.xlu0 %v388
      %v421 = vpop.xlane.xlu0 %420
      %422 = vmax.xlane.f32.xlu0 %v389
      %v423 = vpop.xlane.xlu0 %422
      %424 = vmax.xlane.f32.xlu0 %v390
      %v425 = vpop.xlane.xlu0 %424
      %426 = vmax.xlane.f32.xlu0 %v391
      %v427 = vpop.xlane.xlu0 %426
      %428 = vmax.xlane.f32.xlu0 %v392
      %v429 = vpop.xlane.xlu0 %428
      %430 = vmax.xlane.f32.xlu0 %v393
      %v431 = vpop.xlane.xlu0 %430
      %432 = vmax.xlane.f32.xlu0 %v394
      %v433 = vpop.xlane.xlu0 %432
      %434 = vmax.xlane.f32.xlu0 %v395
      %v435 = vpop.xlane.xlu0 %434
      %436 = vmax.xlane.f32.xlu0 %v396
      %v437 = vpop.xlane.xlu0 %436
      %438 = vmax.xlane.f32.xlu0 %v397
      %v439 = vpop.xlane.xlu0 %438
      %440 = vmax.xlane.f32.xlu0 %v398
      %v441 = vpop.xlane.xlu0 %440
      %442 = vmax.xlane.f32.xlu0 %v399
      %v443 = vpop.xlane.xlu0 %442
      %444 = vmax.xlane.f32.xlu0 %v400
      %v445 = vpop.xlane.xlu0 %444
      %446 = vmax.xlane.f32.xlu0 %v401
      %v447 = vpop.xlane.xlu0 %446
      %448 = vmax.xlane.f32.xlu0 %v402
      %v449 = vpop.xlane.xlu0 %448
      %450 = vmax.xlane.f32.xlu0 %v403
      %v451 = vpop.xlane.xlu0 %450
      %v452 = vmax.f32 %v404, %v421
      %v453 = vmax.f32 %v405, %v423
      %v454 = vmax.f32 %v406, %v425
      %v455 = vmax.f32 %v407, %v427
      %v456 = vmax.f32 %v408, %v429
      %v457 = vmax.f32 %v409, %v431
      %v458 = vmax.f32 %v410, %v433
      %v459 = vmax.f32 %v411, %v435
      %v460 = vmax.f32 %v412, %v437
      %v461 = vmax.f32 %v413, %v439
      %v462 = vmax.f32 %v414, %v441
      %v463 = vmax.f32 %v415, %v443
      %v464 = vmax.f32 %v416, %v445
      %v465 = vmax.f32 %v417, %v447
      %v466 = vmax.f32 %v418, %v449
      %v467 = vmax.f32 %v419, %v451
      %v468 = vsub.f32 %v404, %v452
      %v469 = vsub.f32 %v405, %v453
      %v470 = vsub.f32 %v406, %v454
      %v471 = vsub.f32 %v407, %v455
      %v472 = vsub.f32 %v408, %v456
      %v473 = vsub.f32 %v409, %v457
      %v474 = vsub.f32 %v410, %v458
      %v475 = vsub.f32 %v411, %v459
      %v476 = vsub.f32 %v412, %v460
      %v477 = vsub.f32 %v413, %v461
      %v478 = vsub.f32 %v414, %v462
      %v479 = vsub.f32 %v415, %v463
      %v480 = vsub.f32 %v416, %v464
      %v481 = vsub.f32 %v417, %v465
      %v482 = vsub.f32 %v418, %v466
      %v483 = vsub.f32 %v419, %v467
      %v484 = vmul.f32 %v468, 1.442695
      %v485 = vpow.pop %v484
      %v486 = vmul.f32 %v469, 1.442695
      %v487 = vpow.pop %v486
      %v488 = vmul.f32 %v470, 1.442695
      %v489 = vpow.pop %v488
      %v490 = vmul.f32 %v471, 1.442695
      %v491 = vpow.pop %v490
      %v492 = vmul.f32 %v472, 1.442695
      %v493 = vpow.pop %v492
      %v494 = vmul.f32 %v473, 1.442695
      %v495 = vpow.pop %v494
      %v496 = vmul.f32 %v474, 1.442695
      %v497 = vpow.pop %v496
      %v498 = vmul.f32 %v475, 1.442695
      %v499 = vpow.pop %v498
      %v500 = vmul.f32 %v476, 1.442695
      %v501 = vpow.pop %v500
      %v502 = vmul.f32 %v477, 1.442695
      %v503 = vpow.pop %v502
      %v504 = vmul.f32 %v478, 1.442695
      %v505 = vpow.pop %v504
      %v506 = vmul.f32 %v479, 1.442695
      %v507 = vpow.pop %v506
      %v508 = vmul.f32 %v480, 1.442695
      %v509 = vpow.pop %v508
      %v510 = vmul.f32 %v481, 1.442695
      %v511 = vpow.pop %v510
      %v512 = vmul.f32 %v482, 1.442695
      %v513 = vpow.pop %v512
      %v514 = vmul.f32 %v483, 1.442695
      %v515 = vpow.pop %v514
      %517 = vset.pattern.permute.xlu0 0
      %518 = vperm.xlu0 %517, %v452
      %v519 = vpop.permute.xlu0 %518
      %522 = vset.pattern.permute.xlu0 0
      %523 = vperm.xlu0 %522, %v453
      %v524 = vpop.permute.xlu0 %523
      %527 = vset.pattern.permute.xlu0 0
      %528 = vperm.xlu0 %527, %v454
      %v529 = vpop.permute.xlu0 %528
      %532 = vset.pattern.permute.xlu0 0
      %533 = vperm.xlu0 %532, %v455
      %v534 = vpop.permute.xlu0 %533
      %537 = vset.pattern.permute.xlu0 0
      %538 = vperm.xlu0 %537, %v456
      %v539 = vpop.permute.xlu0 %538
      %542 = vset.pattern.permute.xlu0 0
      %543 = vperm.xlu0 %542, %v457
      %v544 = vpop.permute.xlu0 %543
      %547 = vset.pattern.permute.xlu0 0
      %548 = vperm.xlu0 %547, %v458
      %v549 = vpop.permute.xlu0 %548
      %552 = vset.pattern.permute.xlu0 0
      %553 = vperm.xlu0 %552, %v459
      %v554 = vpop.permute.xlu0 %553
      %557 = vset.pattern.permute.xlu0 0
      %558 = vperm.xlu0 %557, %v460
      %v559 = vpop.permute.xlu0 %558
      %562 = vset.pattern.permute.xlu0 0
      %563 = vperm.xlu0 %562, %v461
      %v564 = vpop.permute.xlu0 %563
      %567 = vset.pattern.permute.xlu0 0
      %568 = vperm.xlu0 %567, %v462
      %v569 = vpop.permute.xlu0 %568
      %572 = vset.pattern.permute.xlu0 0
      %573 = vperm.xlu0 %572, %v463
      %v574 = vpop.permute.xlu0 %573
      %577 = vset.pattern.permute.xlu0 0
      %578 = vperm.xlu0 %577, %v464
      %v579 = vpop.permute.xlu0 %578
      %582 = vset.pattern.permute.xlu0 0
      %583 = vperm.xlu0 %582, %v465
      %v584 = vpop.permute.xlu0 %583
      %587 = vset.pattern.permute.xlu0 0
      %588 = vperm.xlu0 %587, %v466
      %v589 = vpop.permute.xlu0 %588
      %592 = vset.pattern.permute.xlu0 0
      %593 = vperm.xlu0 %592, %v467
      %v594 = vpop.permute.xlu0 %593
      %v596 = vsub.f32 %v388, %v519
      %v597 = vsub.f32 %v389, %v524
      %v598 = vsub.f32 %v390, %v529
      %v599 = vsub.f32 %v391, %v534
      %v600 = vsub.f32 %v392, %v539
      %v601 = vsub.f32 %v393, %v544
      %v602 = vsub.f32 %v394, %v549
      %v603 = vsub.f32 %v395, %v554
      %v604 = vsub.f32 %v396, %v559
      %v605 = vsub.f32 %v397, %v564
      %v606 = vsub.f32 %v398, %v569
      %v607 = vsub.f32 %v399, %v574
      %v608 = vsub.f32 %v400, %v579
      %v609 = vsub.f32 %v401, %v584
      %v610 = vsub.f32 %v402, %v589
      %v611 = vsub.f32 %v403, %v594
      %v612 = vmul.f32 %v596, 1.442695
      %v613 = vpow.pop %v612
      %v614 = vmul.f32 %v597, 1.442695
      %v615 = vpow.pop %v614
      %v616 = vmul.f32 %v598, 1.442695
      %v617 = vpow.pop %v616
      %v618 = vmul.f32 %v599, 1.442695
      %v619 = vpow.pop %v618
      %v620 = vmul.f32 %v600, 1.442695
      %v621 = vpow.pop %v620
      %v622 = vmul.f32 %v601, 1.442695
      %v623 = vpow.pop %v622
      %v624 = vmul.f32 %v602, 1.442695
      %v625 = vpow.pop %v624
      %v626 = vmul.f32 %v603, 1.442695
      %v627 = vpow.pop %v626
      %v628 = vmul.f32 %v604, 1.442695
      %v629 = vpow.pop %v628
      %v630 = vmul.f32 %v605, 1.442695
      %v631 = vpow.pop %v630
      %v632 = vmul.f32 %v606, 1.442695
      %v633 = vpow.pop %v632
      %v634 = vmul.f32 %v607, 1.442695
      %v635 = vpow.pop %v634
      %v636 = vmul.f32 %v608, 1.442695
      %v637 = vpow.pop %v636
      %v638 = vmul.f32 %v609, 1.442695
      %v639 = vpow.pop %v638
      %v640 = vmul.f32 %v610, 1.442695
      %v641 = vpow.pop %v640
      %v642 = vmul.f32 %v611, 1.442695
      %v643 = vpow.pop %v642
      %v644 = vld [vmem:[#allocation3] sm:$0xff]
      %v645 = vld [vmem:[#allocation3 + $0x8] sm:$0xff]
      %v646 = vld [vmem:[#allocation3 + $0x10] sm:$0xff]
      %v647 = vld [vmem:[#allocation3 + $0x18] sm:$0xff]
      %v648 = vld [vmem:[#allocation3 + $0x20] sm:$0xff]
      %v649 = vld [vmem:[#allocation3 + $0x28] sm:$0xff]
      %v650 = vld [vmem:[#allocation3 + $0x30] sm:$0xff]
      %v651 = vld [vmem:[#allocation3 + $0x38] sm:$0xff]
      %v652 = vld [vmem:[#allocation3 + $0x40] sm:$0xff]
      %v653 = vld [vmem:[#allocation3 + $0x48] sm:$0xff]
      %v654 = vld [vmem:[#allocation3 + $0x50] sm:$0xff]
      %v655 = vld [vmem:[#allocation3 + $0x58] sm:$0xff]
      %v656 = vld [vmem:[#allocation3 + $0x60] sm:$0xff]
      %v657 = vld [vmem:[#allocation3 + $0x68] sm:$0xff]
      %v658 = vld [vmem:[#allocation3 + $0x70] sm:$0xff]
      %v659 = vld [vmem:[#allocation3 + $0x78] sm:$0xff]
      %v660 = vmul.f32 %v485, %v644
      %v661 = vmul.f32 %v487, %v645
      %v662 = vmul.f32 %v489, %v646
      %v663 = vmul.f32 %v491, %v647
      %v664 = vmul.f32 %v493, %v648
      %v665 = vmul.f32 %v495, %v649
      %v666 = vmul.f32 %v497, %v650
      %v667 = vmul.f32 %v499, %v651
      %v668 = vmul.f32 %v501, %v652
      %v669 = vmul.f32 %v503, %v653
      %v670 = vmul.f32 %v505, %v654
      %v671 = vmul.f32 %v507, %v655
      %v672 = vmul.f32 %v509, %v656
      %v673 = vmul.f32 %v511, %v657
      %v674 = vmul.f32 %v513, %v658
      %v675 = vmul.f32 %v515, %v659
      %676 = vadd.xlane.f32.xlu0 %v613
      %v677 = vpop.xlane.xlu0 %676
      %678 = vadd.xlane.f32.xlu0 %v615
      %v679 = vpop.xlane.xlu0 %678
      %680 = vadd.xlane.f32.xlu0 %v617
      %v681 = vpop.xlane.xlu0 %680
      %682 = vadd.xlane.f32.xlu0 %v619
      %v683 = vpop.xlane.xlu0 %682
      %684 = vadd.xlane.f32.xlu0 %v621
      %v685 = vpop.xlane.xlu0 %684
      %686 = vadd.xlane.f32.xlu0 %v623
      %v687 = vpop.xlane.xlu0 %686
      %688 = vadd.xlane.f32.xlu0 %v625
      %v689 = vpop.xlane.xlu0 %688
      %690 = vadd.xlane.f32.xlu0 %v627
      %v691 = vpop.xlane.xlu0 %690
      %692 = vadd.xlane.f32.xlu0 %v629
      %v693 = vpop.xlane.xlu0 %692
      %694 = vadd.xlane.f32.xlu0 %v631
      %v695 = vpop.xlane.xlu0 %694
      %696 = vadd.xlane.f32.xlu0 %v633
      %v697 = vpop.xlane.xlu0 %696
      %698 = vadd.xlane.f32.xlu0 %v635
      %v699 = vpop.xlane.xlu0 %698
      %700 = vadd.xlane.f32.xlu0 %v637
      %v701 = vpop.xlane.xlu0 %700
      %702 = vadd.xlane.f32.xlu0 %v639
      %v703 = vpop.xlane.xlu0 %702
      %704 = vadd.xlane.f32.xlu0 %v641
      %v705 = vpop.xlane.xlu0 %704
      %706 = vadd.xlane.f32.xlu0 %v643
      %v707 = vpop.xlane.xlu0 %706
      %v708 = vadd.f32 %v660, %v677
      %v709 = vadd.f32 %v661, %v679
      %v710 = vadd.f32 %v662, %v681
      %v711 = vadd.f32 %v663, %v683
      %v712 = vadd.f32 %v664, %v685
      %v713 = vadd.f32 %v665, %v687
      %v714 = vadd.f32 %v666, %v689
      %v715 = vadd.f32 %v667, %v691
      %v716 = vadd.f32 %v668, %v693
      %v717 = vadd.f32 %v669, %v695
      %v718 = vadd.f32 %v670, %v697
      %v719 = vadd.f32 %v671, %v699
      %v720 = vadd.f32 %v672, %v701
      %v721 = vadd.f32 %v673, %v703
      %v722 = vadd.f32 %v674, %v705
      %v723 = vadd.f32 %v675, %v707
      %vm724 = vcmask 7168
      %725 = vst.msk [vmem:[#allocation3] sm:$0xff] %vm724, %v708
      %726 = vst.msk [vmem:[#allocation3 + $0x8] sm:$0xff] %vm724, %v709
      %727 = vst.msk [vmem:[#allocation3 + $0x10] sm:$0xff] %vm724, %v710
      %728 = vst.msk [vmem:[#allocation3 + $0x18] sm:$0xff] %vm724, %v711
      %729 = vst.msk [vmem:[#allocation3 + $0x20] sm:$0xff] %vm724, %v712
      %730 = vst.msk [vmem:[#allocation3 + $0x28] sm:$0xff] %vm724, %v713
      %731 = vst.msk [vmem:[#allocation3 + $0x30] sm:$0xff] %vm724, %v714
      %732 = vst.msk [vmem:[#allocation3 + $0x38] sm:$0xff] %vm724, %v715
      %733 = vst.msk [vmem:[#allocation3 + $0x40] sm:$0xff] %vm724, %v716
      %734 = vst.msk [vmem:[#allocation3 + $0x48] sm:$0xff] %vm724, %v717
      %735 = vst.msk [vmem:[#allocation3 + $0x50] sm:$0xff] %vm724, %v718
      %736 = vst.msk [vmem:[#allocation3 + $0x58] sm:$0xff] %vm724, %v719
      %737 = vst.msk [vmem:[#allocation3 + $0x60] sm:$0xff] %vm724, %v720
      %738 = vst.msk [vmem:[#allocation3 + $0x68] sm:$0xff] %vm724, %v721
      %739 = vst.msk [vmem:[#allocation3 + $0x70] sm:$0xff] %vm724, %v722
      %740 = vst.msk [vmem:[#allocation3 + $0x78] sm:$0xff] %vm724, %v723
      %741 = vst.msk [vmem:[#allocation2] sm:$0xff] %vm724, %v452
      %742 = vst.msk [vmem:[#allocation2 + $0x8] sm:$0xff] %vm724, %v453
      %743 = vst.msk [vmem:[#allocation2 + $0x10] sm:$0xff] %vm724, %v454
      %744 = vst.msk [vmem:[#allocation2 + $0x18] sm:$0xff] %vm724, %v455
      %745 = vst.msk [vmem:[#allocation2 + $0x20] sm:$0xff] %vm724, %v456
      %746 = vst.msk [vmem:[#allocation2 + $0x28] sm:$0xff] %vm724, %v457
      %747 = vst.msk [vmem:[#allocation2 + $0x30] sm:$0xff] %vm724, %v458
      %748 = vst.msk [vmem:[#allocation2 + $0x38] sm:$0xff] %vm724, %v459
      %749 = vst.msk [vmem:[#allocation2 + $0x40] sm:$0xff] %vm724, %v460
      %750 = vst.msk [vmem:[#allocation2 + $0x48] sm:$0xff] %vm724, %v461
      %751 = vst.msk [vmem:[#allocation2 + $0x50] sm:$0xff] %vm724, %v462
      %752 = vst.msk [vmem:[#allocation2 + $0x58] sm:$0xff] %vm724, %v463
      %753 = vst.msk [vmem:[#allocation2 + $0x60] sm:$0xff] %vm724, %v464
      %754 = vst.msk [vmem:[#allocation2 + $0x68] sm:$0xff] %vm724, %v465
      %755 = vst.msk [vmem:[#allocation2 + $0x70] sm:$0xff] %vm724, %v466
      %756 = vst.msk [vmem:[#allocation2 + $0x78] sm:$0xff] %vm724, %v467
      %v757 = vpack.c.bf16 %v615, %v613
      %v758 = vpack.c.bf16 %v619, %v617
      %v759 = vpack.c.bf16 %v623, %v621
      %v760 = vpack.c.bf16 %v627, %v625
      %v761 = vpack.c.bf16 %v631, %v629
      %v762 = vpack.c.bf16 %v635, %v633
      %v763 = vpack.c.bf16 %v639, %v637
      %v764 = vpack.c.bf16 %v643, %v641
      %v765 = vld [vmem:[%s5] sm:$0xf]
      %v766 = vld [vmem:[%s5 + $0x4] sm:$0xf]
      %v767 = vld [vmem:[%s5 + $0x8] sm:$0xf]
      %v768 = vld [vmem:[%s5 + $0xc] sm:$0xf]
      %v769 = vld [vmem:[%s5 + $0x10] sm:$0xf]
      %v770 = vld [vmem:[%s5 + $0x14] sm:$0xf]
      %v771 = vld [vmem:[%s5 + $0x18] sm:$0xf]
      %v772 = vld [vmem:[%s5 + $0x1c] sm:$0xf]
      %v773 = vld [vmem:[%s5 + $0x20] sm:$0xf]
      %v774 = vld [vmem:[%s5 + $0x24] sm:$0xf]
      %v775 = vld [vmem:[%s5 + $0x28] sm:$0xf]
      %v776 = vld [vmem:[%s5 + $0x2c] sm:$0xf]
      %v777 = vld [vmem:[%s5 + $0x30] sm:$0xf]
      %v778 = vld [vmem:[%s5 + $0x34] sm:$0xf]
      %v779 = vld [vmem:[%s5 + $0x38] sm:$0xf]
      %v780 = vld [vmem:[%s5 + $0x3c] sm:$0xf]
      %v797 = vunpack.c.l.b16 %v765
      %v798 = vunpack.c.l.b16 %v766
      %v799 = vunpack.c.l.b16 %v767
      %v800 = vunpack.c.l.b16 %v768
      %v801 = vunpack.c.l.b16 %v769
      %v802 = vunpack.c.l.b16 %v770
      %v803 = vunpack.c.l.b16 %v771
      %v804 = vunpack.c.l.b16 %v772
      %v805 = vunpack.c.l.b16 %v773
      %v806 = vunpack.c.l.b16 %v774
      %v807 = vunpack.c.l.b16 %v775
      %v808 = vunpack.c.l.b16 %v776
      %v809 = vunpack.c.l.b16 %v777
      %v810 = vunpack.c.l.b16 %v778
      %v811 = vunpack.c.l.b16 %v779
      %v812 = vunpack.c.l.b16 %v780
      %v813 = vpack.c.b16 %v798, %v797
      %v814 = vpack.c.b16 %v800, %v799
      %v815 = vpack.c.b16 %v802, %v801
      %v816 = vpack.c.b16 %v804, %v803
      %v817 = vpack.c.b16 %v806, %v805
      %v818 = vpack.c.b16 %v808, %v807
      %v819 = vpack.c.b16 %v810, %v809
      %v820 = vpack.c.b16 %v812, %v811
      %829 = vmatprep.subr.bf16.mxu0 0
      %830 = vmatpush1.bf16.msra.mxu0 %v820
      %831 = vmatprep.subr.bf16.mxu0 0
      %832 = vmatpush1.bf16.msra.mxu0 %v819
      %833 = vmatprep.subr.bf16.mxu0 0
      %834 = vmatpush1.bf16.msra.mxu0 %v818
      %835 = vmatprep.subr.bf16.mxu0 0
      %836 = vmatpush1.bf16.msra.mxu0 %v817
      %837 = vmatprep.subr.bf16.mxu0 0
      %838 = vmatpush1.bf16.msra.mxu0 %v816
      %839 = vmatprep.subr.bf16.mxu0 0
      %840 = vmatpush1.bf16.msra.mxu0 %v815
      %841 = vmatprep.subr.bf16.mxu0 0
      %842 = vmatpush1.bf16.msra.mxu0 %v814
      %843 = vmatprep.subr.bf16.mxu0 0
      %844 = vmatpush1.bf16.msra.mxu0 %v813
      %845 = vmatprep.subr.bf16.mxu0 0
      %846 = vmatpush2.bf16.msra.mxu0 0
      %847 = vmatprep.subr.bf16.mxu0 0
      %848 = vmatpush2.bf16.msra.mxu0 0
      %849 = vmatprep.subr.bf16.mxu0 0
      %850 = vmatpush2.bf16.msra.mxu0 0
      %851 = vmatprep.subr.bf16.mxu0 0
      %852 = vmatpush2.bf16.msra.mxu0 0
      %853 = vmatprep.subr.bf16.mxu0 0
      %854 = vmatpush2.bf16.msra.mxu0 0
      %855 = vmatprep.subr.bf16.mxu0 0
      %856 = vmatpush2.bf16.msra.mxu0 0
      %857 = vmatprep.subr.bf16.mxu0 0
      %858 = vmatpush2.bf16.msra.mxu0 0
      %859 = vmatprep.subr.bf16.mxu0 0
      %860 = vmatpush2.bf16.msra.mxu0 0
      %861 = vmatprep.mubr.bf16.mxu0 0
      %862 = vmatmul.mubr.bf16.gmra.mxu0 %v757
      %v863 = vpop.f32.mrf.mxu0
      %v864 = vadd.f32 0.0, %v863
      %v865 = vpop.f32.mrf.mxu0
      %v866 = vpop.f32.mrf.mxu0
      %v867 = vadd.f32 0.0, %v866
      %v868 = vpop.f32.mrf.mxu0
      %869 = vmatprep.mubr.bf16.mxu0 0
      %870 = vmatmul.mubr.bf16.gmra.mxu0 %v758
      %v871 = vpop.f32.mrf.mxu0
      %v872 = vadd.f32 0.0, %v871
      %v873 = vpop.f32.mrf.mxu0
      %v874 = vpop.f32.mrf.mxu0
      %v875 = vadd.f32 0.0, %v874
      %v876 = vpop.f32.mrf.mxu0
      %877 = vmatprep.mubr.bf16.mxu0 0
      %878 = vmatmul.mubr.bf16.gmra.mxu0 %v759
      %v879 = vpop.f32.mrf.mxu0
      %v880 = vadd.f32 0.0, %v879
      %v881 = vpop.f32.mrf.mxu0
      %v882 = vpop.f32.mrf.mxu0
      %v883 = vadd.f32 0.0, %v882
      %v884 = vpop.f32.mrf.mxu0
      %885 = vmatprep.mubr.bf16.mxu0 0
      %886 = vmatmul.mubr.bf16.gmra.mxu0 %v760
      %v887 = vpop.f32.mrf.mxu0
      %v888 = vadd.f32 0.0, %v887
      %v889 = vpop.f32.mrf.mxu0
      %v890 = vpop.f32.mrf.mxu0
      %v891 = vadd.f32 0.0, %v890
      %v892 = vpop.f32.mrf.mxu0
      %893 = vmatprep.mubr.bf16.mxu0 0
      %894 = vmatmul.mubr.bf16.gmra.mxu0 %v761
      %v895 = vpop.f32.mrf.mxu0
      %v896 = vadd.f32 0.0, %v895
      %v897 = vpop.f32.mrf.mxu0
      %v898 = vpop.f32.mrf.mxu0
      %v899 = vadd.f32 0.0, %v898
      %v900 = vpop.f32.mrf.mxu0
      %901 = vmatprep.mubr.bf16.mxu0 0
      %902 = vmatmul.mubr.bf16.gmra.mxu0 %v762
      %v903 = vpop.f32.mrf.mxu0
      %v904 = vadd.f32 0.0, %v903
      %v905 = vpop.f32.mrf.mxu0
      %v906 = vpop.f32.mrf.mxu0
      %v907 = vadd.f32 0.0, %v906
      %v908 = vpop.f32.mrf.mxu0
      %909 = vmatprep.mubr.bf16.mxu0 0
      %910 = vmatmul.mubr.bf16.gmra.mxu0 %v763
      %v911 = vpop.f32.mrf.mxu0
      %v912 = vadd.f32 0.0, %v911
      %v913 = vpop.f32.mrf.mxu0
      %v914 = vpop.f32.mrf.mxu0
      %v915 = vadd.f32 0.0, %v914
      %v916 = vpop.f32.mrf.mxu0
      %917 = vmatprep.mubr.bf16.mxu0 0
      %918 = vmatmul.mubr.bf16.gmra.mxu0 %v764
      %v919 = vpop.f32.mrf.mxu0
      %v920 = vadd.f32 0.0, %v919
      %v921 = vpop.f32.mrf.mxu0
      %v922 = vpop.f32.mrf.mxu0
      %v923 = vadd.f32 0.0, %v922
      %v924 = vpop.f32.mrf.mxu0
      %925 = vdwg.mxu0
      %v926 = vld [vmem:[#allocation4] sm:$0xff]
      %v927 = vld [vmem:[#allocation4 + $0x8] sm:$0xff]
      %v928 = vld [vmem:[#allocation4 + $0x10] sm:$0xff]
      %v929 = vld [vmem:[#allocation4 + $0x18] sm:$0xff]
      %v930 = vld [vmem:[#allocation4 + $0x20] sm:$0xff]
      %v931 = vld [vmem:[#allocation4 + $0x28] sm:$0xff]
      %v932 = vld [vmem:[#allocation4 + $0x30] sm:$0xff]
      %v933 = vld [vmem:[#allocation4 + $0x38] sm:$0xff]
      %v934 = vld [vmem:[#allocation4 + $0x40] sm:$0xff]
      %v935 = vld [vmem:[#allocation4 + $0x48] sm:$0xff]
      %v936 = vld [vmem:[#allocation4 + $0x50] sm:$0xff]
      %v937 = vld [vmem:[#allocation4 + $0x58] sm:$0xff]
      %v938 = vld [vmem:[#allocation4 + $0x60] sm:$0xff]
      %v939 = vld [vmem:[#allocation4 + $0x68] sm:$0xff]
      %v940 = vld [vmem:[#allocation4 + $0x70] sm:$0xff]
      %v941 = vld [vmem:[#allocation4 + $0x78] sm:$0xff]
      %943 = vset.pattern.permute.xlu0 0
      %944 = vperm.xlu0 %943, %v485
      %v945 = vpop.permute.xlu0 %944
      %948 = vset.pattern.permute.xlu0 0
      %949 = vperm.xlu0 %948, %v487
      %v950 = vpop.permute.xlu0 %949
      %953 = vset.pattern.permute.xlu0 0
      %954 = vperm.xlu0 %953, %v489
      %v955 = vpop.permute.xlu0 %954
      %958 = vset.pattern.permute.xlu0 0
      %959 = vperm.xlu0 %958, %v491
      %v960 = vpop.permute.xlu0 %959
      %963 = vset.pattern.permute.xlu0 0
      %964 = vperm.xlu0 %963, %v493
      %v965 = vpop.permute.xlu0 %964
      %968 = vset.pattern.permute.xlu0 0
      %969 = vperm.xlu0 %968, %v495
      %v970 = vpop.permute.xlu0 %969
      %973 = vset.pattern.permute.xlu0 0
      %974 = vperm.xlu0 %973, %v497
      %v975 = vpop.permute.xlu0 %974
      %978 = vset.pattern.permute.xlu0 0
      %979 = vperm.xlu0 %978, %v499
      %v980 = vpop.permute.xlu0 %979
      %983 = vset.pattern.permute.xlu0 0
      %984 = vperm.xlu0 %983, %v501
      %v985 = vpop.permute.xlu0 %984
      %988 = vset.pattern.permute.xlu0 0
      %989 = vperm.xlu0 %988, %v503
      %v990 = vpop.permute.xlu0 %989
      %993 = vset.pattern.permute.xlu0 0
      %994 = vperm.xlu0 %993, %v505
      %v995 = vpop.permute.xlu0 %994
      %998 = vset.pattern.permute.xlu0 0
      %999 = vperm.xlu0 %998, %v507
      %v1000 = vpop.permute.xlu0 %999
      %1003 = vset.pattern.permute.xlu0 0
      %1004 = vperm.xlu0 %1003, %v509
      %v1005 = vpop.permute.xlu0 %1004
      %1008 = vset.pattern.permute.xlu0 0
      %1009 = vperm.xlu0 %1008, %v511
      %v1010 = vpop.permute.xlu0 %1009
      %1013 = vset.pattern.permute.xlu0 0
      %1014 = vperm.xlu0 %1013, %v513
      %v1015 = vpop.permute.xlu0 %1014
      %1018 = vset.pattern.permute.xlu0 0
      %1019 = vperm.xlu0 %1018, %v515
      %v1020 = vpop.permute.xlu0 %1019
      %v1022 = vmul.f32 %v945, %v926
      %v1023 = vmul.f32 %v950, %v927
      %v1024 = vmul.f32 %v955, %v928
      %v1025 = vmul.f32 %v960, %v929
      %v1026 = vmul.f32 %v965, %v930
      %v1027 = vmul.f32 %v970, %v931
      %v1028 = vmul.f32 %v975, %v932
      %v1029 = vmul.f32 %v980, %v933
      %v1030 = vmul.f32 %v985, %v934
      %v1031 = vmul.f32 %v990, %v935
      %v1032 = vmul.f32 %v995, %v936
      %v1033 = vmul.f32 %v1000, %v937
      %v1034 = vmul.f32 %v1005, %v938
      %v1035 = vmul.f32 %v1010, %v939
      %v1036 = vmul.f32 %v1015, %v940
      %v1037 = vmul.f32 %v1020, %v941
      %v1038 = vadd.f32 %v1022, %v864
      %v1039 = vadd.f32 %v1023, %v867
      %v1040 = vadd.f32 %v1024, %v872
      %v1041 = vadd.f32 %v1025, %v875
      %v1042 = vadd.f32 %v1026, %v880
      %v1043 = vadd.f32 %v1027, %v883
      %v1044 = vadd.f32 %v1028, %v888
      %v1045 = vadd.f32 %v1029, %v891
      %v1046 = vadd.f32 %v1030, %v896
      %v1047 = vadd.f32 %v1031, %v899
      %v1048 = vadd.f32 %v1032, %v904
      %v1049 = vadd.f32 %v1033, %v907
      %v1050 = vadd.f32 %v1034, %v912
      %v1051 = vadd.f32 %v1035, %v915
      %v1052 = vadd.f32 %v1036, %v920
      %v1053 = vadd.f32 %v1037, %v923
      %vm1054 = vcmask 130048
      %1055 = vst.msk [vmem:[#allocation4] sm:$0xff] %vm1054, %v1038
      %1056 = vst.msk [vmem:[#allocation4 + $0x8] sm:$0xff] %vm1054, %v1039
      %1057 = vst.msk [vmem:[#allocation4 + $0x10] sm:$0xff] %vm1054, %v1040
      %1058 = vst.msk [vmem:[#allocation4 + $0x18] sm:$0xff] %vm1054, %v1041
      %1059 = vst.msk [vmem:[#allocation4 + $0x20] sm:$0xff] %vm1054, %v1042
      %1060 = vst.msk [vmem:[#allocation4 + $0x28] sm:$0xff] %vm1054, %v1043
      %1061 = vst.msk [vmem:[#allocation4 + $0x30] sm:$0xff] %vm1054, %v1044
      %1062 = vst.msk [vmem:[#allocation4 + $0x38] sm:$0xff] %vm1054, %v1045
      %1063 = vst.msk [vmem:[#allocation4 + $0x40] sm:$0xff] %vm1054, %v1046
      %1064 = vst.msk [vmem:[#allocation4 + $0x48] sm:$0xff] %vm1054, %v1047
      %1065 = vst.msk [vmem:[#allocation4 + $0x50] sm:$0xff] %vm1054, %v1048
      %1066 = vst.msk [vmem:[#allocation4 + $0x58] sm:$0xff] %vm1054, %v1049
      %1067 = vst.msk [vmem:[#allocation4 + $0x60] sm:$0xff] %vm1054, %v1050
      %1068 = vst.msk [vmem:[#allocation4 + $0x68] sm:$0xff] %vm1054, %v1051
      %1069 = vst.msk [vmem:[#allocation4 + $0x70] sm:$0xff] %vm1054, %v1052
      %1070 = vst.msk [vmem:[#allocation4 + $0x78] sm:$0xff] %vm1054, %v1053
      %s1071 = sld [smem:[#allocation6 + $0x1]]
      %v1072 = vstv %s1071
      %v1073 = vsel %vm137, %v1072, -1e+30
      %v1074 = vsel %vm138, %v1072, -1e+30
      %v1075 = vsel %vm139, %v1072, -1e+30
      %v1076 = vsel %vm140, %v1072, -1e+30
      %v1077 = vsel %vm141, %v1072, -1e+30
      %v1078 = vsel %vm142, %v1072, -1e+30
      %v1079 = vsel %vm143, %v1072, -1e+30
      %v1080 = vsel %vm144, %v1072, -1e+30
      %v1081 = vsel %vm145, %v1072, -1e+30
      %v1082 = vsel %vm146, %v1072, -1e+30
      %v1083 = vsel %vm147, %v1072, -1e+30
      %v1084 = vsel %vm148, %v1072, -1e+30
      %v1085 = vsel %vm149, %v1072, -1e+30
      %v1086 = vsel %vm150, %v1072, -1e+30
      %v1087 = vsel %vm151, %v1072, -1e+30
      %v1088 = vsel %vm152, %v1072, -1e+30
      %s1089 = sld [smem:[#allocation6 + $0x81]]
      %v1090 = vstv %s1089
      %v1091 = vsel %vm171, %v1090, %v1073
      %v1092 = vsel %vm172, %v1090, %v1074
      %v1093 = vsel %vm173, %v1090, %v1075
      %v1094 = vsel %vm174, %v1090, %v1076
      %v1095 = vsel %vm175, %v1090, %v1077
      %v1096 = vsel %vm176, %v1090, %v1078
      %v1097 = vsel %vm177, %v1090, %v1079
      %v1098 = vsel %vm178, %v1090, %v1080
      %v1099 = vsel %vm179, %v1090, %v1081
      %v1100 = vsel %vm180, %v1090, %v1082
      %v1101 = vsel %vm181, %v1090, %v1083
      %v1102 = vsel %vm182, %v1090, %v1084
      %v1103 = vsel %vm183, %v1090, %v1085
      %v1104 = vsel %vm184, %v1090, %v1086
      %v1105 = vsel %vm185, %v1090, %v1087
      %v1106 = vsel %vm186, %v1090, %v1088
      %s1107 = sld [smem:[#allocation6 + $0x101]]
      %v1108 = vstv %s1107
      %v1109 = vsel %vm205, %v1108, %v1091
      %v1110 = vsel %vm206, %v1108, %v1092
      %v1111 = vsel %vm207, %v1108, %v1093
      %v1112 = vsel %vm208, %v1108, %v1094
      %v1113 = vsel %vm209, %v1108, %v1095
      %v1114 = vsel %vm210, %v1108, %v1096
      %v1115 = vsel %vm211, %v1108, %v1097
      %v1116 = vsel %vm212, %v1108, %v1098
      %v1117 = vsel %vm213, %v1108, %v1099
      %v1118 = vsel %vm214, %v1108, %v1100
      %v1119 = vsel %vm215, %v1108, %v1101
      %v1120 = vsel %vm216, %v1108, %v1102
      %v1121 = vsel %vm217, %v1108, %v1103
      %v1122 = vsel %vm218, %v1108, %v1104
      %v1123 = vsel %vm219, %v1108, %v1105
      %v1124 = vsel %vm220, %v1108, %v1106
      %v1125 = vld [vmem:[%s2 + $0x1] sm:$0x1]
      %v1126 = vld [vmem:[%s3] sm:$0xff]
      %v1127 = vld [vmem:[%s3 + $0x8] sm:$0xff]
      %v1128 = vld [vmem:[%s3 + $0x10] sm:$0xff]
      %v1129 = vld [vmem:[%s3 + $0x18] sm:$0xff]
      %v1130 = vld [vmem:[%s3 + $0x20] sm:$0xff]
      %v1131 = vld [vmem:[%s3 + $0x28] sm:$0xff]
      %v1132 = vld [vmem:[%s3 + $0x30] sm:$0xff]
      %v1133 = vld [vmem:[%s3 + $0x38] sm:$0xff]
      %v1134 = vld [vmem:[%s3 + $0x40] sm:$0xff]
      %v1135 = vld [vmem:[%s3 + $0x48] sm:$0xff]
      %v1136 = vld [vmem:[%s3 + $0x50] sm:$0xff]
      %v1137 = vld [vmem:[%s3 + $0x58] sm:$0xff]
      %v1138 = vld [vmem:[%s3 + $0x60] sm:$0xff]
      %v1139 = vld [vmem:[%s3 + $0x68] sm:$0xff]
      %v1140 = vld [vmem:[%s3 + $0x70] sm:$0xff]
      %v1141 = vld [vmem:[%s3 + $0x78] sm:$0xff]
      %v1142 = vlaneseq
      %v1143 = vshrl.u32 %v1142, 7
      %v1144 = vsub.s32 0, %v1143
      %v1145 = vrot.slane %v1125, %v1144
      %1147 = vset.pattern.permute.xlu0 1
      %1148 = vperm.xlu0 %1147, %v1126
      %v1149 = vpop.permute.xlu0 %1148
      %1152 = vset.pattern.permute.xlu0 1
      %1153 = vperm.xlu0 %1152, %v1127
      %v1154 = vpop.permute.xlu0 %1153
      %1157 = vset.pattern.permute.xlu0 1
      %1158 = vperm.xlu0 %1157, %v1128
      %v1159 = vpop.permute.xlu0 %1158
      %1162 = vset.pattern.permute.xlu0 1
      %1163 = vperm.xlu0 %1162, %v1129
      %v1164 = vpop.permute.xlu0 %1163
      %1167 = vset.pattern.permute.xlu0 1
      %1168 = vperm.xlu0 %1167, %v1130
      %v1169 = vpop.permute.xlu0 %1168
      %1172 = vset.pattern.permute.xlu0 1
      %1173 = vperm.xlu0 %1172, %v1131
      %v1174 = vpop.permute.xlu0 %1173
      %1177 = vset.pattern.permute.xlu0 1
      %1178 = vperm.xlu0 %1177, %v1132
      %v1179 = vpop.permute.xlu0 %1178
      %1182 = vset.pattern.permute.xlu0 1
      %1183 = vperm.xlu0 %1182, %v1133
      %v1184 = vpop.permute.xlu0 %1183
      %1187 = vset.pattern.permute.xlu0 1
      %1188 = vperm.xlu0 %1187, %v1134
      %v1189 = vpop.permute.xlu0 %1188
      %1192 = vset.pattern.permute.xlu0 1
      %1193 = vperm.xlu0 %1192, %v1135
      %v1194 = vpop.permute.xlu0 %1193
      %1197 = vset.pattern.permute.xlu0 1
      %1198 = vperm.xlu0 %1197, %v1136
      %v1199 = vpop.permute.xlu0 %1198
      %1202 = vset.pattern.permute.xlu0 1
      %1203 = vperm.xlu0 %1202, %v1137
      %v1204 = vpop.permute.xlu0 %1203
      %1207 = vset.pattern.permute.xlu0 1
      %1208 = vperm.xlu0 %1207, %v1138
      %v1209 = vpop.permute.xlu0 %1208
      %1212 = vset.pattern.permute.xlu0 1
      %1213 = vperm.xlu0 %1212, %v1139
      %v1214 = vpop.permute.xlu0 %1213
      %1217 = vset.pattern.permute.xlu0 1
      %1218 = vperm.xlu0 %1217, %v1140
      %v1219 = vpop.permute.xlu0 %1218
      %1222 = vset.pattern.permute.xlu0 1
      %1223 = vperm.xlu0 %1222, %v1141
      %v1224 = vpop.permute.xlu0 %1223
      %v1226 = vadd.f32 %v1145, %v1149
      %v1227 = vadd.f32 %v1145, %v1154
      %v1228 = vadd.f32 %v1145, %v1159
      %v1229 = vadd.f32 %v1145, %v1164
      %v1230 = vadd.f32 %v1145, %v1169
      %v1231 = vadd.f32 %v1145, %v1174
      %v1232 = vadd.f32 %v1145, %v1179
      %v1233 = vadd.f32 %v1145, %v1184
      %v1234 = vadd.f32 %v1145, %v1189
      %v1235 = vadd.f32 %v1145, %v1194
      %v1236 = vadd.f32 %v1145, %v1199
      %v1237 = vadd.f32 %v1145, %v1204
      %v1238 = vadd.f32 %v1145, %v1209
      %v1239 = vadd.f32 %v1145, %v1214
      %v1240 = vadd.f32 %v1145, %v1219
      %v1241 = vadd.f32 %v1145, %v1224
      %v1242 = vadd.f32 %v1226, %v1109
      %v1243 = vadd.f32 %v1227, %v1110
      %v1244 = vadd.f32 %v1228, %v1111
      %v1245 = vadd.f32 %v1229, %v1112
      %v1246 = vadd.f32 %v1230, %v1113
      %v1247 = vadd.f32 %v1231, %v1114
      %v1248 = vadd.f32 %v1232, %v1115
      %v1249 = vadd.f32 %v1233, %v1116
      %v1250 = vadd.f32 %v1234, %v1117
      %v1251 = vadd.f32 %v1235, %v1118
      %v1252 = vadd.f32 %v1236, %v1119
      %v1253 = vadd.f32 %v1237, %v1120
      %v1254 = vadd.f32 %v1238, %v1121
      %v1255 = vadd.f32 %v1239, %v1122
      %v1256 = vadd.f32 %v1240, %v1123
      %v1257 = vadd.f32 %v1241, %v1124
      %v1258 = vmul.f32 %v1242, 0.2
      %v1259 = vmul.f32 %v1243, 0.2
      %v1260 = vmul.f32 %v1244, 0.2
      %v1261 = vmul.f32 %v1245, 0.2
      %v1262 = vmul.f32 %v1246, 0.2
      %v1263 = vmul.f32 %v1247, 0.2
      %v1264 = vmul.f32 %v1248, 0.2
      %v1265 = vmul.f32 %v1249, 0.2
      %v1266 = vmul.f32 %v1250, 0.2
      %v1267 = vmul.f32 %v1251, 0.2
      %v1268 = vmul.f32 %v1252, 0.2
      %v1269 = vmul.f32 %v1253, 0.2
      %v1270 = vmul.f32 %v1254, 0.2
      %v1271 = vmul.f32 %v1255, 0.2
      %v1272 = vmul.f32 %v1256, 0.2
      %v1273 = vmul.f32 %v1257, 0.2
      %v1274 = vmax.f32 %v1242, %v1258
      %v1275 = vmax.f32 %v1243, %v1259
      %v1276 = vmax.f32 %v1244, %v1260
      %v1277 = vmax.f32 %v1245, %v1261
      %v1278 = vmax.f32 %v1246, %v1262
      %v1279 = vmax.f32 %v1247, %v1263
      %v1280 = vmax.f32 %v1248, %v1264
      %v1281 = vmax.f32 %v1249, %v1265
      %v1282 = vmax.f32 %v1250, %v1266
      %v1283 = vmax.f32 %v1251, %v1267
      %v1284 = vmax.f32 %v1252, %v1268
      %v1285 = vmax.f32 %v1253, %v1269
      %v1286 = vmax.f32 %v1254, %v1270
      %v1287 = vmax.f32 %v1255, %v1271
      %v1288 = vmax.f32 %v1256, %v1272
      %v1289 = vmax.f32 %v1257, %v1273
      %v1290 = vld [vmem:[#allocation2] sm:$0xff]
      %v1291 = vld [vmem:[#allocation2 + $0x8] sm:$0xff]
      %v1292 = vld [vmem:[#allocation2 + $0x10] sm:$0xff]
      %v1293 = vld [vmem:[#allocation2 + $0x18] sm:$0xff]
      %v1294 = vld [vmem:[#allocation2 + $0x20] sm:$0xff]
      %v1295 = vld [vmem:[#allocation2 + $0x28] sm:$0xff]
      %v1296 = vld [vmem:[#allocation2 + $0x30] sm:$0xff]
      %v1297 = vld [vmem:[#allocation2 + $0x38] sm:$0xff]
      %v1298 = vld [vmem:[#allocation2 + $0x40] sm:$0xff]
      %v1299 = vld [vmem:[#allocation2 + $0x48] sm:$0xff]
      %v1300 = vld [vmem:[#allocation2 + $0x50] sm:$0xff]
      %v1301 = vld [vmem:[#allocation2 + $0x58] sm:$0xff]
      %v1302 = vld [vmem:[#allocation2 + $0x60] sm:$0xff]
      %v1303 = vld [vmem:[#allocation2 + $0x68] sm:$0xff]
      %v1304 = vld [vmem:[#allocation2 + $0x70] sm:$0xff]
      %v1305 = vld [vmem:[#allocation2 + $0x78] sm:$0xff]
      %1306 = vmax.xlane.f32.xlu0 %v1274
      %v1307 = vpop.xlane.xlu0 %1306
      %1308 = vmax.xlane.f32.xlu0 %v1275
      %v1309 = vpop.xlane.xlu0 %1308
      %1310 = vmax.xlane.f32.xlu0 %v1276
      %v1311 = vpop.xlane.xlu0 %1310
      %1312 = vmax.xlane.f32.xlu0 %v1277
      %v1313 = vpop.xlane.xlu0 %1312
      %1314 = vmax.xlane.f32.xlu0 %v1278
      %v1315 = vpop.xlane.xlu0 %1314
      %1316 = vmax.xlane.f32.xlu0 %v1279
      %v1317 = vpop.xlane.xlu0 %1316
      %1318 = vmax.xlane.f32.xlu0 %v1280
      %v1319 = vpop.xlane.xlu0 %1318
      %1320 = vmax.xlane.f32.xlu0 %v1281
      %v1321 = vpop.xlane.xlu0 %1320
      %1322 = vmax.xlane.f32.xlu0 %v1282
      %v1323 = vpop.xlane.xlu0 %1322
      %1324 = vmax.xlane.f32.xlu0 %v1283
      %v1325 = vpop.xlane.xlu0 %1324
      %1326 = vmax.xlane.f32.xlu0 %v1284
      %v1327 = vpop.xlane.xlu0 %1326
      %1328 = vmax.xlane.f32.xlu0 %v1285
      %v1329 = vpop.xlane.xlu0 %1328
      %1330 = vmax.xlane.f32.xlu0 %v1286
      %v1331 = vpop.xlane.xlu0 %1330
      %1332 = vmax.xlane.f32.xlu0 %v1287
      %v1333 = vpop.xlane.xlu0 %1332
      %1334 = vmax.xlane.f32.xlu0 %v1288
      %v1335 = vpop.xlane.xlu0 %1334
      %1336 = vmax.xlane.f32.xlu0 %v1289
      %v1337 = vpop.xlane.xlu0 %1336
      %v1338 = vmax.f32 %v1290, %v1307
      %v1339 = vmax.f32 %v1291, %v1309
      %v1340 = vmax.f32 %v1292, %v1311
      %v1341 = vmax.f32 %v1293, %v1313
      %v1342 = vmax.f32 %v1294, %v1315
      %v1343 = vmax.f32 %v1295, %v1317
      %v1344 = vmax.f32 %v1296, %v1319
      %v1345 = vmax.f32 %v1297, %v1321
      %v1346 = vmax.f32 %v1298, %v1323
      %v1347 = vmax.f32 %v1299, %v1325
      %v1348 = vmax.f32 %v1300, %v1327
      %v1349 = vmax.f32 %v1301, %v1329
      %v1350 = vmax.f32 %v1302, %v1331
      %v1351 = vmax.f32 %v1303, %v1333
      %v1352 = vmax.f32 %v1304, %v1335
      %v1353 = vmax.f32 %v1305, %v1337
      %v1354 = vsub.f32 %v1290, %v1338
      %v1355 = vsub.f32 %v1291, %v1339
      %v1356 = vsub.f32 %v1292, %v1340
      %v1357 = vsub.f32 %v1293, %v1341
      %v1358 = vsub.f32 %v1294, %v1342
      %v1359 = vsub.f32 %v1295, %v1343
      %v1360 = vsub.f32 %v1296, %v1344
      %v1361 = vsub.f32 %v1297, %v1345
      %v1362 = vsub.f32 %v1298, %v1346
      %v1363 = vsub.f32 %v1299, %v1347
      %v1364 = vsub.f32 %v1300, %v1348
      %v1365 = vsub.f32 %v1301, %v1349
      %v1366 = vsub.f32 %v1302, %v1350
      %v1367 = vsub.f32 %v1303, %v1351
      %v1368 = vsub.f32 %v1304, %v1352
      %v1369 = vsub.f32 %v1305, %v1353
      %v1370 = vmul.f32 %v1354, 1.442695
      %v1371 = vpow.pop %v1370
      %v1372 = vmul.f32 %v1355, 1.442695
      %v1373 = vpow.pop %v1372
      %v1374 = vmul.f32 %v1356, 1.442695
      %v1375 = vpow.pop %v1374
      %v1376 = vmul.f32 %v1357, 1.442695
      %v1377 = vpow.pop %v1376
      %v1378 = vmul.f32 %v1358, 1.442695
      %v1379 = vpow.pop %v1378
      %v1380 = vmul.f32 %v1359, 1.442695
      %v1381 = vpow.pop %v1380
      %v1382 = vmul.f32 %v1360, 1.442695
      %v1383 = vpow.pop %v1382
      %v1384 = vmul.f32 %v1361, 1.442695
      %v1385 = vpow.pop %v1384
      %v1386 = vmul.f32 %v1362, 1.442695
      %v1387 = vpow.pop %v1386
      %v1388 = vmul.f32 %v1363, 1.442695
      %v1389 = vpow.pop %v1388
      %v1390 = vmul.f32 %v1364, 1.442695
      %v1391 = vpow.pop %v1390
      %v1392 = vmul.f32 %v1365, 1.442695
      %v1393 = vpow.pop %v1392
      %v1394 = vmul.f32 %v1366, 1.442695
      %v1395 = vpow.pop %v1394
      %v1396 = vmul.f32 %v1367, 1.442695
      %v1397 = vpow.pop %v1396
      %v1398 = vmul.f32 %v1368, 1.442695
      %v1399 = vpow.pop %v1398
      %v1400 = vmul.f32 %v1369, 1.442695
      %v1401 = vpow.pop %v1400
      %1403 = vset.pattern.permute.xlu0 1
      %1404 = vperm.xlu0 %1403, %v1338
      %v1405 = vpop.permute.xlu0 %1404
      %1408 = vset.pattern.permute.xlu0 1
      %1409 = vperm.xlu0 %1408, %v1339
      %v1410 = vpop.permute.xlu0 %1409
      %1413 = vset.pattern.permute.xlu0 1
      %1414 = vperm.xlu0 %1413, %v1340
      %v1415 = vpop.permute.xlu0 %1414
      %1418 = vset.pattern.permute.xlu0 1
      %1419 = vperm.xlu0 %1418, %v1341
      %v1420 = vpop.permute.xlu0 %1419
      %1423 = vset.pattern.permute.xlu0 1
      %1424 = vperm.xlu0 %1423, %v1342
      %v1425 = vpop.permute.xlu0 %1424
      %1428 = vset.pattern.permute.xlu0 1
      %1429 = vperm.xlu0 %1428, %v1343
      %v1430 = vpop.permute.xlu0 %1429
      %1433 = vset.pattern.permute.xlu0 1
      %1434 = vperm.xlu0 %1433, %v1344
      %v1435 = vpop.permute.xlu0 %1434
      %1438 = vset.pattern.permute.xlu0 1
      %1439 = vperm.xlu0 %1438, %v1345
      %v1440 = vpop.permute.xlu0 %1439
      %1443 = vset.pattern.permute.xlu0 1
      %1444 = vperm.xlu0 %1443, %v1346
      %v1445 = vpop.permute.xlu0 %1444
      %1448 = vset.pattern.permute.xlu0 1
      %1449 = vperm.xlu0 %1448, %v1347
      %v1450 = vpop.permute.xlu0 %1449
      %1453 = vset.pattern.permute.xlu0 1
      %1454 = vperm.xlu0 %1453, %v1348
      %v1455 = vpop.permute.xlu0 %1454
      %1458 = vset.pattern.permute.xlu0 1
      %1459 = vperm.xlu0 %1458, %v1349
      %v1460 = vpop.permute.xlu0 %1459
      %1463 = vset.pattern.permute.xlu0 1
      %1464 = vperm.xlu0 %1463, %v1350
      %v1465 = vpop.permute.xlu0 %1464
      %1468 = vset.pattern.permute.xlu0 1
      %1469 = vperm.xlu0 %1468, %v1351
      %v1470 = vpop.permute.xlu0 %1469
      %1473 = vset.pattern.permute.xlu0 1
      %1474 = vperm.xlu0 %1473, %v1352
      %v1475 = vpop.permute.xlu0 %1474
      %1478 = vset.pattern.permute.xlu0 1
      %1479 = vperm.xlu0 %1478, %v1353
      %v1480 = vpop.permute.xlu0 %1479
      %v1482 = vsub.f32 %v1274, %v1405
      %v1483 = vsub.f32 %v1275, %v1410
      %v1484 = vsub.f32 %v1276, %v1415
      %v1485 = vsub.f32 %v1277, %v1420
      %v1486 = vsub.f32 %v1278, %v1425
      %v1487 = vsub.f32 %v1279, %v1430
      %v1488 = vsub.f32 %v1280, %v1435
      %v1489 = vsub.f32 %v1281, %v1440
      %v1490 = vsub.f32 %v1282, %v1445
      %v1491 = vsub.f32 %v1283, %v1450
      %v1492 = vsub.f32 %v1284, %v1455
      %v1493 = vsub.f32 %v1285, %v1460
      %v1494 = vsub.f32 %v1286, %v1465
      %v1495 = vsub.f32 %v1287, %v1470
      %v1496 = vsub.f32 %v1288, %v1475
      %v1497 = vsub.f32 %v1289, %v1480
      %v1498 = vmul.f32 %v1482, 1.442695
      %v1499 = vpow.pop %v1498
      %v1500 = vmul.f32 %v1483, 1.442695
      %v1501 = vpow.pop %v1500
      %v1502 = vmul.f32 %v1484, 1.442695
      %v1503 = vpow.pop %v1502
      %v1504 = vmul.f32 %v1485, 1.442695
      %v1505 = vpow.pop %v1504
      %v1506 = vmul.f32 %v1486, 1.442695
      %v1507 = vpow.pop %v1506
      %v1508 = vmul.f32 %v1487, 1.442695
      %v1509 = vpow.pop %v1508
      %v1510 = vmul.f32 %v1488, 1.442695
      %v1511 = vpow.pop %v1510
      %v1512 = vmul.f32 %v1489, 1.442695
      %v1513 = vpow.pop %v1512
      %v1514 = vmul.f32 %v1490, 1.442695
      %v1515 = vpow.pop %v1514
      %v1516 = vmul.f32 %v1491, 1.442695
      %v1517 = vpow.pop %v1516
      %v1518 = vmul.f32 %v1492, 1.442695
      %v1519 = vpow.pop %v1518
      %v1520 = vmul.f32 %v1493, 1.442695
      %v1521 = vpow.pop %v1520
      %v1522 = vmul.f32 %v1494, 1.442695
      %v1523 = vpow.pop %v1522
      %v1524 = vmul.f32 %v1495, 1.442695
      %v1525 = vpow.pop %v1524
      %v1526 = vmul.f32 %v1496, 1.442695
      %v1527 = vpow.pop %v1526
      %v1528 = vmul.f32 %v1497, 1.442695
      %v1529 = vpow.pop %v1528
      %v1530 = vld [vmem:[#allocation3] sm:$0xff]
      %v1531 = vld [vmem:[#allocation3 + $0x8] sm:$0xff]
      %v1532 = vld [vmem:[#allocation3 + $0x10] sm:$0xff]
      %v1533 = vld [vmem:[#allocation3 + $0x18] sm:$0xff]
      %v1534 = vld [vmem:[#allocation3 + $0x20] sm:$0xff]
      %v1535 = vld [vmem:[#allocation3 + $0x28] sm:$0xff]
      %v1536 = vld [vmem:[#allocation3 + $0x30] sm:$0xff]
      %v1537 = vld [vmem:[#allocation3 + $0x38] sm:$0xff]
      %v1538 = vld [vmem:[#allocation3 + $0x40] sm:$0xff]
      %v1539 = vld [vmem:[#allocation3 + $0x48] sm:$0xff]
      %v1540 = vld [vmem:[#allocation3 + $0x50] sm:$0xff]
      %v1541 = vld [vmem:[#allocation3 + $0x58] sm:$0xff]
      %v1542 = vld [vmem:[#allocation3 + $0x60] sm:$0xff]
      %v1543 = vld [vmem:[#allocation3 + $0x68] sm:$0xff]
      %v1544 = vld [vmem:[#allocation3 + $0x70] sm:$0xff]
      %v1545 = vld [vmem:[#allocation3 + $0x78] sm:$0xff]
      %v1546 = vmul.f32 %v1371, %v1530
      %v1547 = vmul.f32 %v1373, %v1531
      %v1548 = vmul.f32 %v1375, %v1532
      %v1549 = vmul.f32 %v1377, %v1533
      %v1550 = vmul.f32 %v1379, %v1534
      %v1551 = vmul.f32 %v1381, %v1535
      %v1552 = vmul.f32 %v1383, %v1536
      %v1553 = vmul.f32 %v1385, %v1537
      %v1554 = vmul.f32 %v1387, %v1538
      %v1555 = vmul.f32 %v1389, %v1539
      %v1556 = vmul.f32 %v1391, %v1540
      %v1557 = vmul.f32 %v1393, %v1541
      %v1558 = vmul.f32 %v1395, %v1542
      %v1559 = vmul.f32 %v1397, %v1543
      %v1560 = vmul.f32 %v1399, %v1544
      %v1561 = vmul.f32 %v1401, %v1545
      %1562 = vadd.xlane.f32.xlu0 %v1499
      %v1563 = vpop.xlane.xlu0 %1562
      %1564 = vadd.xlane.f32.xlu0 %v1501
      %v1565 = vpop.xlane.xlu0 %1564
      %1566 = vadd.xlane.f32.xlu0 %v1503
      %v1567 = vpop.xlane.xlu0 %1566
      %1568 = vadd.xlane.f32.xlu0 %v1505
      %v1569 = vpop.xlane.xlu0 %1568
      %1570 = vadd.xlane.f32.xlu0 %v1507
      %v1571 = vpop.xlane.xlu0 %1570
      %1572 = vadd.xlane.f32.xlu0 %v1509
      %v1573 = vpop.xlane.xlu0 %1572
      %1574 = vadd.xlane.f32.xlu0 %v1511
      %v1575 = vpop.xlane.xlu0 %1574
      %1576 = vadd.xlane.f32.xlu0 %v1513
      %v1577 = vpop.xlane.xlu0 %1576
      %1578 = vadd.xlane.f32.xlu0 %v1515
      %v1579 = vpop.xlane.xlu0 %1578
      %1580 = vadd.xlane.f32.xlu0 %v1517
      %v1581 = vpop.xlane.xlu0 %1580
      %1582 = vadd.xlane.f32.xlu0 %v1519
      %v1583 = vpop.xlane.xlu0 %1582
      %1584 = vadd.xlane.f32.xlu0 %v1521
      %v1585 = vpop.xlane.xlu0 %1584
      %1586 = vadd.xlane.f32.xlu0 %v1523
      %v1587 = vpop.xlane.xlu0 %1586
      %1588 = vadd.xlane.f32.xlu0 %v1525
      %v1589 = vpop.xlane.xlu0 %1588
      %1590 = vadd.xlane.f32.xlu0 %v1527
      %v1591 = vpop.xlane.xlu0 %1590
      %1592 = vadd.xlane.f32.xlu0 %v1529
      %v1593 = vpop.xlane.xlu0 %1592
      %v1594 = vadd.f32 %v1546, %v1563
      %v1595 = vadd.f32 %v1547, %v1565
      %v1596 = vadd.f32 %v1548, %v1567
      %v1597 = vadd.f32 %v1549, %v1569
      %v1598 = vadd.f32 %v1550, %v1571
      %v1599 = vadd.f32 %v1551, %v1573
      %v1600 = vadd.f32 %v1552, %v1575
      %v1601 = vadd.f32 %v1553, %v1577
      %v1602 = vadd.f32 %v1554, %v1579
      %v1603 = vadd.f32 %v1555, %v1581
      %v1604 = vadd.f32 %v1556, %v1583
      %v1605 = vadd.f32 %v1557, %v1585
      %v1606 = vadd.f32 %v1558, %v1587
      %v1607 = vadd.f32 %v1559, %v1589
      %v1608 = vadd.f32 %v1560, %v1591
      %v1609 = vadd.f32 %v1561, %v1593
      %vm1610 = vcmask 15368
      %1611 = vst.msk [vmem:[#allocation3] sm:$0xff] %vm1610, %v1594
      %1612 = vst.msk [vmem:[#allocation3 + $0x8] sm:$0xff] %vm1610, %v1595
      %1613 = vst.msk [vmem:[#allocation3 + $0x10] sm:$0xff] %vm1610, %v1596
      %1614 = vst.msk [vmem:[#allocation3 + $0x18] sm:$0xff] %vm1610, %v1597
      %1615 = vst.msk [vmem:[#allocation3 + $0x20] sm:$0xff] %vm1610, %v1598
      %1616 = vst.msk [vmem:[#allocation3 + $0x28] sm:$0xff] %vm1610, %v1599
      %1617 = vst.msk [vmem:[#allocation3 + $0x30] sm:$0xff] %vm1610, %v1600
      %1618 = vst.msk [vmem:[#allocation3 + $0x38] sm:$0xff] %vm1610, %v1601
      %1619 = vst.msk [vmem:[#allocation3 + $0x40] sm:$0xff] %vm1610, %v1602
      %1620 = vst.msk [vmem:[#allocation3 + $0x48] sm:$0xff] %vm1610, %v1603
      %1621 = vst.msk [vmem:[#allocation3 + $0x50] sm:$0xff] %vm1610, %v1604
      %1622 = vst.msk [vmem:[#allocation3 + $0x58] sm:$0xff] %vm1610, %v1605
      %1623 = vst.msk [vmem:[#allocation3 + $0x60] sm:$0xff] %vm1610, %v1606
      %1624 = vst.msk [vmem:[#allocation3 + $0x68] sm:$0xff] %vm1610, %v1607
      %1625 = vst.msk [vmem:[#allocation3 + $0x70] sm:$0xff] %vm1610, %v1608
      %1626 = vst.msk [vmem:[#allocation3 + $0x78] sm:$0xff] %vm1610, %v1609
      %1627 = vst.msk [vmem:[#allocation2] sm:$0xff] %vm1610, %v1338
      %1628 = vst.msk [vmem:[#allocation2 + $0x8] sm:$0xff] %vm1610, %v1339
      %1629 = vst.msk [vmem:[#allocation2 + $0x10] sm:$0xff] %vm1610, %v1340
      %1630 = vst.msk [vmem:[#allocation2 + $0x18] sm:$0xff] %vm1610, %v1341
      %1631 = vst.msk [vmem:[#allocation2 + $0x20] sm:$0xff] %vm1610, %v1342
      %1632 = vst.msk [vmem:[#allocation2 + $0x28] sm:$0xff] %vm1610, %v1343
      %1633 = vst.msk [vmem:[#allocation2 + $0x30] sm:$0xff] %vm1610, %v1344
      %1634 = vst.msk [vmem:[#allocation2 + $0x38] sm:$0xff] %vm1610, %v1345
      %1635 = vst.msk [vmem:[#allocation2 + $0x40] sm:$0xff] %vm1610, %v1346
      %1636 = vst.msk [vmem:[#allocation2 + $0x48] sm:$0xff] %vm1610, %v1347
      %1637 = vst.msk [vmem:[#allocation2 + $0x50] sm:$0xff] %vm1610, %v1348
      %1638 = vst.msk [vmem:[#allocation2 + $0x58] sm:$0xff] %vm1610, %v1349
      %1639 = vst.msk [vmem:[#allocation2 + $0x60] sm:$0xff] %vm1610, %v1350
      %1640 = vst.msk [vmem:[#allocation2 + $0x68] sm:$0xff] %vm1610, %v1351
      %1641 = vst.msk [vmem:[#allocation2 + $0x70] sm:$0xff] %vm1610, %v1352
      %1642 = vst.msk [vmem:[#allocation2 + $0x78] sm:$0xff] %vm1610, %v1353
      %v1643 = vpack.c.bf16 %v1501, %v1499
      %v1644 = vpack.c.bf16 %v1505, %v1503
      %v1645 = vpack.c.bf16 %v1509, %v1507
      %v1646 = vpack.c.bf16 %v1513, %v1511
      %v1647 = vpack.c.bf16 %v1517, %v1515
      %v1648 = vpack.c.bf16 %v1521, %v1519
      %v1649 = vpack.c.bf16 %v1525, %v1523
      %v1650 = vpack.c.bf16 %v1529, %v1527
      %v1651 = vld [vmem:[%s5] sm:$0xf]
      %v1652 = vld [vmem:[%s5 + $0x4] sm:$0xf]
      %v1653 = vld [vmem:[%s5 + $0x8] sm:$0xf]
      %v1654 = vld [vmem:[%s5 + $0xc] sm:$0xf]
      %v1655 = vld [vmem:[%s5 + $0x10] sm:$0xf]
      %v1656 = vld [vmem:[%s5 + $0x14] sm:$0xf]
      %v1657 = vld [vmem:[%s5 + $0x18] sm:$0xf]
      %v1658 = vld [vmem:[%s5 + $0x1c] sm:$0xf]
      %v1659 = vld [vmem:[%s5 + $0x20] sm:$0xf]
      %v1660 = vld [vmem:[%s5 + $0x24] sm:$0xf]
      %v1661 = vld [vmem:[%s5 + $0x28] sm:$0xf]
      %v1662 = vld [vmem:[%s5 + $0x2c] sm:$0xf]
      %v1663 = vld [vmem:[%s5 + $0x30] sm:$0xf]
      %v1664 = vld [vmem:[%s5 + $0x34] sm:$0xf]
      %v1665 = vld [vmem:[%s5 + $0x38] sm:$0xf]
      %v1666 = vld [vmem:[%s5 + $0x3c] sm:$0xf]
      %v1683 = vunpack.c.l.b16 %v1651
      %v1684 = vunpack.c.l.b16 %v1652
      %v1685 = vunpack.c.l.b16 %v1653
      %v1686 = vunpack.c.l.b16 %v1654
      %v1687 = vunpack.c.l.b16 %v1655
      %v1688 = vunpack.c.l.b16 %v1656
      %v1689 = vunpack.c.l.b16 %v1657
      %v1690 = vunpack.c.l.b16 %v1658
      %v1691 = vunpack.c.l.b16 %v1659
      %v1692 = vunpack.c.l.b16 %v1660
      %v1693 = vunpack.c.l.b16 %v1661
      %v1694 = vunpack.c.l.b16 %v1662
      %v1695 = vunpack.c.l.b16 %v1663
      %v1696 = vunpack.c.l.b16 %v1664
      %v1697 = vunpack.c.l.b16 %v1665
      %v1698 = vunpack.c.l.b16 %v1666
      %v1699 = vpack.c.b16 %v1684, %v1683
      %v1700 = vpack.c.b16 %v1686, %v1685
      %v1701 = vpack.c.b16 %v1688, %v1687
      %v1702 = vpack.c.b16 %v1690, %v1689
      %v1703 = vpack.c.b16 %v1692, %v1691
      %v1704 = vpack.c.b16 %v1694, %v1693
      %v1705 = vpack.c.b16 %v1696, %v1695
      %v1706 = vpack.c.b16 %v1698, %v1697
      %1707 = vrot.lane.b32.xlu0 %v1699, 112
      %v1708 = vpop.permute.xlu0 %1707
      %1709 = vrot.lane.b32.xlu0 %v1700, 112
      %v1710 = vpop.permute.xlu0 %1709
      %1711 = vrot.lane.b32.xlu0 %v1701, 112
      %v1712 = vpop.permute.xlu0 %1711
      %1713 = vrot.lane.b32.xlu0 %v1702, 112
      %v1714 = vpop.permute.xlu0 %1713
      %1715 = vrot.lane.b32.xlu0 %v1703, 112
      %v1716 = vpop.permute.xlu0 %1715
      %1717 = vrot.lane.b32.xlu0 %v1704, 112
      %v1718 = vpop.permute.xlu0 %1717
      %1719 = vrot.lane.b32.xlu0 %v1705, 112
      %v1720 = vpop.permute.xlu0 %1719
      %1721 = vrot.lane.b32.xlu0 %v1706, 112
      %v1722 = vpop.permute.xlu0 %1721
      %1731 = vmatprep.subr.bf16.mxu0 0
      %1732 = vmatpush1.bf16.msra.mxu0 %v1722
      %1733 = vmatprep.subr.bf16.mxu0 0
      %1734 = vmatpush1.bf16.msra.mxu0 %v1720
      %1735 = vmatprep.subr.bf16.mxu0 0
      %1736 = vmatpush1.bf16.msra.mxu0 %v1718
      %1737 = vmatprep.subr.bf16.mxu0 0
      %1738 = vmatpush1.bf16.msra.mxu0 %v1716
      %1739 = vmatprep.subr.bf16.mxu0 0
      %1740 = vmatpush1.bf16.msra.mxu0 %v1714
      %1741 = vmatprep.subr.bf16.mxu0 0
      %1742 = vmatpush1.bf16.msra.mxu0 %v1712
      %1743 = vmatprep.subr.bf16.mxu0 0
      %1744 = vmatpush1.bf16.msra.mxu0 %v1710
      %1745 = vmatprep.subr.bf16.mxu0 0
      %1746 = vmatpush1.bf16.msra.mxu0 %v1708
      %1747 = vmatprep.subr.bf16.mxu0 0
      %1748 = vmatpush2.bf16.msra.mxu0 0
      %1749 = vmatprep.subr.bf16.mxu0 0
      %1750 = vmatpush2.bf16.msra.mxu0 0
      %1751 = vmatprep.subr.bf16.mxu0 0
      %1752 = vmatpush2.bf16.msra.mxu0 0
      %1753 = vmatprep.subr.bf16.mxu0 0
      %1754 = vmatpush2.bf16.msra.mxu0 0
      %1755 = vmatprep.subr.bf16.mxu0 0
      %1756 = vmatpush2.bf16.msra.mxu0 0
      %1757 = vmatprep.subr.bf16.mxu0 0
      %1758 = vmatpush2.bf16.msra.mxu0 0
      %1759 = vmatprep.subr.bf16.mxu0 0
      %1760 = vmatpush2.bf16.msra.mxu0 0
      %1761 = vmatprep.subr.bf16.mxu0 0
      %1762 = vmatpush2.bf16.msra.mxu0 0
      %1763 = vmatprep.mubr.bf16.mxu0 0
      %1764 = vmatmul.mubr.bf16.gmra.mxu0 %v1643
      %v1765 = vpop.f32.mrf.mxu0
      %v1766 = vadd.f32 0.0, %v1765
      %v1767 = vpop.f32.mrf.mxu0
      %v1768 = vpop.f32.mrf.mxu0
      %v1769 = vadd.f32 0.0, %v1768
      %v1770 = vpop.f32.mrf.mxu0
      %1771 = vmatprep.mubr.bf16.mxu0 0
      %1772 = vmatmul.mubr.bf16.gmra.mxu0 %v1644
      %v1773 = vpop.f32.mrf.mxu0
      %v1774 = vadd.f32 0.0, %v1773
      %v1775 = vpop.f32.mrf.mxu0
      %v1776 = vpop.f32.mrf.mxu0
      %v1777 = vadd.f32 0.0, %v1776
      %v1778 = vpop.f32.mrf.mxu0
      %1779 = vmatprep.mubr.bf16.mxu0 0
      %1780 = vmatmul.mubr.bf16.gmra.mxu0 %v1645
      %v1781 = vpop.f32.mrf.mxu0
      %v1782 = vadd.f32 0.0, %v1781
      %v1783 = vpop.f32.mrf.mxu0
      %v1784 = vpop.f32.mrf.mxu0
      %v1785 = vadd.f32 0.0, %v1784
      %v1786 = vpop.f32.mrf.mxu0
      %1787 = vmatprep.mubr.bf16.mxu0 0
      %1788 = vmatmul.mubr.bf16.gmra.mxu0 %v1646
      %v1789 = vpop.f32.mrf.mxu0
      %v1790 = vadd.f32 0.0, %v1789
      %v1791 = vpop.f32.mrf.mxu0
      %v1792 = vpop.f32.mrf.mxu0
      %v1793 = vadd.f32 0.0, %v1792
      %v1794 = vpop.f32.mrf.mxu0
      %1795 = vmatprep.mubr.bf16.mxu0 0
      %1796 = vmatmul.mubr.bf16.gmra.mxu0 %v1647
      %v1797 = vpop.f32.mrf.mxu0
      %v1798 = vadd.f32 0.0, %v1797
      %v1799 = vpop.f32.mrf.mxu0
      %v1800 = vpop.f32.mrf.mxu0
      %v1801 = vadd.f32 0.0, %v1800
      %v1802 = vpop.f32.mrf.mxu0
      %1803 = vmatprep.mubr.bf16.mxu0 0
      %1804 = vmatmul.mubr.bf16.gmra.mxu0 %v1648
      %v1805 = vpop.f32.mrf.mxu0
      %v1806 = vadd.f32 0.0, %v1805
      %v1807 = vpop.f32.mrf.mxu0
      %v1808 = vpop.f32.mrf.mxu0
      %v1809 = vadd.f32 0.0, %v1808
      %v1810 = vpop.f32.mrf.mxu0
      %1811 = vmatprep.mubr.bf16.mxu0 0
      %1812 = vmatmul.mubr.bf16.gmra.mxu0 %v1649
      %v1813 = vpop.f32.mrf.mxu0
      %v1814 = vadd.f32 0.0, %v1813
      %v1815 = vpop.f32.mrf.mxu0
      %v1816 = vpop.f32.mrf.mxu0
      %v1817 = vadd.f32 0.0, %v1816
      %v1818 = vpop.f32.mrf.mxu0
      %1819 = vmatprep.mubr.bf16.mxu0 0
      %1820 = vmatmul.mubr.bf16.gmra.mxu0 %v1650
      %v1821 = vpop.f32.mrf.mxu0
      %v1822 = vadd.f32 0.0, %v1821
      %v1823 = vpop.f32.mrf.mxu0
      %v1824 = vpop.f32.mrf.mxu0
      %v1825 = vadd.f32 0.0, %v1824
      %v1826 = vpop.f32.mrf.mxu0
      %1827 = vdwg.mxu0
      %v1828 = vld [vmem:[#allocation4] sm:$0xff]
      %v1829 = vld [vmem:[#allocation4 + $0x8] sm:$0xff]
      %v1830 = vld [vmem:[#allocation4 + $0x10] sm:$0xff]
      %v1831 = vld [vmem:[#allocation4 + $0x18] sm:$0xff]
      %v1832 = vld [vmem:[#allocation4 + $0x20] sm:$0xff]
      %v1833 = vld [vmem:[#allocation4 + $0x28] sm:$0xff]
      %v1834 = vld [vmem:[#allocation4 + $0x30] sm:$0xff]
      %v1835 = vld [vmem:[#allocation4 + $0x38] sm:$0xff]
      %v1836 = vld [vmem:[#allocation4 + $0x40] sm:$0xff]
      %v1837 = vld [vmem:[#allocation4 + $0x48] sm:$0xff]
      %v1838 = vld [vmem:[#allocation4 + $0x50] sm:$0xff]
      %v1839 = vld [vmem:[#allocation4 + $0x58] sm:$0xff]
      %v1840 = vld [vmem:[#allocation4 + $0x60] sm:$0xff]
      %v1841 = vld [vmem:[#allocation4 + $0x68] sm:$0xff]
      %v1842 = vld [vmem:[#allocation4 + $0x70] sm:$0xff]
      %v1843 = vld [vmem:[#allocation4 + $0x78] sm:$0xff]
      %1845 = vset.pattern.permute.xlu0 1
      %1846 = vperm.xlu0 %1845, %v1371
      %v1847 = vpop.permute.xlu0 %1846
      %1850 = vset.pattern.permute.xlu0 1
      %1851 = vperm.xlu0 %1850, %v1373
      %v1852 = vpop.permute.xlu0 %1851
      %1855 = vset.pattern.permute.xlu0 1
      %1856 = vperm.xlu0 %1855, %v1375
      %v1857 = vpop.permute.xlu0 %1856
      %1860 = vset.pattern.permute.xlu0 1
      %1861 = vperm.xlu0 %1860, %v1377
      %v1862 = vpop.permute.xlu0 %1861
      %1865 = vset.pattern.permute.xlu0 1
      %1866 = vperm.xlu0 %1865, %v1379
      %v1867 = vpop.permute.xlu0 %1866
      %1870 = vset.pattern.permute.xlu0 1
      %1871 = vperm.xlu0 %1870, %v1381
      %v1872 = vpop.permute.xlu0 %1871
      %1875 = vset.pattern.permute.xlu0 1
      %1876 = vperm.xlu0 %1875, %v1383
      %v1877 = vpop.permute.xlu0 %1876
      %1880 = vset.pattern.permute.xlu0 1
      %1881 = vperm.xlu0 %1880, %v1385
      %v1882 = vpop.permute.xlu0 %1881
      %1885 = vset.pattern.permute.xlu0 1
      %1886 = vperm.xlu0 %1885, %v1387
      %v1887 = vpop.permute.xlu0 %1886
      %1890 = vset.pattern.permute.xlu0 1
      %1891 = vperm.xlu0 %1890, %v1389
      %v1892 = vpop.permute.xlu0 %1891
      %1895 = vset.pattern.permute.xlu0 1
      %1896 = vperm.xlu0 %1895, %v1391
      %v1897 = vpop.permute.xlu0 %1896
      %1900 = vset.pattern.permute.xlu0 1
      %1901 = vperm.xlu0 %1900, %v1393
      %v1902 = vpop.permute.xlu0 %1901
      %1905 = vset.pattern.permute.xlu0 1
      %1906 = vperm.xlu0 %1905, %v1395
      %v1907 = vpop.permute.xlu0 %1906
      %1910 = vset.pattern.permute.xlu0 1
      %1911 = vperm.xlu0 %1910, %v1397
      %v1912 = vpop.permute.xlu0 %1911
      %1915 = vset.pattern.permute.xlu0 1
      %1916 = vperm.xlu0 %1915, %v1399
      %v1917 = vpop.permute.xlu0 %1916
      %1920 = vset.pattern.permute.xlu0 1
      %1921 = vperm.xlu0 %1920, %v1401
      %v1922 = vpop.permute.xlu0 %1921
      %v1924 = vmul.f32 %v1847, %v1828
      %v1925 = vmul.f32 %v1852, %v1829
      %v1926 = vmul.f32 %v1857, %v1830
      %v1927 = vmul.f32 %v1862, %v1831
      %v1928 = vmul.f32 %v1867, %v1832
      %v1929 = vmul.f32 %v1872, %v1833
      %v1930 = vmul.f32 %v1877, %v1834
      %v1931 = vmul.f32 %v1882, %v1835
      %v1932 = vmul.f32 %v1887, %v1836
      %v1933 = vmul.f32 %v1892, %v1837
      %v1934 = vmul.f32 %v1897, %v1838
      %v1935 = vmul.f32 %v1902, %v1839
      %v1936 = vmul.f32 %v1907, %v1840
      %v1937 = vmul.f32 %v1912, %v1841
      %v1938 = vmul.f32 %v1917, %v1842
      %v1939 = vmul.f32 %v1922, %v1843
      %1956 = vrot.lane.b32.xlu0 %v1766, 16
      %v1957 = vpop.permute.xlu0 %1956
      %1958 = vrot.lane.b32.xlu0 %v1769, 16
      %v1959 = vpop.permute.xlu0 %1958
      %1960 = vrot.lane.b32.xlu0 %v1774, 16
      %v1961 = vpop.permute.xlu0 %1960
      %1962 = vrot.lane.b32.xlu0 %v1777, 16
      %v1963 = vpop.permute.xlu0 %1962
      %1964 = vrot.lane.b32.xlu0 %v1782, 16
      %v1965 = vpop.permute.xlu0 %1964
      %1966 = vrot.lane.b32.xlu0 %v1785, 16
      %v1967 = vpop.permute.xlu0 %1966
      %1968 = vrot.lane.b32.xlu0 %v1790, 16
      %v1969 = vpop.permute.xlu0 %1968
      %1970 = vrot.lane.b32.xlu0 %v1793, 16
      %v1971 = vpop.permute.xlu0 %1970
      %1972 = vrot.lane.b32.xlu0 %v1798, 16
      %v1973 = vpop.permute.xlu0 %1972
      %1974 = vrot.lane.b32.xlu0 %v1801, 16
      %v1975 = vpop.permute.xlu0 %1974
      %1976 = vrot.lane.b32.xlu0 %v1806, 16
      %v1977 = vpop.permute.xlu0 %1976
      %1978 = vrot.lane.b32.xlu0 %v1809, 16
      %v1979 = vpop.permute.xlu0 %1978
      %1980 = vrot.lane.b32.xlu0 %v1814, 16
      %v1981 = vpop.permute.xlu0 %1980
      %1982 = vrot.lane.b32.xlu0 %v1817, 16
      %v1983 = vpop.permute.xlu0 %1982
      %1984 = vrot.lane.b32.xlu0 %v1822, 16
      %v1985 = vpop.permute.xlu0 %1984
      %1986 = vrot.lane.b32.xlu0 %v1825, 16
      %v1987 = vpop.permute.xlu0 %1986
      %v2004 = vadd.f32 %v1924, %v1957
      %v2005 = vadd.f32 %v1925, %v1959
      %v2006 = vadd.f32 %v1926, %v1961
      %v2007 = vadd.f32 %v1927, %v1963
      %v2008 = vadd.f32 %v1928, %v1965
      %v2009 = vadd.f32 %v1929, %v1967
      %v2010 = vadd.f32 %v1930, %v1969
      %v2011 = vadd.f32 %v1931, %v1971
      %v2012 = vadd.f32 %v1932, %v1973
      %v2013 = vadd.f32 %v1933, %v1975
      %v2014 = vadd.f32 %v1934, %v1977
      %v2015 = vadd.f32 %v1935, %v1979
      %v2016 = vadd.f32 %v1936, %v1981
      %v2017 = vadd.f32 %v1937, %v1983
      %v2018 = vadd.f32 %v1938, %v1985
      %v2019 = vadd.f32 %v1939, %v1987
      %vm2020 = vcmask 261248
      %2021 = vst.msk [vmem:[#allocation4] sm:$0xff] %vm2020, %v2004
      %2022 = vst.msk [vmem:[#allocation4 + $0x8] sm:$0xff] %vm2020, %v2005
      %2023 = vst.msk [vmem:[#allocation4 + $0x10] sm:$0xff] %vm2020, %v2006
      %2024 = vst.msk [vmem:[#allocation4 + $0x18] sm:$0xff] %vm2020, %v2007
      %2025 = vst.msk [vmem:[#allocation4 + $0x20] sm:$0xff] %vm2020, %v2008
      %2026 = vst.msk [vmem:[#allocation4 + $0x28] sm:$0xff] %vm2020, %v2009
      %2027 = vst.msk [vmem:[#allocation4 + $0x30] sm:$0xff] %vm2020, %v2010
      %2028 = vst.msk [vmem:[#allocation4 + $0x38] sm:$0xff] %vm2020, %v2011
      %2029 = vst.msk [vmem:[#allocation4 + $0x40] sm:$0xff] %vm2020, %v2012
      %2030 = vst.msk [vmem:[#allocation4 + $0x48] sm:$0xff] %vm2020, %v2013
      %2031 = vst.msk [vmem:[#allocation4 + $0x50] sm:$0xff] %vm2020, %v2014
      %2032 = vst.msk [vmem:[#allocation4 + $0x58] sm:$0xff] %vm2020, %v2015
      %2033 = vst.msk [vmem:[#allocation4 + $0x60] sm:$0xff] %vm2020, %v2016
      %2034 = vst.msk [vmem:[#allocation4 + $0x68] sm:$0xff] %vm2020, %v2017
      %2035 = vst.msk [vmem:[#allocation4 + $0x70] sm:$0xff] %vm2020, %v2018
      %2036 = vst.msk [vmem:[#allocation4 + $0x78] sm:$0xff] %vm2020, %v2019
      %s2037 = sld [smem:[#allocation6 + $0x2]]
      %v2038 = vstv %s2037
      %v2039 = vsel %vm137, %v2038, -1e+30
      %v2040 = vsel %vm138, %v2038, -1e+30
      %v2041 = vsel %vm139, %v2038, -1e+30
      %v2042 = vsel %vm140, %v2038, -1e+30
      %v2043 = vsel %vm141, %v2038, -1e+30
      %v2044 = vsel %vm142, %v2038, -1e+30
      %v2045 = vsel %vm143, %v2038, -1e+30
      %v2046 = vsel %vm144, %v2038, -1e+30
      %v2047 = vsel %vm145, %v2038, -1e+30
      %v2048 = vsel %vm146, %v2038, -1e+30
      %v2049 = vsel %vm147, %v2038, -1e+30
      %v2050 = vsel %vm148, %v2038, -1e+30
      %v2051 = vsel %vm149, %v2038, -1e+30
      %v2052 = vsel %vm150, %v2038, -1e+30
      %v2053 = vsel %vm151, %v2038, -1e+30
      %v2054 = vsel %vm152, %v2038, -1e+30
      %s2055 = sld [smem:[#allocation6 + $0x82]]
      %v2056 = vstv %s2055
      %v2057 = vsel %vm171, %v2056, %v2039
      %v2058 = vsel %vm172, %v2056, %v2040
      %v2059 = vsel %vm173, %v2056, %v2041
      %v2060 = vsel %vm174, %v2056, %v2042
      %v2061 = vsel %vm175, %v2056, %v2043
      %v2062 = vsel %vm176, %v2056, %v2044
      %v2063 = vsel %vm177, %v2056, %v2045
      %v2064 = vsel %vm178, %v2056, %v2046
      %v2065 = vsel %vm179, %v2056, %v2047
      %v2066 = vsel %vm180, %v2056, %v2048
      %v2067 = vsel %vm181, %v2056, %v2049
      %v2068 = vsel %vm182, %v2056, %v2050
      %v2069 = vsel %vm183, %v2056, %v2051
      %v2070 = vsel %vm184, %v2056, %v2052
      %v2071 = vsel %vm185, %v2056, %v2053
      %v2072 = vsel %vm186, %v2056, %v2054
      %s2073 = sld [smem:[#allocation6 + $0x102]]
      %v2074 = vstv %s2073
      %v2075 = vsel %vm205, %v2074, %v2057
      %v2076 = vsel %vm206, %v2074, %v2058
      %v2077 = vsel %vm207, %v2074, %v2059
      %v2078 = vsel %vm208, %v2074, %v2060
      %v2079 = vsel %vm209, %v2074, %v2061
      %v2080 = vsel %vm210, %v2074, %v2062
      %v2081 = vsel %vm211, %v2074, %v2063
      %v2082 = vsel %vm212, %v2074, %v2064
      %v2083 = vsel %vm213, %v2074, %v2065
      %v2084 = vsel %vm214, %v2074, %v2066
      %v2085 = vsel %vm215, %v2074, %v2067
      %v2086 = vsel %vm216, %v2074, %v2068
      %v2087 = vsel %vm217, %v2074, %v2069
      %v2088 = vsel %vm218, %v2074, %v2070
      %v2089 = vsel %vm219, %v2074, %v2071
      %v2090 = vsel %vm220, %v2074, %v2072
      %v2091 = vld [vmem:[%s2 + $0x2] sm:$0x1]
      %v2092 = vld [vmem:[%s3] sm:$0xff]
      %v2093 = vld [vmem:[%s3 + $0x8] sm:$0xff]
      %v2094 = vld [vmem:[%s3 + $0x10] sm:$0xff]
      %v2095 = vld [vmem:[%s3 + $0x18] sm:$0xff]
      %v2096 = vld [vmem:[%s3 + $0x20] sm:$0xff]
      %v2097 = vld [vmem:[%s3 + $0x28] sm:$0xff]
      %v2098 = vld [vmem:[%s3 + $0x30] sm:$0xff]
      %v2099 = vld [vmem:[%s3 + $0x38] sm:$0xff]
      %v2100 = vld [vmem:[%s3 + $0x40] sm:$0xff]
      %v2101 = vld [vmem:[%s3 + $0x48] sm:$0xff]
      %v2102 = vld [vmem:[%s3 + $0x50] sm:$0xff]
      %v2103 = vld [vmem:[%s3 + $0x58] sm:$0xff]
      %v2104 = vld [vmem:[%s3 + $0x60] sm:$0xff]
      %v2105 = vld [vmem:[%s3 + $0x68] sm:$0xff]
      %v2106 = vld [vmem:[%s3 + $0x70] sm:$0xff]
      %v2107 = vld [vmem:[%s3 + $0x78] sm:$0xff]
      %v2108 = vlaneseq
      %v2109 = vshrl.u32 %v2108, 7
      %v2110 = vsub.s32 0, %v2109
      %v2111 = vrot.slane %v2091, %v2110
      %2113 = vset.pattern.permute.xlu0 2
      %2114 = vperm.xlu0 %2113, %v2092
      %v2115 = vpop.permute.xlu0 %2114
      %2118 = vset.pattern.permute.xlu0 2
      %2119 = vperm.xlu0 %2118, %v2093
      %v2120 = vpop.permute.xlu0 %2119
      %2123 = vset.pattern.permute.xlu0 2
      %2124 = vperm.xlu0 %2123, %v2094
      %v2125 = vpop.permute.xlu0 %2124
      %2128 = vset.pattern.permute.xlu0 2
      %2129 = vperm.xlu0 %2128, %v2095
      %v2130 = vpop.permute.xlu0 %2129
      %2133 = vset.pattern.permute.xlu0 2
      %2134 = vperm.xlu0 %2133, %v2096
      %v2135 = vpop.permute.xlu0 %2134
      %2138 = vset.pattern.permute.xlu0 2
      %2139 = vperm.xlu0 %2138, %v2097
      %v2140 = vpop.permute.xlu0 %2139
      %2143 = vset.pattern.permute.xlu0 2
      %2144 = vperm.xlu0 %2143, %v2098
      %v2145 = vpop.permute.xlu0 %2144
      %2148 = vset.pattern.permute.xlu0 2
      %2149 = vperm.xlu0 %2148, %v2099
      %v2150 = vpop.permute.xlu0 %2149
      %2153 = vset.pattern.permute.xlu0 2
      %2154 = vperm.xlu0 %2153, %v2100
      %v2155 = vpop.permute.xlu0 %2154
      %2158 = vset.pattern.permute.xlu0 2
      %2159 = vperm.xlu0 %2158, %v2101
      %v2160 = vpop.permute.xlu0 %2159
      %2163 = vset.pattern.permute.xlu0 2
      %2164 = vperm.xlu0 %2163, %v2102
      %v2165 = vpop.permute.xlu0 %2164
      %2168 = vset.pattern.permute.xlu0 2
      %2169 = vperm.xlu0 %2168, %v2103
      %v2170 = vpop.permute.xlu0 %2169
      %2173 = vset.pattern.permute.xlu0 2
      %2174 = vperm.xlu0 %2173, %v2104
      %v2175 = vpop.permute.xlu0 %2174
      %2178 = vset.pattern.permute.xlu0 2
      %2179 = vperm.xlu0 %2178, %v2105
      %v2180 = vpop.permute.xlu0 %2179
      %2183 = vset.pattern.permute.xlu0 2
      %2184 = vperm.xlu0 %2183, %v2106
      %v2185 = vpop.permute.xlu0 %2184
      %2188 = vset.pattern.permute.xlu0 2
      %2189 = vperm.xlu0 %2188, %v2107
      %v2190 = vpop.permute.xlu0 %2189
      %v2192 = vadd.f32 %v2111, %v2115
      %v2193 = vadd.f32 %v2111, %v2120
      %v2194 = vadd.f32 %v2111, %v2125
      %v2195 = vadd.f32 %v2111, %v2130
      %v2196 = vadd.f32 %v2111, %v2135
      %v2197 = vadd.f32 %v2111, %v2140
      %v2198 = vadd.f32 %v2111, %v2145
      %v2199 = vadd.f32 %v2111, %v2150
      %v2200 = vadd.f32 %v2111, %v2155
      %v2201 = vadd.f32 %v2111, %v2160
      %v2202 = vadd.f32 %v2111, %v2165
      %v2203 = vadd.f32 %v2111, %v2170
      %v2204 = vadd.f32 %v2111, %v2175
      %v2205 = vadd.f32 %v2111, %v2180
      %v2206 = vadd.f32 %v2111, %v2185
      %v2207 = vadd.f32 %v2111, %v2190
      %v2208 = vadd.f32 %v2192, %v2075
      %v2209 = vadd.f32 %v2193, %v2076
      %v2210 = vadd.f32 %v2194, %v2077
      %v2211 = vadd.f32 %v2195, %v2078
      %v2212 = vadd.f32 %v2196, %v2079
      %v2213 = vadd.f32 %v2197, %v2080
      %v2214 = vadd.f32 %v2198, %v2081
      %v2215 = vadd.f32 %v2199, %v2082
      %v2216 = vadd.f32 %v2200, %v2083
      %v2217 = vadd.f32 %v2201, %v2084
      %v2218 = vadd.f32 %v2202, %v2085
      %v2219 = vadd.f32 %v2203, %v2086
      %v2220 = vadd.f32 %v2204, %v2087
      %v2221 = vadd.f32 %v2205, %v2088
      %v2222 = vadd.f32 %v2206, %v2089
      %v2223 = vadd.f32 %v2207, %v2090
      %v2224 = vmul.f32 %v2208, 0.2
      %v2225 = vmul.f32 %v2209, 0.2
      %v2226 = vmul.f32 %v2210, 0.2
      %v2227 = vmul.f32 %v2211, 0.2
      %v2228 = vmul.f32 %v2212, 0.2
      %v2229 = vmul.f32 %v2213, 0.2
      %v2230 = vmul.f32 %v2214, 0.2
      %v2231 = vmul.f32 %v2215, 0.2
      %v2232 = vmul.f32 %v2216, 0.2
      %v2233 = vmul.f32 %v2217, 0.2
      %v2234 = vmul.f32 %v2218, 0.2
      %v2235 = vmul.f32 %v2219, 0.2
      %v2236 = vmul.f32 %v2220, 0.2
      %v2237 = vmul.f32 %v2221, 0.2
      %v2238 = vmul.f32 %v2222, 0.2
      %v2239 = vmul.f32 %v2223, 0.2
      %v2240 = vmax.f32 %v2208, %v2224
      %v2241 = vmax.f32 %v2209, %v2225
      %v2242 = vmax.f32 %v2210, %v2226
      %v2243 = vmax.f32 %v2211, %v2227
      %v2244 = vmax.f32 %v2212, %v2228
      %v2245 = vmax.f32 %v2213, %v2229
      %v2246 = vmax.f32 %v2214, %v2230
      %v2247 = vmax.f32 %v2215, %v2231
      %v2248 = vmax.f32 %v2216, %v2232
      %v2249 = vmax.f32 %v2217, %v2233
      %v2250 = vmax.f32 %v2218, %v2234
      %v2251 = vmax.f32 %v2219, %v2235
      %v2252 = vmax.f32 %v2220, %v2236
      %v2253 = vmax.f32 %v2221, %v2237
      %v2254 = vmax.f32 %v2222, %v2238
      %v2255 = vmax.f32 %v2223, %v2239
      %v2256 = vld [vmem:[#allocation2] sm:$0xff]
      %v2257 = vld [vmem:[#allocation2 + $0x8] sm:$0xff]
      %v2258 = vld [vmem:[#allocation2 + $0x10] sm:$0xff]
      %v2259 = vld [vmem:[#allocation2 + $0x18] sm:$0xff]
      %v2260 = vld [vmem:[#allocation2 + $0x20] sm:$0xff]
      %v2261 = vld [vmem:[#allocation2 + $0x28] sm:$0xff]
      %v2262 = vld [vmem:[#allocation2 + $0x30] sm:$0xff]
      %v2263 = vld [vmem:[#allocation2 + $0x38] sm:$0xff]
      %v2264 = vld [vmem:[#allocation2 + $0x40] sm:$0xff]
      %v2265 = vld [vmem:[#allocation2 + $0x48] sm:$0xff]
      %v2266 = vld [vmem:[#allocation2 + $0x50] sm:$0xff]
      %v2267 = vld [vmem:[#allocation2 + $0x58] sm:$0xff]
      %v2268 = vld [vmem:[#allocation2 + $0x60] sm:$0xff]
      %v2269 = vld [vmem:[#allocation2 + $0x68] sm:$0xff]
      %v2270 = vld [vmem:[#allocation2 + $0x70] sm:$0xff]
      %v2271 = vld [vmem:[#allocation2 + $0x78] sm:$0xff]
      %2272 = vmax.xlane.f32.xlu0 %v2240
      %v2273 = vpop.xlane.xlu0 %2272
      %2274 = vmax.xlane.f32.xlu0 %v2241
      %v2275 = vpop.xlane.xlu0 %2274
      %2276 = vmax.xlane.f32.xlu0 %v2242
      %v2277 = vpop.xlane.xlu0 %2276
      %2278 = vmax.xlane.f32.xlu0 %v2243
      %v2279 = vpop.xlane.xlu0 %2278
      %2280 = vmax.xlane.f32.xlu0 %v2244
      %v2281 = vpop.xlane.xlu0 %2280
      %2282 = vmax.xlane.f32.xlu0 %v2245
      %v2283 = vpop.xlane.xlu0 %2282
      %2284 = vmax.xlane.f32.xlu0 %v2246
      %v2285 = vpop.xlane.xlu0 %2284
      %2286 = vmax.xlane.f32.xlu0 %v2247
      %v2287 = vpop.xlane.xlu0 %2286
      %2288 = vmax.xlane.f32.xlu0 %v2248
      %v2289 = vpop.xlane.xlu0 %2288
      %2290 = vmax.xlane.f32.xlu0 %v2249
      %v2291 = vpop.xlane.xlu0 %2290
      %2292 = vmax.xlane.f32.xlu0 %v2250
      %v2293 = vpop.xlane.xlu0 %2292
      %2294 = vmax.xlane.f32.xlu0 %v2251
      %v2295 = vpop.xlane.xlu0 %2294
      %2296 = vmax.xlane.f32.xlu0 %v2252
      %v2297 = vpop.xlane.xlu0 %2296
      %2298 = vmax.xlane.f32.xlu0 %v2253
      %v2299 = vpop.xlane.xlu0 %2298
      %2300 = vmax.xlane.f32.xlu0 %v2254
      %v2301 = vpop.xlane.xlu0 %2300
      %2302 = vmax.xlane.f32.xlu0 %v2255
      %v2303 = vpop.xlane.xlu0 %2302
      %v2304 = vmax.f32 %v2256, %v2273
      %v2305 = vmax.f32 %v2257, %v2275
      %v2306 = vmax.f32 %v2258, %v2277
      %v2307 = vmax.f32 %v2259, %v2279
      %v2308 = vmax.f32 %v2260, %v2281
      %v2309 = vmax.f32 %v2261, %v2283
      %v2310 = vmax.f32 %v2262, %v2285
      %v2311 = vmax.f32 %v2263, %v2287
      %v2312 = vmax.f32 %v2264, %v2289
      %v2313 = vmax.f32 %v2265, %v2291
      %v2314 = vmax.f32 %v2266, %v2293
      %v2315 = vmax.f32 %v2267, %v2295
      %v2316 = vmax.f32 %v2268, %v2297
      %v2317 = vmax.f32 %v2269, %v2299
      %v2318 = vmax.f32 %v2270, %v2301
      %v2319 = vmax.f32 %v2271, %v2303
      %v2320 = vsub.f32 %v2256, %v2304
      %v2321 = vsub.f32 %v2257, %v2305
      %v2322 = vsub.f32 %v2258, %v2306
      %v2323 = vsub.f32 %v2259, %v2307
      %v2324 = vsub.f32 %v2260, %v2308
      %v2325 = vsub.f32 %v2261, %v2309
      %v2326 = vsub.f32 %v2262, %v2310
      %v2327 = vsub.f32 %v2263, %v2311
      %v2328 = vsub.f32 %v2264, %v2312
      %v2329 = vsub.f32 %v2265, %v2313
      %v2330 = vsub.f32 %v2266, %v2314
      %v2331 = vsub.f32 %v2267, %v2315
      %v2332 = vsub.f32 %v2268, %v2316
      %v2333 = vsub.f32 %v2269, %v2317
      %v2334 = vsub.f32 %v2270, %v2318
      %v2335 = vsub.f32 %v2271, %v2319
      %v2336 = vmul.f32 %v2320, 1.442695
      %v2337 = vpow.pop %v2336
      %v2338 = vmul.f32 %v2321, 1.442695
      %v2339 = vpow.pop %v2338
      %v2340 = vmul.f32 %v2322, 1.442695
      %v2341 = vpow.pop %v2340
      %v2342 = vmul.f32 %v2323, 1.442695
      %v2343 = vpow.pop %v2342
      %v2344 = vmul.f32 %v2324, 1.442695
      %v2345 = vpow.pop %v2344
      %v2346 = vmul.f32 %v2325, 1.442695
      %v2347 = vpow.pop %v2346
      %v2348 = vmul.f32 %v2326, 1.442695
      %v2349 = vpow.pop %v2348
      %v2350 = vmul.f32 %v2327, 1.442695
      %v2351 = vpow.pop %v2350
      %v2352 = vmul.f32 %v2328, 1.442695
      %v2353 = vpow.pop %v2352
      %v2354 = vmul.f32 %v2329, 1.442695
      %v2355 = vpow.pop %v2354
      %v2356 = vmul.f32 %v2330, 1.442695
      %v2357 = vpow.pop %v2356
      %v2358 = vmul.f32 %v2331, 1.442695
      %v2359 = vpow.pop %v2358
      %v2360 = vmul.f32 %v2332, 1.442695
      %v2361 = vpow.pop %v2360
      %v2362 = vmul.f32 %v2333, 1.442695
      %v2363 = vpow.pop %v2362
      %v2364 = vmul.f32 %v2334, 1.442695
      %v2365 = vpow.pop %v2364
      %v2366 = vmul.f32 %v2335, 1.442695
      %v2367 = vpow.pop %v2366
      %2369 = vset.pattern.permute.xlu0 2
      %2370 = vperm.xlu0 %2369, %v2304
      %v2371 = vpop.permute.xlu0 %2370
      %2374 = vset.pattern.permute.xlu0 2
      %2375 = vperm.xlu0 %2374, %v2305
      %v2376 = vpop.permute.xlu0 %2375
      %2379 = vset.pattern.permute.xlu0 2
      %2380 = vperm.xlu0 %2379, %v2306
      %v2381 = vpop.permute.xlu0 %2380
      %2384 = vset.pattern.permute.xlu0 2
      %2385 = vperm.xlu0 %2384, %v2307
      %v2386 = vpop.permute.xlu0 %2385
      %2389 = vset.pattern.permute.xlu0 2
      %2390 = vperm.xlu0 %2389, %v2308
      %v2391 = vpop.permute.xlu0 %2390
      %2394 = vset.pattern.permute.xlu0 2
      %2395 = vperm.xlu0 %2394, %v2309
      %v2396 = vpop.permute.xlu0 %2395
      %2399 = vset.pattern.permute.xlu0 2
      %2400 = vperm.xlu0 %2399, %v2310
      %v2401 = vpop.permute.xlu0 %2400
      %2404 = vset.pattern.permute.xlu0 2
      %2405 = vperm.xlu0 %2404, %v2311
      %v2406 = vpop.permute.xlu0 %2405
      %2409 = vset.pattern.permute.xlu0 2
      %2410 = vperm.xlu0 %2409, %v2312
      %v2411 = vpop.permute.xlu0 %2410
      %2414 = vset.pattern.permute.xlu0 2
      %2415 = vperm.xlu0 %2414, %v2313
      %v2416 = vpop.permute.xlu0 %2415
      %2419 = vset.pattern.permute.xlu0 2
      %2420 = vperm.xlu0 %2419, %v2314
      %v2421 = vpop.permute.xlu0 %2420
      %2424 = vset.pattern.permute.xlu0 2
      %2425 = vperm.xlu0 %2424, %v2315
      %v2426 = vpop.permute.xlu0 %2425
      %2429 = vset.pattern.permute.xlu0 2
      %2430 = vperm.xlu0 %2429, %v2316
      %v2431 = vpop.permute.xlu0 %2430
      %2434 = vset.pattern.permute.xlu0 2
      %2435 = vperm.xlu0 %2434, %v2317
      %v2436 = vpop.permute.xlu0 %2435
      %2439 = vset.pattern.permute.xlu0 2
      %2440 = vperm.xlu0 %2439, %v2318
      %v2441 = vpop.permute.xlu0 %2440
      %2444 = vset.pattern.permute.xlu0 2
      %2445 = vperm.xlu0 %2444, %v2319
      %v2446 = vpop.permute.xlu0 %2445
      %v2448 = vsub.f32 %v2240, %v2371
      %v2449 = vsub.f32 %v2241, %v2376
      %v2450 = vsub.f32 %v2242, %v2381
      %v2451 = vsub.f32 %v2243, %v2386
      %v2452 = vsub.f32 %v2244, %v2391
      %v2453 = vsub.f32 %v2245, %v2396
      %v2454 = vsub.f32 %v2246, %v2401
      %v2455 = vsub.f32 %v2247, %v2406
      %v2456 = vsub.f32 %v2248, %v2411
      %v2457 = vsub.f32 %v2249, %v2416
      %v2458 = vsub.f32 %v2250, %v2421
      %v2459 = vsub.f32 %v2251, %v2426
      %v2460 = vsub.f32 %v2252, %v2431
      %v2461 = vsub.f32 %v2253, %v2436
      %v2462 = vsub.f32 %v2254, %v2441
      %v2463 = vsub.f32 %v2255, %v2446
      %v2464 = vmul.f32 %v2448, 1.442695
      %v2465 = vpow.pop %v2464
      %v2466 = vmul.f32 %v2449, 1.442695
      %v2467 = vpow.pop %v2466
      %v2468 = vmul.f32 %v2450, 1.442695
      %v2469 = vpow.pop %v2468
      %v2470 = vmul.f32 %v2451, 1.442695
      %v2471 = vpow.pop %v2470
      %v2472 = vmul.f32 %v2452, 1.442695
      %v2473 = vpow.pop %v2472
      %v2474 = vmul.f32 %v2453, 1.442695
      %v2475 = vpow.pop %v2474
      %v2476 = vmul.f32 %v2454, 1.442695
      %v2477 = vpow.pop %v2476
      %v2478 = vmul.f32 %v2455, 1.442695
      %v2479 = vpow.pop %v2478
      %v2480 = vmul.f32 %v2456, 1.442695
      %v2481 = vpow.pop %v2480
      %v2482 = vmul.f32 %v2457, 1.442695
      %v2483 = vpow.pop %v2482
      %v2484 = vmul.f32 %v2458, 1.442695
      %v2485 = vpow.pop %v2484
      %v2486 = vmul.f32 %v2459, 1.442695
      %v2487 = vpow.pop %v2486
      %v2488 = vmul.f32 %v2460, 1.442695
      %v2489 = vpow.pop %v2488
      %v2490 = vmul.f32 %v2461, 1.442695
      %v2491 = vpow.pop %v2490
      %v2492 = vmul.f32 %v2462, 1.442695
      %v2493 = vpow.pop %v2492
      %v2494 = vmul.f32 %v2463, 1.442695
      %v2495 = vpow.pop %v2494
      %v2496 = vld [vmem:[#allocation3] sm:$0xff]
      %v2497 = vld [vmem:[#allocation3 + $0x8] sm:$0xff]
      %v2498 = vld [vmem:[#allocation3 + $0x10] sm:$0xff]
      %v2499 = vld [vmem:[#allocation3 + $0x18] sm:$0xff]
      %v2500 = vld [vmem:[#allocation3 + $0x20] sm:$0xff]
      %v2501 = vld [vmem:[#allocation3 + $0x28] sm:$0xff]
      %v2502 = vld [vmem:[#allocation3 + $0x30] sm:$0xff]
      %v2503 = vld [vmem:[#allocation3 + $0x38] sm:$0xff]
      %v2504 = vld [vmem:[#allocation3 + $0x40] sm:$0xff]
      %v2505 = vld [vmem:[#allocation3 + $0x48] sm:$0xff]
      %v2506 = vld [vmem:[#allocation3 + $0x50] sm:$0xff]
      %v2507 = vld [vmem:[#allocation3 + $0x58] sm:$0xff]
      %v2508 = vld [vmem:[#allocation3 + $0x60] sm:$0xff]
      %v2509 = vld [vmem:[#allocation3 + $0x68] sm:$0xff]
      %v2510 = vld [vmem:[#allocation3 + $0x70] sm:$0xff]
      %v2511 = vld [vmem:[#allocation3 + $0x78] sm:$0xff]
      %v2512 = vmul.f32 %v2337, %v2496
      %v2513 = vmul.f32 %v2339, %v2497
      %v2514 = vmul.f32 %v2341, %v2498
      %v2515 = vmul.f32 %v2343, %v2499
      %v2516 = vmul.f32 %v2345, %v2500
      %v2517 = vmul.f32 %v2347, %v2501
      %v2518 = vmul.f32 %v2349, %v2502
      %v2519 = vmul.f32 %v2351, %v2503
      %v2520 = vmul.f32 %v2353, %v2504
      %v2521 = vmul.f32 %v2355, %v2505
      %v2522 = vmul.f32 %v2357, %v2506
      %v2523 = vmul.f32 %v2359, %v2507
      %v2524 = vmul.f32 %v2361, %v2508
      %v2525 = vmul.f32 %v2363, %v2509
      %v2526 = vmul.f32 %v2365, %v2510
      %v2527 = vmul.f32 %v2367, %v2511
      %2528 = vadd.xlane.f32.xlu0 %v2465
      %v2529 = vpop.xlane.xlu0 %2528
      %2530 = vadd.xlane.f32.xlu0 %v2467
      %v2531 = vpop.xlane.xlu0 %2530
      %2532 = vadd.xlane.f32.xlu0 %v2469
      %v2533 = vpop.xlane.xlu0 %2532
      %2534 = vadd.xlane.f32.xlu0 %v2471
      %v2535 = vpop.xlane.xlu0 %2534
      %2536 = vadd.xlane.f32.xlu0 %v2473
      %v2537 = vpop.xlane.xlu0 %2536
      %2538 = vadd.xlane.f32.xlu0 %v2475
      %v2539 = vpop.xlane.xlu0 %2538
      %2540 = vadd.xlane.f32.xlu0 %v2477
      %v2541 = vpop.xlane.xlu0 %2540
      %2542 = vadd.xlane.f32.xlu0 %v2479
      %v2543 = vpop.xlane.xlu0 %2542
      %2544 = vadd.xlane.f32.xlu0 %v2481
      %v2545 = vpop.xlane.xlu0 %2544
      %2546 = vadd.xlane.f32.xlu0 %v2483
      %v2547 = vpop.xlane.xlu0 %2546
      %2548 = vadd.xlane.f32.xlu0 %v2485
      %v2549 = vpop.xlane.xlu0 %2548
      %2550 = vadd.xlane.f32.xlu0 %v2487
      %v2551 = vpop.xlane.xlu0 %2550
      %2552 = vadd.xlane.f32.xlu0 %v2489
      %v2553 = vpop.xlane.xlu0 %2552
      %2554 = vadd.xlane.f32.xlu0 %v2491
      %v2555 = vpop.xlane.xlu0 %2554
      %2556 = vadd.xlane.f32.xlu0 %v2493
      %v2557 = vpop.xlane.xlu0 %2556
      %2558 = vadd.xlane.f32.xlu0 %v2495
      %v2559 = vpop.xlane.xlu0 %2558
      %v2560 = vadd.f32 %v2512, %v2529
      %v2561 = vadd.f32 %v2513, %v2531
      %v2562 = vadd.f32 %v2514, %v2533
      %v2563 = vadd.f32 %v2515, %v2535
      %v2564 = vadd.f32 %v2516, %v2537
      %v2565 = vadd.f32 %v2517, %v2539
      %v2566 = vadd.f32 %v2518, %v2541
      %v2567 = vadd.f32 %v2519, %v2543
      %v2568 = vadd.f32 %v2520, %v2545
      %v2569 = vadd.f32 %v2521, %v2547
      %v2570 = vadd.f32 %v2522, %v2549
      %v2571 = vadd.f32 %v2523, %v2551
      %v2572 = vadd.f32 %v2524, %v2553
      %v2573 = vadd.f32 %v2525, %v2555
      %v2574 = vadd.f32 %v2526, %v2557
      %v2575 = vadd.f32 %v2527, %v2559
      %vm2576 = vcmask 23568
      %2577 = vst.msk [vmem:[#allocation3] sm:$0xff] %vm2576, %v2560
      %2578 = vst.msk [vmem:[#allocation3 + $0x8] sm:$0xff] %vm2576, %v2561
      %2579 = vst.msk [vmem:[#allocation3 + $0x10] sm:$0xff] %vm2576, %v2562
      %2580 = vst.msk [vmem:[#allocation3 + $0x18] sm:$0xff] %vm2576, %v2563
      %2581 = vst.msk [vmem:[#allocation3 + $0x20] sm:$0xff] %vm2576, %v2564
      %2582 = vst.msk [vmem:[#allocation3 + $0x28] sm:$0xff] %vm2576, %v2565
      %2583 = vst.msk [vmem:[#allocation3 + $0x30] sm:$0xff] %vm2576, %v2566
      %2584 = vst.msk [vmem:[#allocation3 + $0x38] sm:$0xff] %vm2576, %v2567
      %2585 = vst.msk [vmem:[#allocation3 + $0x40] sm:$0xff] %vm2576, %v2568
      %2586 = vst.msk [vmem:[#allocation3 + $0x48] sm:$0xff] %vm2576, %v2569
      %2587 = vst.msk [vmem:[#allocation3 + $0x50] sm:$0xff] %vm2576, %v2570
      %2588 = vst.msk [vmem:[#allocation3 + $0x58] sm:$0xff] %vm2576, %v2571
      %2589 = vst.msk [vmem:[#allocation3 + $0x60] sm:$0xff] %vm2576, %v2572
      %2590 = vst.msk [vmem:[#allocation3 + $0x68] sm:$0xff] %vm2576, %v2573
      %2591 = vst.msk [vmem:[#allocation3 + $0x70] sm:$0xff] %vm2576, %v2574
      %2592 = vst.msk [vmem:[#allocation3 + $0x78] sm:$0xff] %vm2576, %v2575
      %2593 = vst.msk [vmem:[#allocation2] sm:$0xff] %vm2576, %v2304
      %2594 = vst.msk [vmem:[#allocation2 + $0x8] sm:$0xff] %vm2576, %v2305
      %2595 = vst.msk [vmem:[#allocation2 + $0x10] sm:$0xff] %vm2576, %v2306
      %2596 = vst.msk [vmem:[#allocation2 + $0x18] sm:$0xff] %vm2576, %v2307
      %2597 = vst.msk [vmem:[#allocation2 + $0x20] sm:$0xff] %vm2576, %v2308
      %2598 = vst.msk [vmem:[#allocation2 + $0x28] sm:$0xff] %vm2576, %v2309
      %2599 = vst.msk [vmem:[#allocation2 + $0x30] sm:$0xff] %vm2576, %v2310
      %2600 = vst.msk [vmem:[#allocation2 + $0x38] sm:$0xff] %vm2576, %v2311
      %2601 = vst.msk [vmem:[#allocation2 + $0x40] sm:$0xff] %vm2576, %v2312
      %2602 = vst.msk [vmem:[#allocation2 + $0x48] sm:$0xff] %vm2576, %v2313
      %2603 = vst.msk [vmem:[#allocation2 + $0x50] sm:$0xff] %vm2576, %v2314
      %2604 = vst.msk [vmem:[#allocation2 + $0x58] sm:$0xff] %vm2576, %v2315
      %2605 = vst.msk [vmem:[#allocation2 + $0x60] sm:$0xff] %vm2576, %v2316
      %2606 = vst.msk [vmem:[#allocation2 + $0x68] sm:$0xff] %vm2576, %v2317
      %2607 = vst.msk [vmem:[#allocation2 + $0x70] sm:$0xff] %vm2576, %v2318
      %2608 = vst.msk [vmem:[#allocation2 + $0x78] sm:$0xff] %vm2576, %v2319
      %v2609 = vpack.c.bf16 %v2467, %v2465
      %v2610 = vpack.c.bf16 %v2471, %v2469
      %v2611 = vpack.c.bf16 %v2475, %v2473
      %v2612 = vpack.c.bf16 %v2479, %v2477
      %v2613 = vpack.c.bf16 %v2483, %v2481
      %v2614 = vpack.c.bf16 %v2487, %v2485
      %v2615 = vpack.c.bf16 %v2491, %v2489
      %v2616 = vpack.c.bf16 %v2495, %v2493
      %v2617 = vld [vmem:[%s5] sm:$0xf]
      %v2618 = vld [vmem:[%s5 + $0x4] sm:$0xf]
      %v2619 = vld [vmem:[%s5 + $0x8] sm:$0xf]
      %v2620 = vld [vmem:[%s5 + $0xc] sm:$0xf]
      %v2621 = vld [vmem:[%s5 + $0x10] sm:$0xf]
      %v2622 = vld [vmem:[%s5 + $0x14] sm:$0xf]
      %v2623 = vld [vmem:[%s5 + $0x18] sm:$0xf]
      %v2624 = vld [vmem:[%s5 + $0x1c] sm:$0xf]
      %v2625 = vld [vmem:[%s5 + $0x20] sm:$0xf]
      %v2626 = vld [vmem:[%s5 + $0x24] sm:$0xf]
      %v2627 = vld [vmem:[%s5 + $0x28] sm:$0xf]
      %v2628 = vld [vmem:[%s5 + $0x2c] sm:$0xf]
      %v2629 = vld [vmem:[%s5 + $0x30] sm:$0xf]
      %v2630 = vld [vmem:[%s5 + $0x34] sm:$0xf]
      %v2631 = vld [vmem:[%s5 + $0x38] sm:$0xf]
      %v2632 = vld [vmem:[%s5 + $0x3c] sm:$0xf]
      %v2649 = vunpack.c.l.b16 %v2617
      %v2650 = vunpack.c.l.b16 %v2618
      %v2651 = vunpack.c.l.b16 %v2619
      %v2652 = vunpack.c.l.b16 %v2620
      %v2653 = vunpack.c.l.b16 %v2621
      %v2654 = vunpack.c.l.b16 %v2622
      %v2655 = vunpack.c.l.b16 %v2623
      %v2656 = vunpack.c.l.b16 %v2624
      %v2657 = vunpack.c.l.b16 %v2625
      %v2658 = vunpack.c.l.b16 %v2626
      %v2659 = vunpack.c.l.b16 %v2627
      %v2660 = vunpack.c.l.b16 %v2628
      %v2661 = vunpack.c.l.b16 %v2629
      %v2662 = vunpack.c.l.b16 %v2630
      %v2663 = vunpack.c.l.b16 %v2631
      %v2664 = vunpack.c.l.b16 %v2632
      %v2665 = vpack.c.b16 %v2650, %v2649
      %v2666 = vpack.c.b16 %v2652, %v2651
      %v2667 = vpack.c.b16 %v2654, %v2653
      %v2668 = vpack.c.b16 %v2656, %v2655
      %v2669 = vpack.c.b16 %v2658, %v2657
      %v2670 = vpack.c.b16 %v2660, %v2659
      %v2671 = vpack.c.b16 %v2662, %v2661
      %v2672 = vpack.c.b16 %v2664, %v2663
      %2673 = vrot.lane.b32.xlu0 %v2665, 96
      %v2674 = vpop.permute.xlu0 %2673
      %2675 = vrot.lane.b32.xlu0 %v2666, 96
      %v2676 = vpop.permute.xlu0 %2675
      %2677 = vrot.lane.b32.xlu0 %v2667, 96
      %v2678 = vpop.permute.xlu0 %2677
      %2679 = vrot.lane.b32.xlu0 %v2668, 96
      %v2680 = vpop.permute.xlu0 %2679
      %2681 = vrot.lane.b32.xlu0 %v2669, 96
      %v2682 = vpop.permute.xlu0 %2681
      %2683 = vrot.lane.b32.xlu0 %v2670, 96
      %v2684 = vpop.permute.xlu0 %2683
      %2685 = vrot.lane.b32.xlu0 %v2671, 96
      %v2686 = vpop.permute.xlu0 %2685
      %2687 = vrot.lane.b32.xlu0 %v2672, 96
      %v2688 = vpop.permute.xlu0 %2687
      %2697 = vmatprep.subr.bf16.mxu0 0
      %2698 = vmatpush1.bf16.msra.mxu0 %v2688
      %2699 = vmatprep.subr.bf16.mxu0 0
      %2700 = vmatpush1.bf16.msra.mxu0 %v2686
      %2701 = vmatprep.subr.bf16.mxu0 0
      %2702 = vmatpush1.bf16.msra.mxu0 %v2684
      %2703 = vmatprep.subr.bf16.mxu0 0
      %2704 = vmatpush1.bf16.msra.mxu0 %v2682
      %2705 = vmatprep.subr.bf16.mxu0 0
      %2706 = vmatpush1.bf16.msra.mxu0 %v2680
      %2707 = vmatprep.subr.bf16.mxu0 0
      %2708 = vmatpush1.bf16.msra.mxu0 %v2678
      %2709 = vmatprep.subr.bf16.mxu0 0
      %2710 = vmatpush1.bf16.msra.mxu0 %v2676
      %2711 = vmatprep.subr.bf16.mxu0 0
      %2712 = vmatpush1.bf16.msra.mxu0 %v2674
      %2713 = vmatprep.subr.bf16.mxu0 0
      %2714 = vmatpush2.bf16.msra.mxu0 0
      %2715 = vmatprep.subr.bf16.mxu0 0
      %2716 = vmatpush2.bf16.msra.mxu0 0
      %2717 = vmatprep.subr.bf16.mxu0 0
      %2718 = vmatpush2.bf16.msra.mxu0 0
      %2719 = vmatprep.subr.bf16.mxu0 0
      %2720 = vmatpush2.bf16.msra.mxu0 0
      %2721 = vmatprep.subr.bf16.mxu0 0
      %2722 = vmatpush2.bf16.msra.mxu0 0
      %2723 = vmatprep.subr.bf16.mxu0 0
      %2724 = vmatpush2.bf16.msra.mxu0 0
      %2725 = vmatprep.subr.bf16.mxu0 0
      %2726 = vmatpush2.bf16.msra.mxu0 0
      %2727 = vmatprep.subr.bf16.mxu0 0
      %2728 = vmatpush2.bf16.msra.mxu0 0
      %2729 = vmatprep.mubr.bf16.mxu0 0
      %2730 = vmatmul.mubr.bf16.gmra.mxu0 %v2609
      %v2731 = vpop.f32.mrf.mxu0
      %v2732 = vadd.f32 0.0, %v2731
      %v2733 = vpop.f32.mrf.mxu0
      %v2734 = vpop.f32.mrf.mxu0
      %v2735 = vadd.f32 0.0, %v2734
      %v2736 = vpop.f32.mrf.mxu0
      %2737 = vmatprep.mubr.bf16.mxu0 0
      %2738 = vmatmul.mubr.bf16.gmra.mxu0 %v2610
      %v2739 = vpop.f32.mrf.mxu0
      %v2740 = vadd.f32 0.0, %v2739
      %v2741 = vpop.f32.mrf.mxu0
      %v2742 = vpop.f32.mrf.mxu0
      %v2743 = vadd.f32 0.0, %v2742
      %v2744 = vpop.f32.mrf.mxu0
      %2745 = vmatprep.mubr.bf16.mxu0 0
      %2746 = vmatmul.mubr.bf16.gmra.mxu0 %v2611
      %v2747 = vpop.f32.mrf.mxu0
      %v2748 = vadd.f32 0.0, %v2747
      %v2749 = vpop.f32.mrf.mxu0
      %v2750 = vpop.f32.mrf.mxu0
      %v2751 = vadd.f32 0.0, %v2750
      %v2752 = vpop.f32.mrf.mxu0
      %2753 = vmatprep.mubr.bf16.mxu0 0
      %2754 = vmatmul.mubr.bf16.gmra.mxu0 %v2612
      %v2755 = vpop.f32.mrf.mxu0
      %v2756 = vadd.f32 0.0, %v2755
      %v2757 = vpop.f32.mrf.mxu0
      %v2758 = vpop.f32.mrf.mxu0
      %v2759 = vadd.f32 0.0, %v2758
      %v2760 = vpop.f32.mrf.mxu0
      %2761 = vmatprep.mubr.bf16.mxu0 0
      %2762 = vmatmul.mubr.bf16.gmra.mxu0 %v2613
      %v2763 = vpop.f32.mrf.mxu0
      %v2764 = vadd.f32 0.0, %v2763
      %v2765 = vpop.f32.mrf.mxu0
      %v2766 = vpop.f32.mrf.mxu0
      %v2767 = vadd.f32 0.0, %v2766
      %v2768 = vpop.f32.mrf.mxu0
      %2769 = vmatprep.mubr.bf16.mxu0 0
      %2770 = vmatmul.mubr.bf16.gmra.mxu0 %v2614
      %v2771 = vpop.f32.mrf.mxu0
      %v2772 = vadd.f32 0.0, %v2771
      %v2773 = vpop.f32.mrf.mxu0
      %v2774 = vpop.f32.mrf.mxu0
      %v2775 = vadd.f32 0.0, %v2774
      %v2776 = vpop.f32.mrf.mxu0
      %2777 = vmatprep.mubr.bf16.mxu0 0
      %2778 = vmatmul.mubr.bf16.gmra.mxu0 %v2615
      %v2779 = vpop.f32.mrf.mxu0
      %v2780 = vadd.f32 0.0, %v2779
      %v2781 = vpop.f32.mrf.mxu0
      %v2782 = vpop.f32.mrf.mxu0
      %v2783 = vadd.f32 0.0, %v2782
      %v2784 = vpop.f32.mrf.mxu0
      %2785 = vmatprep.mubr.bf16.mxu0 0
      %2786 = vmatmul.mubr.bf16.gmra.mxu0 %v2616
      %v2787 = vpop.f32.mrf.mxu0
      %v2788 = vadd.f32 0.0, %v2787
      %v2789 = vpop.f32.mrf.mxu0
      %v2790 = vpop.f32.mrf.mxu0
      %v2791 = vadd.f32 0.0, %v2790
      %v2792 = vpop.f32.mrf.mxu0
      %2793 = vdwg.mxu0
      %v2794 = vld [vmem:[#allocation4] sm:$0xff]
      %v2795 = vld [vmem:[#allocation4 + $0x8] sm:$0xff]
      %v2796 = vld [vmem:[#allocation4 + $0x10] sm:$0xff]
      %v2797 = vld [vmem:[#allocation4 + $0x18] sm:$0xff]
      %v2798 = vld [vmem:[#allocation4 + $0x20] sm:$0xff]
      %v2799 = vld [vmem:[#allocation4 + $0x28] sm:$0xff]
      %v2800 = vld [vmem:[#allocation4 + $0x30] sm:$0xff]
      %v2801 = vld [vmem:[#allocation4 + $0x38] sm:$0xff]
      %v2802 = vld [vmem:[#allocation4 + $0x40] sm:$0xff]
      %v2803 = vld [vmem:[#allocation4 + $0x48] sm:$0xff]
      %v2804 = vld [vmem:[#allocation4 + $0x50] sm:$0xff]
      %v2805 = vld [vmem:[#allocation4 + $0x58] sm:$0xff]
      %v2806 = vld [vmem:[#allocation4 + $0x60] sm:$0xff]
      %v2807 = vld [vmem:[#allocation4 + $0x68] sm:$0xff]
      %v2808 = vld [vmem:[#allocation4 + $0x70] sm:$0xff]
      %v2809 = vld [vmem:[#allocation4 + $0x78] sm:$0xff]
      %2811 = vset.pattern.permute.xlu0 2
      %2812 = vperm.xlu0 %2811, %v2337
      %v2813 = vpop.permute.xlu0 %2812
      %2816 = vset.pattern.permute.xlu0 2
      %2817 = vperm.xlu0 %2816, %v2339
      %v2818 = vpop.permute.xlu0 %2817
      %2821 = vset.pattern.permute.xlu0 2
      %2822 = vperm.xlu0 %2821, %v2341
      %v2823 = vpop.permute.xlu0 %2822
      %2826 = vset.pattern.permute.xlu0 2
      %2827 = vperm.xlu0 %2826, %v2343
      %v2828 = vpop.permute.xlu0 %2827
      %2831 = vset.pattern.permute.xlu0 2
      %2832 = vperm.xlu0 %2831, %v2345
      %v2833 = vpop.permute.xlu0 %2832
      %2836 = vset.pattern.permute.xlu0 2
      %2837 = vperm.xlu0 %2836, %v2347
      %v2838 = vpop.permute.xlu0 %2837
      %2841 = vset.pattern.permute.xlu0 2
      %2842 = vperm.xlu0 %2841, %v2349
      %v2843 = vpop.permute.xlu0 %2842
      %2846 = vset.pattern.permute.xlu0 2
      %2847 = vperm.xlu0 %2846, %v2351
      %v2848 = vpop.permute.xlu0 %2847
      %2851 = vset.pattern.permute.xlu0 2
      %2852 = vperm.xlu0 %2851, %v2353
      %v2853 = vpop.permute.xlu0 %2852
      %2856 = vset.pattern.permute.xlu0 2
      %2857 = vperm.xlu0 %2856, %v2355
      %v2858 = vpop.permute.xlu0 %2857
      %2861 = vset.pattern.permute.xlu0 2
      %2862 = vperm.xlu0 %2861, %v2357
      %v2863 = vpop.permute.xlu0 %2862
      %2866 = vset.pattern.permute.xlu0 2
      %2867 = vperm.xlu0 %2866, %v2359
      %v2868 = vpop.permute.xlu0 %2867
      %2871 = vset.pattern.permute.xlu0 2
      %2872 = vperm.xlu0 %2871, %v2361
      %v2873 = vpop.permute.xlu0 %2872
      %2876 = vset.pattern.permute.xlu0 2
      %2877 = vperm.xlu0 %2876, %v2363
      %v2878 = vpop.permute.xlu0 %2877
      %2881 = vset.pattern.permute.xlu0 2
      %2882 = vperm.xlu0 %2881, %v2365
      %v2883 = vpop.permute.xlu0 %2882
      %2886 = vset.pattern.permute.xlu0 2
      %2887 = vperm.xlu0 %2886, %v2367
      %v2888 = vpop.permute.xlu0 %2887
      %v2890 = vmul.f32 %v2813, %v2794
      %v2891 = vmul.f32 %v2818, %v2795
      %v2892 = vmul.f32 %v2823, %v2796
      %v2893 = vmul.f32 %v2828, %v2797
      %v2894 = vmul.f32 %v2833, %v2798
      %v2895 = vmul.f32 %v2838, %v2799
      %v2896 = vmul.f32 %v2843, %v2800
      %v2897 = vmul.f32 %v2848, %v2801
      %v2898 = vmul.f32 %v2853, %v2802
      %v2899 = vmul.f32 %v2858, %v2803
      %v2900 = vmul.f32 %v2863, %v2804
      %v2901 = vmul.f32 %v2868, %v2805
      %v2902 = vmul.f32 %v2873, %v2806
      %v2903 = vmul.f32 %v2878, %v2807
      %v2904 = vmul.f32 %v2883, %v2808
      %v2905 = vmul.f32 %v2888, %v2809
      %2922 = vrot.lane.b32.xlu0 %v2732, 32
      %v2923 = vpop.permute.xlu0 %2922
      %2924 = vrot.lane.b32.xlu0 %v2735, 32
      %v2925 = vpop.permute.xlu0 %2924
      %2926 = vrot.lane.b32.xlu0 %v2740, 32
      %v2927 = vpop.permute.xlu0 %2926
      %2928 = vrot.lane.b32.xlu0 %v2743, 32
      %v2929 = vpop.permute.xlu0 %2928
      %2930 = vrot.lane.b32.xlu0 %v2748, 32
      %v2931 = vpop.permute.xlu0 %2930
      %2932 = vrot.lane.b32.xlu0 %v2751, 32
      %v2933 = vpop.permute.xlu0 %2932
      %2934 = vrot.lane.b32.xlu0 %v2756, 32
      %v2935 = vpop.permute.xlu0 %2934
      %2936 = vrot.lane.b32.xlu0 %v2759, 32
      %v2937 = vpop.permute.xlu0 %2936
      %2938 = vrot.lane.b32.xlu0 %v2764, 32
      %v2939 = vpop.permute.xlu0 %2938
      %2940 = vrot.lane.b32.xlu0 %v2767, 32
      %v2941 = vpop.permute.xlu0 %2940
      %2942 = vrot.lane.b32.xlu0 %v2772, 32
      %v2943 = vpop.permute.xlu0 %2942
      %2944 = vrot.lane.b32.xlu0 %v2775, 32
      %v2945 = vpop.permute.xlu0 %2944
      %2946 = vrot.lane.b32.xlu0 %v2780, 32
      %v2947 = vpop.permute.xlu0 %2946
      %2948 = vrot.lane.b32.xlu0 %v2783, 32
      %v2949 = vpop.permute.xlu0 %2948
      %2950 = vrot.lane.b32.xlu0 %v2788, 32
      %v2951 = vpop.permute.xlu0 %2950
      %2952 = vrot.lane.b32.xlu0 %v2791, 32
      %v2953 = vpop.permute.xlu0 %2952
      %v2970 = vadd.f32 %v2890, %v2923
      %v2971 = vadd.f32 %v2891, %v2925
      %v2972 = vadd.f32 %v2892, %v2927
      %v2973 = vadd.f32 %v2893, %v2929
      %v2974 = vadd.f32 %v2894, %v2931
      %v2975 = vadd.f32 %v2895, %v2933
      %v2976 = vadd.f32 %v2896, %v2935
      %v2977 = vadd.f32 %v2897, %v2937
      %v2978 = vadd.f32 %v2898, %v2939
      %v2979 = vadd.f32 %v2899, %v2941
      %v2980 = vadd.f32 %v2900, %v2943
      %v2981 = vadd.f32 %v2901, %v2945
      %v2982 = vadd.f32 %v2902, %v2947
      %v2983 = vadd.f32 %v2903, %v2949
      %v2984 = vadd.f32 %v2904, %v2951
      %v2985 = vadd.f32 %v2905, %v2953
      %vm2986 = vcmask 392448
      %2987 = vst.msk [vmem:[#allocation4] sm:$0xff] %vm2986, %v2970
      %2988 = vst.msk [vmem:[#allocation4 + $0x8] sm:$0xff] %vm2986, %v2971
      %2989 = vst.msk [vmem:[#allocation4 + $0x10] sm:$0xff] %vm2986, %v2972
      %2990 = vst.msk [vmem:[#allocation4 + $0x18] sm:$0xff] %vm2986, %v2973
      %2991 = vst.msk [vmem:[#allocation4 + $0x20] sm:$0xff] %vm2986, %v2974
      %2992 = vst.msk [vmem:[#allocation4 + $0x28] sm:$0xff] %vm2986, %v2975
      %2993 = vst.msk [vmem:[#allocation4 + $0x30] sm:$0xff] %vm2986, %v2976
      %2994 = vst.msk [vmem:[#allocation4 + $0x38] sm:$0xff] %vm2986, %v2977
      %2995 = vst.msk [vmem:[#allocation4 + $0x40] sm:$0xff] %vm2986, %v2978
      %2996 = vst.msk [vmem:[#allocation4 + $0x48] sm:$0xff] %vm2986, %v2979
      %2997 = vst.msk [vmem:[#allocation4 + $0x50] sm:$0xff] %vm2986, %v2980
      %2998 = vst.msk [vmem:[#allocation4 + $0x58] sm:$0xff] %vm2986, %v2981
      %2999 = vst.msk [vmem:[#allocation4 + $0x60] sm:$0xff] %vm2986, %v2982
      %3000 = vst.msk [vmem:[#allocation4 + $0x68] sm:$0xff] %vm2986, %v2983
      %3001 = vst.msk [vmem:[#allocation4 + $0x70] sm:$0xff] %vm2986, %v2984
      %3002 = vst.msk [vmem:[#allocation4 + $0x78] sm:$0xff] %vm2986, %v2985
      %s3003 = sld [smem:[#allocation6 + $0x3]]
      %v3004 = vstv %s3003
      %v3005 = vsel %vm137, %v3004, -1e+30
      %v3006 = vsel %vm138, %v3004, -1e+30
      %v3007 = vsel %vm139, %v3004, -1e+30
      %v3008 = vsel %vm140, %v3004, -1e+30
      %v3009 = vsel %vm141, %v3004, -1e+30
      %v3010 = vsel %vm142, %v3004, -1e+30
      %v3011 = vsel %vm143, %v3004, -1e+30
      %v3012 = vsel %vm144, %v3004, -1e+30
      %v3013 = vsel %vm145, %v3004, -1e+30
      %v3014 = vsel %vm146, %v3004, -1e+30
      %v3015 = vsel %vm147, %v3004, -1e+30
      %v3016 = vsel %vm148, %v3004, -1e+30
      %v3017 = vsel %vm149, %v3004, -1e+30
      %v3018 = vsel %vm150, %v3004, -1e+30
      %v3019 = vsel %vm151, %v3004, -1e+30
      %v3020 = vsel %vm152, %v3004, -1e+30
      %s3021 = sld [smem:[#allocation6 + $0x83]]
      %v3022 = vstv %s3021
      %v3023 = vsel %vm171, %v3022, %v3005
      %v3024 = vsel %vm172, %v3022, %v3006
      %v3025 = vsel %vm173, %v3022, %v3007
      %v3026 = vsel %vm174, %v3022, %v3008
      %v3027 = vsel %vm175, %v3022, %v3009
      %v3028 = vsel %vm176, %v3022, %v3010
      %v3029 = vsel %vm177, %v3022, %v3011
      %v3030 = vsel %vm178, %v3022, %v3012
      %v3031 = vsel %vm179, %v3022, %v3013
      %v3032 = vsel %vm180, %v3022, %v3014
      %v3033 = vsel %vm181, %v3022, %v3015
      %v3034 = vsel %vm182, %v3022, %v3016
      %v3035 = vsel %vm183, %v3022, %v3017
      %v3036 = vsel %vm184, %v3022, %v3018
      %v3037 = vsel %vm185, %v3022, %v3019
      %v3038 = vsel %vm186, %v3022, %v3020
      %s3039 = sld [smem:[#allocation6 + $0x103]]
      %v3040 = vstv %s3039
      %v3041 = vsel %vm205, %v3040, %v3023
      %v3042 = vsel %vm206, %v3040, %v3024
      %v3043 = vsel %vm207, %v3040, %v3025
      %v3044 = vsel %vm208, %v3040, %v3026
      %v3045 = vsel %vm209, %v3040, %v3027
      %v3046 = vsel %vm210, %v3040, %v3028
      %v3047 = vsel %vm211, %v3040, %v3029
      %v3048 = vsel %vm212, %v3040, %v3030
      %v3049 = vsel %vm213, %v3040, %v3031
      %v3050 = vsel %vm214, %v3040, %v3032
      %v3051 = vsel %vm215, %v3040, %v3033
      %v3052 = vsel %vm216, %v3040, %v3034
      %v3053 = vsel %vm217, %v3040, %v3035
      %v3054 = vsel %vm218, %v3040, %v3036
      %v3055 = vsel %vm219, %v3040, %v3037
      %v3056 = vsel %vm220, %v3040, %v3038
      %v3057 = vld [vmem:[%s2 + $0x3] sm:$0x1]
      %v3058 = vld [vmem:[%s3] sm:$0xff]
      %v3059 = vld [vmem:[%s3 + $0x8] sm:$0xff]
      %v3060 = vld [vmem:[%s3 + $0x10] sm:$0xff]
      %v3061 = vld [vmem:[%s3 + $0x18] sm:$0xff]
      %v3062 = vld [vmem:[%s3 + $0x20] sm:$0xff]
      %v3063 = vld [vmem:[%s3 + $0x28] sm:$0xff]
      %v3064 = vld [vmem:[%s3 + $0x30] sm:$0xff]
      %v3065 = vld [vmem:[%s3 + $0x38] sm:$0xff]
      %v3066 = vld [vmem:[%s3 + $0x40] sm:$0xff]
      %v3067 = vld [vmem:[%s3 + $0x48] sm:$0xff]
      %v3068 = vld [vmem:[%s3 + $0x50] sm:$0xff]
      %v3069 = vld [vmem:[%s3 + $0x58] sm:$0xff]
      %v3070 = vld [vmem:[%s3 + $0x60] sm:$0xff]
      %v3071 = vld [vmem:[%s3 + $0x68] sm:$0xff]
      %v3072 = vld [vmem:[%s3 + $0x70] sm:$0xff]
      %v3073 = vld [vmem:[%s3 + $0x78] sm:$0xff]
      %v3074 = vlaneseq
      %v3075 = vshrl.u32 %v3074, 7
      %v3076 = vsub.s32 0, %v3075
      %v3077 = vrot.slane %v3057, %v3076
      %3079 = vset.pattern.permute.xlu0 3
      %3080 = vperm.xlu0 %3079, %v3058
      %v3081 = vpop.permute.xlu0 %3080
      %3084 = vset.pattern.permute.xlu0 3
      %3085 = vperm.xlu0 %3084, %v3059
      %v3086 = vpop.permute.xlu0 %3085
      %3089 = vset.pattern.permute.xlu0 3
      %3090 = vperm.xlu0 %3089, %v3060
      %v3091 = vpop.permute.xlu0 %3090
      %3094 = vset.pattern.permute.xlu0 3
      %3095 = vperm.xlu0 %3094, %v3061
      %v3096 = vpop.permute.xlu0 %3095
      %3099 = vset.pattern.permute.xlu0 3
      %3100 = vperm.xlu0 %3099, %v3062
      %v3101 = vpop.permute.xlu0 %3100
      %3104 = vset.pattern.permute.xlu0 3
      %3105 = vperm.xlu0 %3104, %v3063
      %v3106 = vpop.permute.xlu0 %3105
      %3109 = vset.pattern.permute.xlu0 3
      %3110 = vperm.xlu0 %3109, %v3064
      %v3111 = vpop.permute.xlu0 %3110
      %3114 = vset.pattern.permute.xlu0 3
      %3115 = vperm.xlu0 %3114, %v3065
      %v3116 = vpop.permute.xlu0 %3115
      %3119 = vset.pattern.permute.xlu0 3
      %3120 = vperm.xlu0 %3119, %v3066
      %v3121 = vpop.permute.xlu0 %3120
      %3124 = vset.pattern.permute.xlu0 3
      %3125 = vperm.xlu0 %3124, %v3067
      %v3126 = vpop.permute.xlu0 %3125
      %3129 = vset.pattern.permute.xlu0 3
      %3130 = vperm.xlu0 %3129, %v3068
      %v3131 = vpop.permute.xlu0 %3130
      %3134 = vset.pattern.permute.xlu0 3
      %3135 = vperm.xlu0 %3134, %v3069
      %v3136 = vpop.permute.xlu0 %3135
      %3139 = vset.pattern.permute.xlu0 3
      %3140 = vperm.xlu0 %3139, %v3070
      %v3141 = vpop.permute.xlu0 %3140
      %3144 = vset.pattern.permute.xlu0 3
      %3145 = vperm.xlu0 %3144, %v3071
      %v3146 = vpop.permute.xlu0 %3145
      %3149 = vset.pattern.permute.xlu0 3
      %3150 = vperm.xlu0 %3149, %v3072
      %v3151 = vpop.permute.xlu0 %3150
      %3154 = vset.pattern.permute.xlu0 3
      %3155 = vperm.xlu0 %3154, %v3073
      %v3156 = vpop.permute.xlu0 %3155
      %v3158 = vadd.f32 %v3077, %v3081
      %v3159 = vadd.f32 %v3077, %v3086
      %v3160 = vadd.f32 %v3077, %v3091
      %v3161 = vadd.f32 %v3077, %v3096
      %v3162 = vadd.f32 %v3077, %v3101
      %v3163 = vadd.f32 %v3077, %v3106
      %v3164 = vadd.f32 %v3077, %v3111
      %v3165 = vadd.f32 %v3077, %v3116
      %v3166 = vadd.f32 %v3077, %v3121
      %v3167 = vadd.f32 %v3077, %v3126
      %v3168 = vadd.f32 %v3077, %v3131
      %v3169 = vadd.f32 %v3077, %v3136
      %v3170 = vadd.f32 %v3077, %v3141
      %v3171 = vadd.f32 %v3077, %v3146
      %v3172 = vadd.f32 %v3077, %v3151
      %v3173 = vadd.f32 %v3077, %v3156
      %v3174 = vadd.f32 %v3158, %v3041
      %v3175 = vadd.f32 %v3159, %v3042
      %v3176 = vadd.f32 %v3160, %v3043
      %v3177 = vadd.f32 %v3161, %v3044
      %v3178 = vadd.f32 %v3162, %v3045
      %v3179 = vadd.f32 %v3163, %v3046
      %v3180 = vadd.f32 %v3164, %v3047
      %v3181 = vadd.f32 %v3165, %v3048
      %v3182 = vadd.f32 %v3166, %v3049
      %v3183 = vadd.f32 %v3167, %v3050
      %v3184 = vadd.f32 %v3168, %v3051
      %v3185 = vadd.f32 %v3169, %v3052
      %v3186 = vadd.f32 %v3170, %v3053
      %v3187 = vadd.f32 %v3171, %v3054
      %v3188 = vadd.f32 %v3172, %v3055
      %v3189 = vadd.f32 %v3173, %v3056
      %v3190 = vmul.f32 %v3174, 0.2
      %v3191 = vmul.f32 %v3175, 0.2
      %v3192 = vmul.f32 %v3176, 0.2
      %v3193 = vmul.f32 %v3177, 0.2
      %v3194 = vmul.f32 %v3178, 0.2
      %v3195 = vmul.f32 %v3179, 0.2
      %v3196 = vmul.f32 %v3180, 0.2
      %v3197 = vmul.f32 %v3181, 0.2
      %v3198 = vmul.f32 %v3182, 0.2
      %v3199 = vmul.f32 %v3183, 0.2
      %v3200 = vmul.f32 %v3184, 0.2
      %v3201 = vmul.f32 %v3185, 0.2
      %v3202 = vmul.f32 %v3186, 0.2
      %v3203 = vmul.f32 %v3187, 0.2
      %v3204 = vmul.f32 %v3188, 0.2
      %v3205 = vmul.f32 %v3189, 0.2
      %v3206 = vmax.f32 %v3174, %v3190
      %v3207 = vmax.f32 %v3175, %v3191
      %v3208 = vmax.f32 %v3176, %v3192
      %v3209 = vmax.f32 %v3177, %v3193
      %v3210 = vmax.f32 %v3178, %v3194
      %v3211 = vmax.f32 %v3179, %v3195
      %v3212 = vmax.f32 %v3180, %v3196
      %v3213 = vmax.f32 %v3181, %v3197
      %v3214 = vmax.f32 %v3182, %v3198
      %v3215 = vmax.f32 %v3183, %v3199
      %v3216 = vmax.f32 %v3184, %v3200
      %v3217 = vmax.f32 %v3185, %v3201
      %v3218 = vmax.f32 %v3186, %v3202
      %v3219 = vmax.f32 %v3187, %v3203
      %v3220 = vmax.f32 %v3188, %v3204
      %v3221 = vmax.f32 %v3189, %v3205
      %v3222 = vld [vmem:[#allocation2] sm:$0xff]
      %v3223 = vld [vmem:[#allocation2 + $0x8] sm:$0xff]
      %v3224 = vld [vmem:[#allocation2 + $0x10] sm:$0xff]
      %v3225 = vld [vmem:[#allocation2 + $0x18] sm:$0xff]
      %v3226 = vld [vmem:[#allocation2 + $0x20] sm:$0xff]
      %v3227 = vld [vmem:[#allocation2 + $0x28] sm:$0xff]
      %v3228 = vld [vmem:[#allocation2 + $0x30] sm:$0xff]
      %v3229 = vld [vmem:[#allocation2 + $0x38] sm:$0xff]
      %v3230 = vld [vmem:[#allocation2 + $0x40] sm:$0xff]
      %v3231 = vld [vmem:[#allocation2 + $0x48] sm:$0xff]
      %v3232 = vld [vmem:[#allocation2 + $0x50] sm:$0xff]
      %v3233 = vld [vmem:[#allocation2 + $0x58] sm:$0xff]
      %v3234 = vld [vmem:[#allocation2 + $0x60] sm:$0xff]
      %v3235 = vld [vmem:[#allocation2 + $0x68] sm:$0xff]
      %v3236 = vld [vmem:[#allocation2 + $0x70] sm:$0xff]
      %v3237 = vld [vmem:[#allocation2 + $0x78] sm:$0xff]
      %3238 = vmax.xlane.f32.xlu0 %v3206
      %v3239 = vpop.xlane.xlu0 %3238
      %3240 = vmax.xlane.f32.xlu0 %v3207
      %v3241 = vpop.xlane.xlu0 %3240
      %3242 = vmax.xlane.f32.xlu0 %v3208
      %v3243 = vpop.xlane.xlu0 %3242
      %3244 = vmax.xlane.f32.xlu0 %v3209
      %v3245 = vpop.xlane.xlu0 %3244
      %3246 = vmax.xlane.f32.xlu0 %v3210
      %v3247 = vpop.xlane.xlu0 %3246
      %3248 = vmax.xlane.f32.xlu0 %v3211
      %v3249 = vpop.xlane.xlu0 %3248
      %3250 = vmax.xlane.f32.xlu0 %v3212
      %v3251 = vpop.xlane.xlu0 %3250
      %3252 = vmax.xlane.f32.xlu0 %v3213
      %v3253 = vpop.xlane.xlu0 %3252
      %3254 = vmax.xlane.f32.xlu0 %v3214
      %v3255 = vpop.xlane.xlu0 %3254
      %3256 = vmax.xlane.f32.xlu0 %v3215
      %v3257 = vpop.xlane.xlu0 %3256
      %3258 = vmax.xlane.f32.xlu0 %v3216
      %v3259 = vpop.xlane.xlu0 %3258
      %3260 = vmax.xlane.f32.xlu0 %v3217
      %v3261 = vpop.xlane.xlu0 %3260
      %3262 = vmax.xlane.f32.xlu0 %v3218
      %v3263 = vpop.xlane.xlu0 %3262
      %3264 = vmax.xlane.f32.xlu0 %v3219
      %v3265 = vpop.xlane.xlu0 %3264
      %3266 = vmax.xlane.f32.xlu0 %v3220
      %v3267 = vpop.xlane.xlu0 %3266
      %3268 = vmax.xlane.f32.xlu0 %v3221
      %v3269 = vpop.xlane.xlu0 %3268
      %v3270 = vmax.f32 %v3222, %v3239
      %v3271 = vmax.f32 %v3223, %v3241
      %v3272 = vmax.f32 %v3224, %v3243
      %v3273 = vmax.f32 %v3225, %v3245
      %v3274 = vmax.f32 %v3226, %v3247
      %v3275 = vmax.f32 %v3227, %v3249
      %v3276 = vmax.f32 %v3228, %v3251
      %v3277 = vmax.f32 %v3229, %v3253
      %v3278 = vmax.f32 %v3230, %v3255
      %v3279 = vmax.f32 %v3231, %v3257
      %v3280 = vmax.f32 %v3232, %v3259
      %v3281 = vmax.f32 %v3233, %v3261
      %v3282 = vmax.f32 %v3234, %v3263
      %v3283 = vmax.f32 %v3235, %v3265
      %v3284 = vmax.f32 %v3236, %v3267
      %v3285 = vmax.f32 %v3237, %v3269
      %v3286 = vsub.f32 %v3222, %v3270
      %v3287 = vsub.f32 %v3223, %v3271
      %v3288 = vsub.f32 %v3224, %v3272
      %v3289 = vsub.f32 %v3225, %v3273
      %v3290 = vsub.f32 %v3226, %v3274
      %v3291 = vsub.f32 %v3227, %v3275
      %v3292 = vsub.f32 %v3228, %v3276
      %v3293 = vsub.f32 %v3229, %v3277
      %v3294 = vsub.f32 %v3230, %v3278
      %v3295 = vsub.f32 %v3231, %v3279
      %v3296 = vsub.f32 %v3232, %v3280
      %v3297 = vsub.f32 %v3233, %v3281
      %v3298 = vsub.f32 %v3234, %v3282
      %v3299 = vsub.f32 %v3235, %v3283
      %v3300 = vsub.f32 %v3236, %v3284
      %v3301 = vsub.f32 %v3237, %v3285
      %v3302 = vmul.f32 %v3286, 1.442695
      %v3303 = vpow.pop %v3302
      %v3304 = vmul.f32 %v3287, 1.442695
      %v3305 = vpow.pop %v3304
      %v3306 = vmul.f32 %v3288, 1.442695
      %v3307 = vpow.pop %v3306
      %v3308 = vmul.f32 %v3289, 1.442695
      %v3309 = vpow.pop %v3308
      %v3310 = vmul.f32 %v3290, 1.442695
      %v3311 = vpow.pop %v3310
      %v3312 = vmul.f32 %v3291, 1.442695
      %v3313 = vpow.pop %v3312
      %v3314 = vmul.f32 %v3292, 1.442695
      %v3315 = vpow.pop %v3314
      %v3316 = vmul.f32 %v3293, 1.442695
      %v3317 = vpow.pop %v3316
      %v3318 = vmul.f32 %v3294, 1.442695
      %v3319 = vpow.pop %v3318
      %v3320 = vmul.f32 %v3295, 1.442695
      %v3321 = vpow.pop %v3320
      %v3322 = vmul.f32 %v3296, 1.442695
      %v3323 = vpow.pop %v3322
      %v3324 = vmul.f32 %v3297, 1.442695
      %v3325 = vpow.pop %v3324
      %v3326 = vmul.f32 %v3298, 1.442695
      %v3327 = vpow.pop %v3326
      %v3328 = vmul.f32 %v3299, 1.442695
      %v3329 = vpow.pop %v3328
      %v3330 = vmul.f32 %v3300, 1.442695
      %v3331 = vpow.pop %v3330
      %v3332 = vmul.f32 %v3301, 1.442695
      %v3333 = vpow.pop %v3332
      %3335 = vset.pattern.permute.xlu0 3
      %3336 = vperm.xlu0 %3335, %v3270
      %v3337 = vpop.permute.xlu0 %3336
      %3340 = vset.pattern.permute.xlu0 3
      %3341 = vperm.xlu0 %3340, %v3271
      %v3342 = vpop.permute.xlu0 %3341
      %3345 = vset.pattern.permute.xlu0 3
      %3346 = vperm.xlu0 %3345, %v3272
      %v3347 = vpop.permute.xlu0 %3346
      %3350 = vset.pattern.permute.xlu0 3
      %3351 = vperm.xlu0 %3350, %v3273
      %v3352 = vpop.permute.xlu0 %3351
      %3355 = vset.pattern.permute.xlu0 3
      %3356 = vperm.xlu0 %3355, %v3274
      %v3357 = vpop.permute.xlu0 %3356
      %3360 = vset.pattern.permute.xlu0 3
      %3361 = vperm.xlu0 %3360, %v3275
      %v3362 = vpop.permute.xlu0 %3361
      %3365 = vset.pattern.permute.xlu0 3
      %3366 = vperm.xlu0 %3365, %v3276
      %v3367 = vpop.permute.xlu0 %3366
      %3370 = vset.pattern.permute.xlu0 3
      %3371 = vperm.xlu0 %3370, %v3277
      %v3372 = vpop.permute.xlu0 %3371
      %3375 = vset.pattern.permute.xlu0 3
      %3376 = vperm.xlu0 %3375, %v3278
      %v3377 = vpop.permute.xlu0 %3376
      %3380 = vset.pattern.permute.xlu0 3
      %3381 = vperm.xlu0 %3380, %v3279
      %v3382 = vpop.permute.xlu0 %3381
      %3385 = vset.pattern.permute.xlu0 3
      %3386 = vperm.xlu0 %3385, %v3280
      %v3387 = vpop.permute.xlu0 %3386
      %3390 = vset.pattern.permute.xlu0 3
      %3391 = vperm.xlu0 %3390, %v3281
      %v3392 = vpop.permute.xlu0 %3391
      %3395 = vset.pattern.permute.xlu0 3
      %3396 = vperm.xlu0 %3395, %v3282
      %v3397 = vpop.permute.xlu0 %3396
      %3400 = vset.pattern.permute.xlu0 3
      %3401 = vperm.xlu0 %3400, %v3283
      %v3402 = vpop.permute.xlu0 %3401
      %3405 = vset.pattern.permute.xlu0 3
      %3406 = vperm.xlu0 %3405, %v3284
      %v3407 = vpop.permute.xlu0 %3406
      %3410 = vset.pattern.permute.xlu0 3
      %3411 = vperm.xlu0 %3410, %v3285
      %v3412 = vpop.permute.xlu0 %3411
      %v3414 = vsub.f32 %v3206, %v3337
      %v3415 = vsub.f32 %v3207, %v3342
      %v3416 = vsub.f32 %v3208, %v3347
      %v3417 = vsub.f32 %v3209, %v3352
      %v3418 = vsub.f32 %v3210, %v3357
      %v3419 = vsub.f32 %v3211, %v3362
      %v3420 = vsub.f32 %v3212, %v3367
      %v3421 = vsub.f32 %v3213, %v3372
      %v3422 = vsub.f32 %v3214, %v3377
      %v3423 = vsub.f32 %v3215, %v3382
      %v3424 = vsub.f32 %v3216, %v3387
      %v3425 = vsub.f32 %v3217, %v3392
      %v3426 = vsub.f32 %v3218, %v3397
      %v3427 = vsub.f32 %v3219, %v3402
      %v3428 = vsub.f32 %v3220, %v3407
      %v3429 = vsub.f32 %v3221, %v3412
      %v3430 = vmul.f32 %v3414, 1.442695
      %v3431 = vpow.pop %v3430
      %v3432 = vmul.f32 %v3415, 1.442695
      %v3433 = vpow.pop %v3432
      %v3434 = vmul.f32 %v3416, 1.442695
      %v3435 = vpow.pop %v3434
      %v3436 = vmul.f32 %v3417, 1.442695
      %v3437 = vpow.pop %v3436
      %v3438 = vmul.f32 %v3418, 1.442695
      %v3439 = vpow.pop %v3438
      %v3440 = vmul.f32 %v3419, 1.442695
      %v3441 = vpow.pop %v3440
      %v3442 = vmul.f32 %v3420, 1.442695
      %v3443 = vpow.pop %v3442
      %v3444 = vmul.f32 %v3421, 1.442695
      %v3445 = vpow.pop %v3444
      %v3446 = vmul.f32 %v3422, 1.442695
      %v3447 = vpow.pop %v3446
      %v3448 = vmul.f32 %v3423, 1.442695
      %v3449 = vpow.pop %v3448
      %v3450 = vmul.f32 %v3424, 1.442695
      %v3451 = vpow.pop %v3450
      %v3452 = vmul.f32 %v3425, 1.442695
      %v3453 = vpow.pop %v3452
      %v3454 = vmul.f32 %v3426, 1.442695
      %v3455 = vpow.pop %v3454
      %v3456 = vmul.f32 %v3427, 1.442695
      %v3457 = vpow.pop %v3456
      %v3458 = vmul.f32 %v3428, 1.442695
      %v3459 = vpow.pop %v3458
      %v3460 = vmul.f32 %v3429, 1.442695
      %v3461 = vpow.pop %v3460
      %v3462 = vld [vmem:[#allocation3] sm:$0xff]
      %v3463 = vld [vmem:[#allocation3 + $0x8] sm:$0xff]
      %v3464 = vld [vmem:[#allocation3 + $0x10] sm:$0xff]
      %v3465 = vld [vmem:[#allocation3 + $0x18] sm:$0xff]
      %v3466 = vld [vmem:[#allocation3 + $0x20] sm:$0xff]
      %v3467 = vld [vmem:[#allocation3 + $0x28] sm:$0xff]
      %v3468 = vld [vmem:[#allocation3 + $0x30] sm:$0xff]
      %v3469 = vld [vmem:[#allocation3 + $0x38] sm:$0xff]
      %v3470 = vld [vmem:[#allocation3 + $0x40] sm:$0xff]
      %v3471 = vld [vmem:[#allocation3 + $0x48] sm:$0xff]
      %v3472 = vld [vmem:[#allocation3 + $0x50] sm:$0xff]
      %v3473 = vld [vmem:[#allocation3 + $0x58] sm:$0xff]
      %v3474 = vld [vmem:[#allocation3 + $0x60] sm:$0xff]
      %v3475 = vld [vmem:[#allocation3 + $0x68] sm:$0xff]
      %v3476 = vld [vmem:[#allocation3 + $0x70] sm:$0xff]
      %v3477 = vld [vmem:[#allocation3 + $0x78] sm:$0xff]
      %v3478 = vmul.f32 %v3303, %v3462
      %v3479 = vmul.f32 %v3305, %v3463
      %v3480 = vmul.f32 %v3307, %v3464
      %v3481 = vmul.f32 %v3309, %v3465
      %v3482 = vmul.f32 %v3311, %v3466
      %v3483 = vmul.f32 %v3313, %v3467
      %v3484 = vmul.f32 %v3315, %v3468
      %v3485 = vmul.f32 %v3317, %v3469
      %v3486 = vmul.f32 %v3319, %v3470
      %v3487 = vmul.f32 %v3321, %v3471
      %v3488 = vmul.f32 %v3323, %v3472
      %v3489 = vmul.f32 %v3325, %v3473
      %v3490 = vmul.f32 %v3327, %v3474
      %v3491 = vmul.f32 %v3329, %v3475
      %v3492 = vmul.f32 %v3331, %v3476
      %v3493 = vmul.f32 %v3333, %v3477
      %3494 = vadd.xlane.f32.xlu0 %v3431
      %v3495 = vpop.xlane.xlu0 %3494
      %3496 = vadd.xlane.f32.xlu0 %v3433
      %v3497 = vpop.xlane.xlu0 %3496
      %3498 = vadd.xlane.f32.xlu0 %v3435
      %v3499 = vpop.xlane.xlu0 %3498
      %3500 = vadd.xlane.f32.xlu0 %v3437
      %v3501 = vpop.xlane.xlu0 %3500
      %3502 = vadd.xlane.f32.xlu0 %v3439
      %v3503 = vpop.xlane.xlu0 %3502
      %3504 = vadd.xlane.f32.xlu0 %v3441
      %v3505 = vpop.xlane.xlu0 %3504
      %3506 = vadd.xlane.f32.xlu0 %v3443
      %v3507 = vpop.xlane.xlu0 %3506
      %3508 = vadd.xlane.f32.xlu0 %v3445
      %v3509 = vpop.xlane.xlu0 %3508
      %3510 = vadd.xlane.f32.xlu0 %v3447
      %v3511 = vpop.xlane.xlu0 %3510
      %3512 = vadd.xlane.f32.xlu0 %v3449
      %v3513 = vpop.xlane.xlu0 %3512
      %3514 = vadd.xlane.f32.xlu0 %v3451
      %v3515 = vpop.xlane.xlu0 %3514
      %3516 = vadd.xlane.f32.xlu0 %v3453
      %v3517 = vpop.xlane.xlu0 %3516
      %3518 = vadd.xlane.f32.xlu0 %v3455
      %v3519 = vpop.xlane.xlu0 %3518
      %3520 = vadd.xlane.f32.xlu0 %v3457
      %v3521 = vpop.xlane.xlu0 %3520
      %3522 = vadd.xlane.f32.xlu0 %v3459
      %v3523 = vpop.xlane.xlu0 %3522
      %3524 = vadd.xlane.f32.xlu0 %v3461
      %v3525 = vpop.xlane.xlu0 %3524
      %v3526 = vadd.f32 %v3478, %v3495
      %v3527 = vadd.f32 %v3479, %v3497
      %v3528 = vadd.f32 %v3480, %v3499
      %v3529 = vadd.f32 %v3481, %v3501
      %v3530 = vadd.f32 %v3482, %v3503
      %v3531 = vadd.f32 %v3483, %v3505
      %v3532 = vadd.f32 %v3484, %v3507
      %v3533 = vadd.f32 %v3485, %v3509
      %v3534 = vadd.f32 %v3486, %v3511
      %v3535 = vadd.f32 %v3487, %v3513
      %v3536 = vadd.f32 %v3488, %v3515
      %v3537 = vadd.f32 %v3489, %v3517
      %v3538 = vadd.f32 %v3490, %v3519
      %v3539 = vadd.f32 %v3491, %v3521
      %v3540 = vadd.f32 %v3492, %v3523
      %v3541 = vadd.f32 %v3493, %v3525
      %vm3542 = vcmask 31768
      %3543 = vst.msk [vmem:[#allocation3] sm:$0xff] %vm3542, %v3526
      %3544 = vst.msk [vmem:[#allocation3 + $0x8] sm:$0xff] %vm3542, %v3527
      %3545 = vst.msk [vmem:[#allocation3 + $0x10] sm:$0xff] %vm3542, %v3528
      %3546 = vst.msk [vmem:[#allocation3 + $0x18] sm:$0xff] %vm3542, %v3529
      %3547 = vst.msk [vmem:[#allocation3 + $0x20] sm:$0xff] %vm3542, %v3530
      %3548 = vst.msk [vmem:[#allocation3 + $0x28] sm:$0xff] %vm3542, %v3531
      %3549 = vst.msk [vmem:[#allocation3 + $0x30] sm:$0xff] %vm3542, %v3532
      %3550 = vst.msk [vmem:[#allocation3 + $0x38] sm:$0xff] %vm3542, %v3533
      %3551 = vst.msk [vmem:[#allocation3 + $0x40] sm:$0xff] %vm3542, %v3534
      %3552 = vst.msk [vmem:[#allocation3 + $0x48] sm:$0xff] %vm3542, %v3535
      %3553 = vst.msk [vmem:[#allocation3 + $0x50] sm:$0xff] %vm3542, %v3536
      %3554 = vst.msk [vmem:[#allocation3 + $0x58] sm:$0xff] %vm3542, %v3537
      %3555 = vst.msk [vmem:[#allocation3 + $0x60] sm:$0xff] %vm3542, %v3538
      %3556 = vst.msk [vmem:[#allocation3 + $0x68] sm:$0xff] %vm3542, %v3539
      %3557 = vst.msk [vmem:[#allocation3 + $0x70] sm:$0xff] %vm3542, %v3540
      %3558 = vst.msk [vmem:[#allocation3 + $0x78] sm:$0xff] %vm3542, %v3541
      %3559 = vst.msk [vmem:[#allocation2] sm:$0xff] %vm3542, %v3270
      %3560 = vst.msk [vmem:[#allocation2 + $0x8] sm:$0xff] %vm3542, %v3271
      %3561 = vst.msk [vmem:[#allocation2 + $0x10] sm:$0xff] %vm3542, %v3272
      %3562 = vst.msk [vmem:[#allocation2 + $0x18] sm:$0xff] %vm3542, %v3273
      %3563 = vst.msk [vmem:[#allocation2 + $0x20] sm:$0xff] %vm3542, %v3274
      %3564 = vst.msk [vmem:[#allocation2 + $0x28] sm:$0xff] %vm3542, %v3275
      %3565 = vst.msk [vmem:[#allocation2 + $0x30] sm:$0xff] %vm3542, %v3276
      %3566 = vst.msk [vmem:[#allocation2 + $0x38] sm:$0xff] %vm3542, %v3277
      %3567 = vst.msk [vmem:[#allocation2 + $0x40] sm:$0xff] %vm3542, %v3278
      %3568 = vst.msk [vmem:[#allocation2 + $0x48] sm:$0xff] %vm3542, %v3279
      %3569 = vst.msk [vmem:[#allocation2 + $0x50] sm:$0xff] %vm3542, %v3280
      %3570 = vst.msk [vmem:[#allocation2 + $0x58] sm:$0xff] %vm3542, %v3281
      %3571 = vst.msk [vmem:[#allocation2 + $0x60] sm:$0xff] %vm3542, %v3282
      %3572 = vst.msk [vmem:[#allocation2 + $0x68] sm:$0xff] %vm3542, %v3283
      %3573 = vst.msk [vmem:[#allocation2 + $0x70] sm:$0xff] %vm3542, %v3284
      %3574 = vst.msk [vmem:[#allocation2 + $0x78] sm:$0xff] %vm3542, %v3285
      %v3575 = vpack.c.bf16 %v3433, %v3431
      %v3576 = vpack.c.bf16 %v3437, %v3435
      %v3577 = vpack.c.bf16 %v3441, %v3439
      %v3578 = vpack.c.bf16 %v3445, %v3443
      %v3579 = vpack.c.bf16 %v3449, %v3447
      %v3580 = vpack.c.bf16 %v3453, %v3451
      %v3581 = vpack.c.bf16 %v3457, %v3455
      %v3582 = vpack.c.bf16 %v3461, %v3459
      %v3583 = vld [vmem:[%s5] sm:$0xf]
      %v3584 = vld [vmem:[%s5 + $0x4] sm:$0xf]
      %v3585 = vld [vmem:[%s5 + $0x8] sm:$0xf]
      %v3586 = vld [vmem:[%s5 + $0xc] sm:$0xf]
      %v3587 = vld [vmem:[%s5 + $0x10] sm:$0xf]
      %v3588 = vld [vmem:[%s5 + $0x14] sm:$0xf]
      %v3589 = vld [vmem:[%s5 + $0x18] sm:$0xf]
      %v3590 = vld [vmem:[%s5 + $0x1c] sm:$0xf]
      %v3591 = vld [vmem:[%s5 + $0x20] sm:$0xf]
      %v3592 = vld [vmem:[%s5 + $0x24] sm:$0xf]
      %v3593 = vld [vmem:[%s5 + $0x28] sm:$0xf]
      %v3594 = vld [vmem:[%s5 + $0x2c] sm:$0xf]
      %v3595 = vld [vmem:[%s5 + $0x30] sm:$0xf]
      %v3596 = vld [vmem:[%s5 + $0x34] sm:$0xf]
      %v3597 = vld [vmem:[%s5 + $0x38] sm:$0xf]
      %v3598 = vld [vmem:[%s5 + $0x3c] sm:$0xf]
      %v3615 = vunpack.c.l.b16 %v3583
      %v3616 = vunpack.c.l.b16 %v3584
      %v3617 = vunpack.c.l.b16 %v3585
      %v3618 = vunpack.c.l.b16 %v3586
      %v3619 = vunpack.c.l.b16 %v3587
      %v3620 = vunpack.c.l.b16 %v3588
      %v3621 = vunpack.c.l.b16 %v3589
      %v3622 = vunpack.c.l.b16 %v3590
      %v3623 = vunpack.c.l.b16 %v3591
      %v3624 = vunpack.c.l.b16 %v3592
      %v3625 = vunpack.c.l.b16 %v3593
      %v3626 = vunpack.c.l.b16 %v3594
      %v3627 = vunpack.c.l.b16 %v3595
      %v3628 = vunpack.c.l.b16 %v3596
      %v3629 = vunpack.c.l.b16 %v3597
      %v3630 = vunpack.c.l.b16 %v3598
      %v3631 = vpack.c.b16 %v3616, %v3615
      %v3632 = vpack.c.b16 %v3618, %v3617
      %v3633 = vpack.c.b16 %v3620, %v3619
      %v3634 = vpack.c.b16 %v3622, %v3621
      %v3635 = vpack.c.b16 %v3624, %v3623
      %v3636 = vpack.c.b16 %v3626, %v3625
      %v3637 = vpack.c.b16 %v3628, %v3627
      %v3638 = vpack.c.b16 %v3630, %v3629
      %3639 = vrot.lane.b32.xlu0 %v3631, 80
      %v3640 = vpop.permute.xlu0 %3639
      %3641 = vrot.lane.b32.xlu0 %v3632, 80
      %v3642 = vpop.permute.xlu0 %3641
      %3643 = vrot.lane.b32.xlu0 %v3633, 80
      %v3644 = vpop.permute.xlu0 %3643
      %3645 = vrot.lane.b32.xlu0 %v3634, 80
      %v3646 = vpop.permute.xlu0 %3645
      %3647 = vrot.lane.b32.xlu0 %v3635, 80
      %v3648 = vpop.permute.xlu0 %3647
      %3649 = vrot.lane.b32.xlu0 %v3636, 80
      %v3650 = vpop.permute.xlu0 %3649
      %3651 = vrot.lane.b32.xlu0 %v3637, 80
      %v3652 = vpop.permute.xlu0 %3651
      %3653 = vrot.lane.b32.xlu0 %v3638, 80
      %v3654 = vpop.permute.xlu0 %3653
      %3663 = vmatprep.subr.bf16.mxu0 0
      %3664 = vmatpush1.bf16.msra.mxu0 %v3654
      %3665 = vmatprep.subr.bf16.mxu0 0
      %3666 = vmatpush1.bf16.msra.mxu0 %v3652
      %3667 = vmatprep.subr.bf16.mxu0 0
      %3668 = vmatpush1.bf16.msra.mxu0 %v3650
      %3669 = vmatprep.subr.bf16.mxu0 0
      %3670 = vmatpush1.bf16.msra.mxu0 %v3648
      %3671 = vmatprep.subr.bf16.mxu0 0
      %3672 = vmatpush1.bf16.msra.mxu0 %v3646
      %3673 = vmatprep.subr.bf16.mxu0 0
      %3674 = vmatpush1.bf16.msra.mxu0 %v3644
      %3675 = vmatprep.subr.bf16.mxu0 0
      %3676 = vmatpush1.bf16.msra.mxu0 %v3642
      %3677 = vmatprep.subr.bf16.mxu0 0
      %3678 = vmatpush1.bf16.msra.mxu0 %v3640
      %3679 = vmatprep.subr.bf16.mxu0 0
      %3680 = vmatpush2.bf16.msra.mxu0 0
      %3681 = vmatprep.subr.bf16.mxu0 0
      %3682 = vmatpush2.bf16.msra.mxu0 0
      %3683 = vmatprep.subr.bf16.mxu0 0
      %3684 = vmatpush2.bf16.msra.mxu0 0
      %3685 = vmatprep.subr.bf16.mxu0 0
      %3686 = vmatpush2.bf16.msra.mxu0 0
      %3687 = vmatprep.subr.bf16.mxu0 0
      %3688 = vmatpush2.bf16.msra.mxu0 0
      %3689 = vmatprep.subr.bf16.mxu0 0
      %3690 = vmatpush2.bf16.msra.mxu0 0
      %3691 = vmatprep.subr.bf16.mxu0 0
      %3692 = vmatpush2.bf16.msra.mxu0 0
      %3693 = vmatprep.subr.bf16.mxu0 0
      %3694 = vmatpush2.bf16.msra.mxu0 0
      %3695 = vmatprep.mubr.bf16.mxu0 0
      %3696 = vmatmul.mubr.bf16.gmra.mxu0 %v3575
      %v3697 = vpop.f32.mrf.mxu0
      %v3698 = vadd.f32 0.0, %v3697
      %v3699 = vpop.f32.mrf.mxu0
      %v3700 = vpop.f32.mrf.mxu0
      %v3701 = vadd.f32 0.0, %v3700
      %v3702 = vpop.f32.mrf.mxu0
      %3703 = vmatprep.mubr.bf16.mxu0 0
      %3704 = vmatmul.mubr.bf16.gmra.mxu0 %v3576
      %v3705 = vpop.f32.mrf.mxu0
      %v3706 = vadd.f32 0.0, %v3705
      %v3707 = vpop.f32.mrf.mxu0
      %v3708 = vpop.f32.mrf.mxu0
      %v3709 = vadd.f32 0.0, %v3708
      %v3710 = vpop.f32.mrf.mxu0
      %3711 = vmatprep.mubr.bf16.mxu0 0
      %3712 = vmatmul.mubr.bf16.gmra.mxu0 %v3577
      %v3713 = vpop.f32.mrf.mxu0
      %v3714 = vadd.f32 0.0, %v3713
      %v3715 = vpop.f32.mrf.mxu0
      %v3716 = vpop.f32.mrf.mxu0
      %v3717 = vadd.f32 0.0, %v3716
      %v3718 = vpop.f32.mrf.mxu0
      %3719 = vmatprep.mubr.bf16.mxu0 0
      %3720 = vmatmul.mubr.bf16.gmra.mxu0 %v3578
      %v3721 = vpop.f32.mrf.mxu0
      %v3722 = vadd.f32 0.0, %v3721
      %v3723 = vpop.f32.mrf.mxu0
      %v3724 = vpop.f32.mrf.mxu0
      %v3725 = vadd.f32 0.0, %v3724
      %v3726 = vpop.f32.mrf.mxu0
      %3727 = vmatprep.mubr.bf16.mxu0 0
      %3728 = vmatmul.mubr.bf16.gmra.mxu0 %v3579
      %v3729 = vpop.f32.mrf.mxu0
      %v3730 = vadd.f32 0.0, %v3729
      %v3731 = vpop.f32.mrf.mxu0
      %v3732 = vpop.f32.mrf.mxu0
      %v3733 = vadd.f32 0.0, %v3732
      %v3734 = vpop.f32.mrf.mxu0
      %3735 = vmatprep.mubr.bf16.mxu0 0
      %3736 = vmatmul.mubr.bf16.gmra.mxu0 %v3580
      %v3737 = vpop.f32.mrf.mxu0
      %v3738 = vadd.f32 0.0, %v3737
      %v3739 = vpop.f32.mrf.mxu0
      %v3740 = vpop.f32.mrf.mxu0
      %v3741 = vadd.f32 0.0, %v3740
      %v3742 = vpop.f32.mrf.mxu0
      %3743 = vmatprep.mubr.bf16.mxu0 0
      %3744 = vmatmul.mubr.bf16.gmra.mxu0 %v3581
      %v3745 = vpop.f32.mrf.mxu0
      %v3746 = vadd.f32 0.0, %v3745
      %v3747 = vpop.f32.mrf.mxu0
      %v3748 = vpop.f32.mrf.mxu0
      %v3749 = vadd.f32 0.0, %v3748
      %v3750 = vpop.f32.mrf.mxu0
      %3751 = vmatprep.mubr.bf16.mxu0 0
      %3752 = vmatmul.mubr.bf16.gmra.mxu0 %v3582
      %v3753 = vpop.f32.mrf.mxu0
      %v3754 = vadd.f32 0.0, %v3753
      %v3755 = vpop.f32.mrf.mxu0
      %v3756 = vpop.f32.mrf.mxu0
      %v3757 = vadd.f32 0.0, %v3756
      %v3758 = vpop.f32.mrf.mxu0
      %3759 = vdwg.mxu0
      %v3760 = vld [vmem:[#allocation4] sm:$0xff]
      %v3761 = vld [vmem:[#allocation4 + $0x8] sm:$0xff]
      %v3762 = vld [vmem:[#allocation4 + $0x10] sm:$0xff]
      %v3763 = vld [vmem:[#allocation4 + $0x18] sm:$0xff]
      %v3764 = vld [vmem:[#allocation4 + $0x20] sm:$0xff]
      %v3765 = vld [vmem:[#allocation4 + $0x28] sm:$0xff]
      %v3766 = vld [vmem:[#allocation4 + $0x30] sm:$0xff]
      %v3767 = vld [vmem:[#allocation4 + $0x38] sm:$0xff]
      %v3768 = vld [vmem:[#allocation4 + $0x40] sm:$0xff]
      %v3769 = vld [vmem:[#allocation4 + $0x48] sm:$0xff]
      %v3770 = vld [vmem:[#allocation4 + $0x50] sm:$0xff]
      %v3771 = vld [vmem:[#allocation4 + $0x58] sm:$0xff]
      %v3772 = vld [vmem:[#allocation4 + $0x60] sm:$0xff]
      %v3773 = vld [vmem:[#allocation4 + $0x68] sm:$0xff]
      %v3774 = vld [vmem:[#allocation4 + $0x70] sm:$0xff]
      %v3775 = vld [vmem:[#allocation4 + $0x78] sm:$0xff]
      %3777 = vset.pattern.permute.xlu0 3
      %3778 = vperm.xlu0 %3777, %v3303
      %v3779 = vpop.permute.xlu0 %3778
      %3782 = vset.pattern.permute.xlu0 3
      %3783 = vperm.xlu0 %3782, %v3305
      %v3784 = vpop.permute.xlu0 %3783
      %3787 = vset.pattern.permute.xlu0 3
      %3788 = vperm.xlu0 %3787, %v3307
      %v3789 = vpop.permute.xlu0 %3788
      %3792 = vset.pattern.permute.xlu0 3
      %3793 = vperm.xlu0 %3792, %v3309
      %v3794 = vpop.permute.xlu0 %3793
      %3797 = vset.pattern.permute.xlu0 3
      %3798 = vperm.xlu0 %3797, %v3311
      %v3799 = vpop.permute.xlu0 %3798
      %3802 = vset.pattern.permute.xlu0 3
      %3803 = vperm.xlu0 %3802, %v3313
      %v3804 = vpop.permute.xlu0 %3803
      %3807 = vset.pattern.permute.xlu0 3
      %3808 = vperm.xlu0 %3807, %v3315
      %v3809 = vpop.permute.xlu0 %3808
      %3812 = vset.pattern.permute.xlu0 3
      %3813 = vperm.xlu0 %3812, %v3317
      %v3814 = vpop.permute.xlu0 %3813
      %3817 = vset.pattern.permute.xlu0 3
      %3818 = vperm.xlu0 %3817, %v3319
      %v3819 = vpop.permute.xlu0 %3818
      %3822 = vset.pattern.permute.xlu0 3
      %3823 = vperm.xlu0 %3822, %v3321
      %v3824 = vpop.permute.xlu0 %3823
      %3827 = vset.pattern.permute.xlu0 3
      %3828 = vperm.xlu0 %3827, %v3323
      %v3829 = vpop.permute.xlu0 %3828
      %3832 = vset.pattern.permute.xlu0 3
      %3833 = vperm.xlu0 %3832, %v3325
      %v3834 = vpop.permute.xlu0 %3833
      %3837 = vset.pattern.permute.xlu0 3
      %3838 = vperm.xlu0 %3837, %v3327
      %v3839 = vpop.permute.xlu0 %3838
      %3842 = vset.pattern.permute.xlu0 3
      %3843 = vperm.xlu0 %3842, %v3329
      %v3844 = vpop.permute.xlu0 %3843
      %3847 = vset.pattern.permute.xlu0 3
      %3848 = vperm.xlu0 %3847, %v3331
      %v3849 = vpop.permute.xlu0 %3848
      %3852 = vset.pattern.permute.xlu0 3
      %3853 = vperm.xlu0 %3852, %v3333
      %v3854 = vpop.permute.xlu0 %3853
      %v3856 = vmul.f32 %v3779, %v3760
      %v3857 = vmul.f32 %v3784, %v3761
      %v3858 = vmul.f32 %v3789, %v3762
      %v3859 = vmul.f32 %v3794, %v3763
      %v3860 = vmul.f32 %v3799, %v3764
      %v3861 = vmul.f32 %v3804, %v3765
      %v3862 = vmul.f32 %v3809, %v3766
      %v3863 = vmul.f32 %v3814, %v3767
      %v3864 = vmul.f32 %v3819, %v3768
      %v3865 = vmul.f32 %v3824, %v3769
      %v3866 = vmul.f32 %v3829, %v3770
      %v3867 = vmul.f32 %v3834, %v3771
      %v3868 = vmul.f32 %v3839, %v3772
      %v3869 = vmul.f32 %v3844, %v3773
      %v3870 = vmul.f32 %v3849, %v3774
      %v3871 = vmul.f32 %v3854, %v3775
      %3888 = vrot.lane.b32.xlu0 %v3698, 48
      %v3889 = vpop.permute.xlu0 %3888
      %3890 = vrot.lane.b32.xlu0 %v3701, 48
      %v3891 = vpop.permute.xlu0 %3890
      %3892 = vrot.lane.b32.xlu0 %v3706, 48
      %v3893 = vpop.permute.xlu0 %3892
      %3894 = vrot.lane.b32.xlu0 %v3709, 48
      %v3895 = vpop.permute.xlu0 %3894
      %3896 = vrot.lane.b32.xlu0 %v3714, 48
      %v3897 = vpop.permute.xlu0 %3896
      %3898 = vrot.lane.b32.xlu0 %v3717, 48
      %v3899 = vpop.permute.xlu0 %3898
      %3900 = vrot.lane.b32.xlu0 %v3722, 48
      %v3901 = vpop.permute.xlu0 %3900
      %3902 = vrot.lane.b32.xlu0 %v3725, 48
      %v3903 = vpop.permute.xlu0 %3902
      %3904 = vrot.lane.b32.xlu0 %v3730, 48
      %v3905 = vpop.permute.xlu0 %3904
      %3906 = vrot.lane.b32.xlu0 %v3733, 48
      %v3907 = vpop.permute.xlu0 %3906
      %3908 = vrot.lane.b32.xlu0 %v3738, 48
      %v3909 = vpop.permute.xlu0 %3908
      %3910 = vrot.lane.b32.xlu0 %v3741, 48
      %v3911 = vpop.permute.xlu0 %3910
      %3912 = vrot.lane.b32.xlu0 %v3746, 48
      %v3913 = vpop.permute.xlu0 %3912
      %3914 = vrot.lane.b32.xlu0 %v3749, 48
      %v3915 = vpop.permute.xlu0 %3914
      %3916 = vrot.lane.b32.xlu0 %v3754, 48
      %v3917 = vpop.permute.xlu0 %3916
      %3918 = vrot.lane.b32.xlu0 %v3757, 48
      %v3919 = vpop.permute.xlu0 %3918
      %v3936 = vadd.f32 %v3856, %v3889
      %v3937 = vadd.f32 %v3857, %v3891
      %v3938 = vadd.f32 %v3858, %v3893
      %v3939 = vadd.f32 %v3859, %v3895
      %v3940 = vadd.f32 %v3860, %v3897
      %v3941 = vadd.f32 %v3861, %v3899
      %v3942 = vadd.f32 %v3862, %v3901
      %v3943 = vadd.f32 %v3863, %v3903
      %v3944 = vadd.f32 %v3864, %v3905
      %v3945 = vadd.f32 %v3865, %v3907
      %v3946 = vadd.f32 %v3866, %v3909
      %v3947 = vadd.f32 %v3867, %v3911
      %v3948 = vadd.f32 %v3868, %v3913
      %v3949 = vadd.f32 %v3869, %v3915
      %v3950 = vadd.f32 %v3870, %v3917
      %v3951 = vadd.f32 %v3871, %v3919
      %vm3952 = vcmask 523648
      %3953 = vst.msk [vmem:[#allocation4] sm:$0xff] %vm3952, %v3936
      %3954 = vst.msk [vmem:[#allocation4 + $0x8] sm:$0xff] %vm3952, %v3937
      %3955 = vst.msk [vmem:[#allocation4 + $0x10] sm:$0xff] %vm3952, %v3938
      %3956 = vst.msk [vmem:[#allocation4 + $0x18] sm:$0xff] %vm3952, %v3939
      %3957 = vst.msk [vmem:[#allocation4 + $0x20] sm:$0xff] %vm3952, %v3940
      %3958 = vst.msk [vmem:[#allocation4 + $0x28] sm:$0xff] %vm3952, %v3941
      %3959 = vst.msk [vmem:[#allocation4 + $0x30] sm:$0xff] %vm3952, %v3942
      %3960 = vst.msk [vmem:[#allocation4 + $0x38] sm:$0xff] %vm3952, %v3943
      %3961 = vst.msk [vmem:[#allocation4 + $0x40] sm:$0xff] %vm3952, %v3944
      %3962 = vst.msk [vmem:[#allocation4 + $0x48] sm:$0xff] %vm3952, %v3945
      %3963 = vst.msk [vmem:[#allocation4 + $0x50] sm:$0xff] %vm3952, %v3946
      %3964 = vst.msk [vmem:[#allocation4 + $0x58] sm:$0xff] %vm3952, %v3947
      %3965 = vst.msk [vmem:[#allocation4 + $0x60] sm:$0xff] %vm3952, %v3948
      %3966 = vst.msk [vmem:[#allocation4 + $0x68] sm:$0xff] %vm3952, %v3949
      %3967 = vst.msk [vmem:[#allocation4 + $0x70] sm:$0xff] %vm3952, %v3950
      %3968 = vst.msk [vmem:[#allocation4 + $0x78] sm:$0xff] %vm3952, %v3951
    $region37: #{tpu_custom_call.1} parent=1 // pred_fallthru
      _
    // Predicated region
    $region38: #{tpu_custom_call.1} parent=1 // pred_check
      %p3969 = pneg %p41
    $region39: #{tpu_custom_call.1} parent=1 // pred_check_branch
      %3971 = sbr.rel (%p3969) target = $region41
    $region40: #{tpu_custom_call.1} parent=1 // pred_region
      %v3972 = vld [vmem:[#allocation3] sm:$0xff]
      %v3973 = vld [vmem:[#allocation3 + $0x8] sm:$0xff]
      %v3974 = vld [vmem:[#allocation3 + $0x10] sm:$0xff]
      %v3975 = vld [vmem:[#allocation3 + $0x18] sm:$0xff]
      %v3976 = vld [vmem:[#allocation3 + $0x20] sm:$0xff]
      %v3977 = vld [vmem:[#allocation3 + $0x28] sm:$0xff]
      %v3978 = vld [vmem:[#allocation3 + $0x30] sm:$0xff]
      %v3979 = vld [vmem:[#allocation3 + $0x38] sm:$0xff]
      %v3980 = vld [vmem:[#allocation3 + $0x40] sm:$0xff]
      %v3981 = vld [vmem:[#allocation3 + $0x48] sm:$0xff]
      %v3982 = vld [vmem:[#allocation3 + $0x50] sm:$0xff]
      %v3983 = vld [vmem:[#allocation3 + $0x58] sm:$0xff]
      %v3984 = vld [vmem:[#allocation3 + $0x60] sm:$0xff]
      %v3985 = vld [vmem:[#allocation3 + $0x68] sm:$0xff]
      %v3986 = vld [vmem:[#allocation3 + $0x70] sm:$0xff]
      %v3987 = vld [vmem:[#allocation3 + $0x78] sm:$0xff]
      %v3988 = vrcp.pop %v3972
      %v3989 = vmul.f32 1.0, %v3988
      %v3990 = vrcp.pop %v3973
      %v3991 = vmul.f32 1.0, %v3990
      %v3992 = vrcp.pop %v3974
      %v3993 = vmul.f32 1.0, %v3992
      %v3994 = vrcp.pop %v3975
      %v3995 = vmul.f32 1.0, %v3994
      %v3996 = vrcp.pop %v3976
      %v3997 = vmul.f32 1.0, %v3996
      %v3998 = vrcp.pop %v3977
      %v3999 = vmul.f32 1.0, %v3998
      %v4000 = vrcp.pop %v3978
      %v4001 = vmul.f32 1.0, %v4000
      %v4002 = vrcp.pop %v3979
      %v4003 = vmul.f32 1.0, %v4002
      %v4004 = vrcp.pop %v3980
      %v4005 = vmul.f32 1.0, %v4004
      %v4006 = vrcp.pop %v3981
      %v4007 = vmul.f32 1.0, %v4006
      %v4008 = vrcp.pop %v3982
      %v4009 = vmul.f32 1.0, %v4008
      %v4010 = vrcp.pop %v3983
      %v4011 = vmul.f32 1.0, %v4010
      %v4012 = vrcp.pop %v3984
      %v4013 = vmul.f32 1.0, %v4012
      %v4014 = vrcp.pop %v3985
      %v4015 = vmul.f32 1.0, %v4014
      %v4016 = vrcp.pop %v3986
      %v4017 = vmul.f32 1.0, %v4016
      %v4018 = vrcp.pop %v3987
      %v4019 = vmul.f32 1.0, %v4018
      %v4020 = vld [vmem:[#allocation4] sm:$0xff]
      %v4021 = vld [vmem:[#allocation4 + $0x8] sm:$0xff]
      %v4022 = vld [vmem:[#allocation4 + $0x10] sm:$0xff]
      %v4023 = vld [vmem:[#allocation4 + $0x18] sm:$0xff]
      %v4024 = vld [vmem:[#allocation4 + $0x20] sm:$0xff]
      %v4025 = vld [vmem:[#allocation4 + $0x28] sm:$0xff]
      %v4026 = vld [vmem:[#allocation4 + $0x30] sm:$0xff]
      %v4027 = vld [vmem:[#allocation4 + $0x38] sm:$0xff]
      %v4028 = vld [vmem:[#allocation4 + $0x40] sm:$0xff]
      %v4029 = vld [vmem:[#allocation4 + $0x48] sm:$0xff]
      %v4030 = vld [vmem:[#allocation4 + $0x50] sm:$0xff]
      %v4031 = vld [vmem:[#allocation4 + $0x58] sm:$0xff]
      %v4032 = vld [vmem:[#allocation4 + $0x60] sm:$0xff]
      %v4033 = vld [vmem:[#allocation4 + $0x68] sm:$0xff]
      %v4034 = vld [vmem:[#allocation4 + $0x70] sm:$0xff]
      %v4035 = vld [vmem:[#allocation4 + $0x78] sm:$0xff]
      %4037 = vset.pattern.permute.xlu0 0
      %4038 = vperm.xlu0 %4037, %v3989
      %v4039 = vpop.permute.xlu0 %4038
      %4042 = vset.pattern.permute.xlu0 0
      %4043 = vperm.xlu0 %4042, %v3991
      %v4044 = vpop.permute.xlu0 %4043
      %4047 = vset.pattern.permute.xlu0 0
      %4048 = vperm.xlu0 %4047, %v3993
      %v4049 = vpop.permute.xlu0 %4048
      %4052 = vset.pattern.permute.xlu0 0
      %4053 = vperm.xlu0 %4052, %v3995
      %v4054 = vpop.permute.xlu0 %4053
      %4057 = vset.pattern.permute.xlu0 0
      %4058 = vperm.xlu0 %4057, %v3997
      %v4059 = vpop.permute.xlu0 %4058
      %4062 = vset.pattern.permute.xlu0 0
      %4063 = vperm.xlu0 %4062, %v3999
      %v4064 = vpop.permute.xlu0 %4063
      %4067 = vset.pattern.permute.xlu0 0
      %4068 = vperm.xlu0 %4067, %v4001
      %v4069 = vpop.permute.xlu0 %4068
      %4072 = vset.pattern.permute.xlu0 0
      %4073 = vperm.xlu0 %4072, %v4003
      %v4074 = vpop.permute.xlu0 %4073
      %4077 = vset.pattern.permute.xlu0 0
      %4078 = vperm.xlu0 %4077, %v4005
      %v4079 = vpop.permute.xlu0 %4078
      %4082 = vset.pattern.permute.xlu0 0
      %4083 = vperm.xlu0 %4082, %v4007
      %v4084 = vpop.permute.xlu0 %4083
      %4087 = vset.pattern.permute.xlu0 0
      %4088 = vperm.xlu0 %4087, %v4009
      %v4089 = vpop.permute.xlu0 %4088
      %4092 = vset.pattern.permute.xlu0 0
      %4093 = vperm.xlu0 %4092, %v4011
      %v4094 = vpop.permute.xlu0 %4093
      %4097 = vset.pattern.permute.xlu0 0
      %4098 = vperm.xlu0 %4097, %v4013
      %v4099 = vpop.permute.xlu0 %4098
      %4102 = vset.pattern.permute.xlu0 0
      %4103 = vperm.xlu0 %4102, %v4015
      %v4104 = vpop.permute.xlu0 %4103
      %4107 = vset.pattern.permute.xlu0 0
      %4108 = vperm.xlu0 %4107, %v4017
      %v4109 = vpop.permute.xlu0 %4108
      %4112 = vset.pattern.permute.xlu0 0
      %4113 = vperm.xlu0 %4112, %v4019
      %v4114 = vpop.permute.xlu0 %4113
      %v4116 = vmul.f32 %v4020, %v4039
      %v4117 = vmul.f32 %v4021, %v4044
      %v4118 = vmul.f32 %v4022, %v4049
      %v4119 = vmul.f32 %v4023, %v4054
      %v4120 = vmul.f32 %v4024, %v4059
      %v4121 = vmul.f32 %v4025, %v4064
      %v4122 = vmul.f32 %v4026, %v4069
      %v4123 = vmul.f32 %v4027, %v4074
      %v4124 = vmul.f32 %v4028, %v4079
      %v4125 = vmul.f32 %v4029, %v4084
      %v4126 = vmul.f32 %v4030, %v4089
      %v4127 = vmul.f32 %v4031, %v4094
      %v4128 = vmul.f32 %v4032, %v4099
      %v4129 = vmul.f32 %v4033, %v4104
      %v4130 = vmul.f32 %v4034, %v4109
      %v4131 = vmul.f32 %v4035, %v4114
      %vm4132 = vcmask 130048
      %4133 = vst.msk [vmem:[#allocation4] sm:$0xff] %vm4132, %v4116
      %4134 = vst.msk [vmem:[#allocation4 + $0x8] sm:$0xff] %vm4132, %v4117
      %4135 = vst.msk [vmem:[#allocation4 + $0x10] sm:$0xff] %vm4132, %v4118
      %4136 = vst.msk [vmem:[#allocation4 + $0x18] sm:$0xff] %vm4132, %v4119
      %4137 = vst.msk [vmem:[#allocation4 + $0x20] sm:$0xff] %vm4132, %v4120
      %4138 = vst.msk [vmem:[#allocation4 + $0x28] sm:$0xff] %vm4132, %v4121
      %4139 = vst.msk [vmem:[#allocation4 + $0x30] sm:$0xff] %vm4132, %v4122
      %4140 = vst.msk [vmem:[#allocation4 + $0x38] sm:$0xff] %vm4132, %v4123
      %4141 = vst.msk [vmem:[#allocation4 + $0x40] sm:$0xff] %vm4132, %v4124
      %4142 = vst.msk [vmem:[#allocation4 + $0x48] sm:$0xff] %vm4132, %v4125
      %4143 = vst.msk [vmem:[#allocation4 + $0x50] sm:$0xff] %vm4132, %v4126
      %4144 = vst.msk [vmem:[#allocation4 + $0x58] sm:$0xff] %vm4132, %v4127
      %4145 = vst.msk [vmem:[#allocation4 + $0x60] sm:$0xff] %vm4132, %v4128
      %4146 = vst.msk [vmem:[#allocation4 + $0x68] sm:$0xff] %vm4132, %v4129
      %4147 = vst.msk [vmem:[#allocation4 + $0x70] sm:$0xff] %vm4132, %v4130
      %4148 = vst.msk [vmem:[#allocation4 + $0x78] sm:$0xff] %vm4132, %v4131
      %v4149 = vld [vmem:[#allocation4] sm:$0xff]
      %v4150 = vld [vmem:[#allocation4 + $0x8] sm:$0xff]
      %v4151 = vld [vmem:[#allocation4 + $0x10] sm:$0xff]
      %v4152 = vld [vmem:[#allocation4 + $0x18] sm:$0xff]
      %v4153 = vld [vmem:[#allocation4 + $0x20] sm:$0xff]
      %v4154 = vld [vmem:[#allocation4 + $0x28] sm:$0xff]
      %v4155 = vld [vmem:[#allocation4 + $0x30] sm:$0xff]
      %v4156 = vld [vmem:[#allocation4 + $0x38] sm:$0xff]
      %v4157 = vld [vmem:[#allocation4 + $0x40] sm:$0xff]
      %v4158 = vld [vmem:[#allocation4 + $0x48] sm:$0xff]
      %v4159 = vld [vmem:[#allocation4 + $0x50] sm:$0xff]
      %v4160 = vld [vmem:[#allocation4 + $0x58] sm:$0xff]
      %v4161 = vld [vmem:[#allocation4 + $0x60] sm:$0xff]
      %v4162 = vld [vmem:[#allocation4 + $0x68] sm:$0xff]
      %v4163 = vld [vmem:[#allocation4 + $0x70] sm:$0xff]
      %v4164 = vld [vmem:[#allocation4 + $0x78] sm:$0xff]
      %4165 = vset.pattern.permute.xlu0 1
      %4166 = vperm.xlu0 %4165, %v3989
      %v4167 = vpop.permute.xlu0 %4166
      %4169 = vset.pattern.permute.xlu0 1
      %4170 = vperm.xlu0 %4169, %v3991
      %v4171 = vpop.permute.xlu0 %4170
      %4173 = vset.pattern.permute.xlu0 1
      %4174 = vperm.xlu0 %4173, %v3993
      %v4175 = vpop.permute.xlu0 %4174
      %4177 = vset.pattern.permute.xlu0 1
      %4178 = vperm.xlu0 %4177, %v3995
      %v4179 = vpop.permute.xlu0 %4178
      %4181 = vset.pattern.permute.xlu0 1
      %4182 = vperm.xlu0 %4181, %v3997
      %v4183 = vpop.permute.xlu0 %4182
      %4185 = vset.pattern.permute.xlu0 1
      %4186 = vperm.xlu0 %4185, %v3999
      %v4187 = vpop.permute.xlu0 %4186
      %4189 = vset.pattern.permute.xlu0 1
      %4190 = vperm.xlu0 %4189, %v4001
      %v4191 = vpop.permute.xlu0 %4190
      %4193 = vset.pattern.permute.xlu0 1
      %4194 = vperm.xlu0 %4193, %v4003
      %v4195 = vpop.permute.xlu0 %4194
      %4197 = vset.pattern.permute.xlu0 1
      %4198 = vperm.xlu0 %4197, %v4005
      %v4199 = vpop.permute.xlu0 %4198
      %4201 = vset.pattern.permute.xlu0 1
      %4202 = vperm.xlu0 %4201, %v4007
      %v4203 = vpop.permute.xlu0 %4202
      %4205 = vset.pattern.permute.xlu0 1
      %4206 = vperm.xlu0 %4205, %v4009
      %v4207 = vpop.permute.xlu0 %4206
      %4209 = vset.pattern.permute.xlu0 1
      %4210 = vperm.xlu0 %4209, %v4011
      %v4211 = vpop.permute.xlu0 %4210
      %4213 = vset.pattern.permute.xlu0 1
      %4214 = vperm.xlu0 %4213, %v4013
      %v4215 = vpop.permute.xlu0 %4214
      %4217 = vset.pattern.permute.xlu0 1
      %4218 = vperm.xlu0 %4217, %v4015
      %v4219 = vpop.permute.xlu0 %4218
      %4221 = vset.pattern.permute.xlu0 1
      %4222 = vperm.xlu0 %4221, %v4017
      %v4223 = vpop.permute.xlu0 %4222
      %4225 = vset.pattern.permute.xlu0 1
      %4226 = vperm.xlu0 %4225, %v4019
      %v4227 = vpop.permute.xlu0 %4226
      %v4229 = vmul.f32 %v4149, %v4167
      %v4230 = vmul.f32 %v4150, %v4171
      %v4231 = vmul.f32 %v4151, %v4175
      %v4232 = vmul.f32 %v4152, %v4179
      %v4233 = vmul.f32 %v4153, %v4183
      %v4234 = vmul.f32 %v4154, %v4187
      %v4235 = vmul.f32 %v4155, %v4191
      %v4236 = vmul.f32 %v4156, %v4195
      %v4237 = vmul.f32 %v4157, %v4199
      %v4238 = vmul.f32 %v4158, %v4203
      %v4239 = vmul.f32 %v4159, %v4207
      %v4240 = vmul.f32 %v4160, %v4211
      %v4241 = vmul.f32 %v4161, %v4215
      %v4242 = vmul.f32 %v4162, %v4219
      %v4243 = vmul.f32 %v4163, %v4223
      %v4244 = vmul.f32 %v4164, %v4227
      %vm4245 = vcmask 261248
      %4246 = vst.msk [vmem:[#allocation4] sm:$0xff] %vm4245, %v4229
      %4247 = vst.msk [vmem:[#allocation4 + $0x8] sm:$0xff] %vm4245, %v4230
      %4248 = vst.msk [vmem:[#allocation4 + $0x10] sm:$0xff] %vm4245, %v4231
      %4249 = vst.msk [vmem:[#allocation4 + $0x18] sm:$0xff] %vm4245, %v4232
      %4250 = vst.msk [vmem:[#allocation4 + $0x20] sm:$0xff] %vm4245, %v4233
      %4251 = vst.msk [vmem:[#allocation4 + $0x28] sm:$0xff] %vm4245, %v4234
      %4252 = vst.msk [vmem:[#allocation4 + $0x30] sm:$0xff] %vm4245, %v4235
      %4253 = vst.msk [vmem:[#allocation4 + $0x38] sm:$0xff] %vm4245, %v4236
      %4254 = vst.msk [vmem:[#allocation4 + $0x40] sm:$0xff] %vm4245, %v4237
      %4255 = vst.msk [vmem:[#allocation4 + $0x48] sm:$0xff] %vm4245, %v4238
      %4256 = vst.msk [vmem:[#allocation4 + $0x50] sm:$0xff] %vm4245, %v4239
      %4257 = vst.msk [vmem:[#allocation4 + $0x58] sm:$0xff] %vm4245, %v4240
      %4258 = vst.msk [vmem:[#allocation4 + $0x60] sm:$0xff] %vm4245, %v4241
      %4259 = vst.msk [vmem:[#allocation4 + $0x68] sm:$0xff] %vm4245, %v4242
      %4260 = vst.msk [vmem:[#allocation4 + $0x70] sm:$0xff] %vm4245, %v4243
      %4261 = vst.msk [vmem:[#allocation4 + $0x78] sm:$0xff] %vm4245, %v4244
      %v4262 = vld [vmem:[#allocation4] sm:$0xff]
      %v4263 = vld [vmem:[#allocation4 + $0x8] sm:$0xff]
      %v4264 = vld [vmem:[#allocation4 + $0x10] sm:$0xff]
      %v4265 = vld [vmem:[#allocation4 + $0x18] sm:$0xff]
      %v4266 = vld [vmem:[#allocation4 + $0x20] sm:$0xff]
      %v4267 = vld [vmem:[#allocation4 + $0x28] sm:$0xff]
      %v4268 = vld [vmem:[#allocation4 + $0x30] sm:$0xff]
      %v4269 = vld [vmem:[#allocation4 + $0x38] sm:$0xff]
      %v4270 = vld [vmem:[#allocation4 + $0x40] sm:$0xff]
      %v4271 = vld [vmem:[#allocation4 + $0x48] sm:$0xff]
      %v4272 = vld [vmem:[#allocation4 + $0x50] sm:$0xff]
      %v4273 = vld [vmem:[#allocation4 + $0x58] sm:$0xff]
      %v4274 = vld [vmem:[#allocation4 + $0x60] sm:$0xff]
      %v4275 = vld [vmem:[#allocation4 + $0x68] sm:$0xff]
      %v4276 = vld [vmem:[#allocation4 + $0x70] sm:$0xff]
      %v4277 = vld [vmem:[#allocation4 + $0x78] sm:$0xff]
      %4278 = vset.pattern.permute.xlu0 2
      %4279 = vperm.xlu0 %4278, %v3989
      %v4280 = vpop.permute.xlu0 %4279
      %4282 = vset.pattern.permute.xlu0 2
      %4283 = vperm.xlu0 %4282, %v3991
      %v4284 = vpop.permute.xlu0 %4283
      %4286 = vset.pattern.permute.xlu0 2
      %4287 = vperm.xlu0 %4286, %v3993
      %v4288 = vpop.permute.xlu0 %4287
      %4290 = vset.pattern.permute.xlu0 2
      %4291 = vperm.xlu0 %4290, %v3995
      %v4292 = vpop.permute.xlu0 %4291
      %4294 = vset.pattern.permute.xlu0 2
      %4295 = vperm.xlu0 %4294, %v3997
      %v4296 = vpop.permute.xlu0 %4295
      %4298 = vset.pattern.permute.xlu0 2
      %4299 = vperm.xlu0 %4298, %v3999
      %v4300 = vpop.permute.xlu0 %4299
      %4302 = vset.pattern.permute.xlu0 2
      %4303 = vperm.xlu0 %4302, %v4001
      %v4304 = vpop.permute.xlu0 %4303
      %4306 = vset.pattern.permute.xlu0 2
      %4307 = vperm.xlu0 %4306, %v4003
      %v4308 = vpop.permute.xlu0 %4307
      %4310 = vset.pattern.permute.xlu0 2
      %4311 = vperm.xlu0 %4310, %v4005
      %v4312 = vpop.permute.xlu0 %4311
      %4314 = vset.pattern.permute.xlu0 2
      %4315 = vperm.xlu0 %4314, %v4007
      %v4316 = vpop.permute.xlu0 %4315
      %4318 = vset.pattern.permute.xlu0 2
      %4319 = vperm.xlu0 %4318, %v4009
      %v4320 = vpop.permute.xlu0 %4319
      %4322 = vset.pattern.permute.xlu0 2
      %4323 = vperm.xlu0 %4322, %v4011
      %v4324 = vpop.permute.xlu0 %4323
      %4326 = vset.pattern.permute.xlu0 2
      %4327 = vperm.xlu0 %4326, %v4013
      %v4328 = vpop.permute.xlu0 %4327
      %4330 = vset.pattern.permute.xlu0 2
      %4331 = vperm.xlu0 %4330, %v4015
      %v4332 = vpop.permute.xlu0 %4331
      %4334 = vset.pattern.permute.xlu0 2
      %4335 = vperm.xlu0 %4334, %v4017
      %v4336 = vpop.permute.xlu0 %4335
      %4338 = vset.pattern.permute.xlu0 2
      %4339 = vperm.xlu0 %4338, %v4019
      %v4340 = vpop.permute.xlu0 %4339
      %v4342 = vmul.f32 %v4262, %v4280
      %v4343 = vmul.f32 %v4263, %v4284
      %v4344 = vmul.f32 %v4264, %v4288
      %v4345 = vmul.f32 %v4265, %v4292
      %v4346 = vmul.f32 %v4266, %v4296
      %v4347 = vmul.f32 %v4267, %v4300
      %v4348 = vmul.f32 %v4268, %v4304
      %v4349 = vmul.f32 %v4269, %v4308
      %v4350 = vmul.f32 %v4270, %v4312
      %v4351 = vmul.f32 %v4271, %v4316
      %v4352 = vmul.f32 %v4272, %v4320
      %v4353 = vmul.f32 %v4273, %v4324
      %v4354 = vmul.f32 %v4274, %v4328
      %v4355 = vmul.f32 %v4275, %v4332
      %v4356 = vmul.f32 %v4276, %v4336
      %v4357 = vmul.f32 %v4277, %v4340
      %vm4358 = vcmask 392448
      %4359 = vst.msk [vmem:[#allocation4] sm:$0xff] %vm4358, %v4342
      %4360 = vst.msk [vmem:[#allocation4 + $0x8] sm:$0xff] %vm4358, %v4343
      %4361 = vst.msk [vmem:[#allocation4 + $0x10] sm:$0xff] %vm4358, %v4344
      %4362 = vst.msk [vmem:[#allocation4 + $0x18] sm:$0xff] %vm4358, %v4345
      %4363 = vst.msk [vmem:[#allocation4 + $0x20] sm:$0xff] %vm4358, %v4346
      %4364 = vst.msk [vmem:[#allocation4 + $0x28] sm:$0xff] %vm4358, %v4347
      %4365 = vst.msk [vmem:[#allocation4 + $0x30] sm:$0xff] %vm4358, %v4348
      %4366 = vst.msk [vmem:[#allocation4 + $0x38] sm:$0xff] %vm4358, %v4349
      %4367 = vst.msk [vmem:[#allocation4 + $0x40] sm:$0xff] %vm4358, %v4350
      %4368 = vst.msk [vmem:[#allocation4 + $0x48] sm:$0xff] %vm4358, %v4351
      %4369 = vst.msk [vmem:[#allocation4 + $0x50] sm:$0xff] %vm4358, %v4352
      %4370 = vst.msk [vmem:[#allocation4 + $0x58] sm:$0xff] %vm4358, %v4353
      %4371 = vst.msk [vmem:[#allocation4 + $0x60] sm:$0xff] %vm4358, %v4354
      %4372 = vst.msk [vmem:[#allocation4 + $0x68] sm:$0xff] %vm4358, %v4355
      %4373 = vst.msk [vmem:[#allocation4 + $0x70] sm:$0xff] %vm4358, %v4356
      %4374 = vst.msk [vmem:[#allocation4 + $0x78] sm:$0xff] %vm4358, %v4357
      %v4375 = vld [vmem:[#allocation4] sm:$0xff]
      %v4376 = vld [vmem:[#allocation4 + $0x8] sm:$0xff]
      %v4377 = vld [vmem:[#allocation4 + $0x10] sm:$0xff]
      %v4378 = vld [vmem:[#allocation4 + $0x18] sm:$0xff]
      %v4379 = vld [vmem:[#allocation4 + $0x20] sm:$0xff]
      %v4380 = vld [vmem:[#allocation4 + $0x28] sm:$0xff]
      %v4381 = vld [vmem:[#allocation4 + $0x30] sm:$0xff]
      %v4382 = vld [vmem:[#allocation4 + $0x38] sm:$0xff]
      %v4383 = vld [vmem:[#allocation4 + $0x40] sm:$0xff]
      %v4384 = vld [vmem:[#allocation4 + $0x48] sm:$0xff]
      %v4385 = vld [vmem:[#allocation4 + $0x50] sm:$0xff]
      %v4386 = vld [vmem:[#allocation4 + $0x58] sm:$0xff]
      %v4387 = vld [vmem:[#allocation4 + $0x60] sm:$0xff]
      %v4388 = vld [vmem:[#allocation4 + $0x68] sm:$0xff]
      %v4389 = vld [vmem:[#allocation4 + $0x70] sm:$0xff]
      %v4390 = vld [vmem:[#allocation4 + $0x78] sm:$0xff]
      %4391 = vset.pattern.permute.xlu0 3
      %4392 = vperm.xlu0 %4391, %v3989
      %v4393 = vpop.permute.xlu0 %4392
      %4395 = vset.pattern.permute.xlu0 3
      %4396 = vperm.xlu0 %4395, %v3991
      %v4397 = vpop.permute.xlu0 %4396
      %4399 = vset.pattern.permute.xlu0 3
      %4400 = vperm.xlu0 %4399, %v3993
      %v4401 = vpop.permute.xlu0 %4400
      %4403 = vset.pattern.permute.xlu0 3
      %4404 = vperm.xlu0 %4403, %v3995
      %v4405 = vpop.permute.xlu0 %4404
      %4407 = vset.pattern.permute.xlu0 3
      %4408 = vperm.xlu0 %4407, %v3997
      %v4409 = vpop.permute.xlu0 %4408
      %4411 = vset.pattern.permute.xlu0 3
      %4412 = vperm.xlu0 %4411, %v3999
      %v4413 = vpop.permute.xlu0 %4412
      %4415 = vset.pattern.permute.xlu0 3
      %4416 = vperm.xlu0 %4415, %v4001
      %v4417 = vpop.permute.xlu0 %4416
      %4419 = vset.pattern.permute.xlu0 3
      %4420 = vperm.xlu0 %4419, %v4003
      %v4421 = vpop.permute.xlu0 %4420
      %4423 = vset.pattern.permute.xlu0 3
      %4424 = vperm.xlu0 %4423, %v4005
      %v4425 = vpop.permute.xlu0 %4424
      %4427 = vset.pattern.permute.xlu0 3
      %4428 = vperm.xlu0 %4427, %v4007
      %v4429 = vpop.permute.xlu0 %4428
      %4431 = vset.pattern.permute.xlu0 3
      %4432 = vperm.xlu0 %4431, %v4009
      %v4433 = vpop.permute.xlu0 %4432
      %4435 = vset.pattern.permute.xlu0 3
      %4436 = vperm.xlu0 %4435, %v4011
      %v4437 = vpop.permute.xlu0 %4436
      %4439 = vset.pattern.permute.xlu0 3
      %4440 = vperm.xlu0 %4439, %v4013
      %v4441 = vpop.permute.xlu0 %4440
      %4443 = vset.pattern.permute.xlu0 3
      %4444 = vperm.xlu0 %4443, %v4015
      %v4445 = vpop.permute.xlu0 %4444
      %4447 = vset.pattern.permute.xlu0 3
      %4448 = vperm.xlu0 %4447, %v4017
      %v4449 = vpop.permute.xlu0 %4448
      %4451 = vset.pattern.permute.xlu0 3
      %4452 = vperm.xlu0 %4451, %v4019
      %v4453 = vpop.permute.xlu0 %4452
      %v4455 = vmul.f32 %v4375, %v4393
      %v4456 = vmul.f32 %v4376, %v4397
      %v4457 = vmul.f32 %v4377, %v4401
      %v4458 = vmul.f32 %v4378, %v4405
      %v4459 = vmul.f32 %v4379, %v4409
      %v4460 = vmul.f32 %v4380, %v4413
      %v4461 = vmul.f32 %v4381, %v4417
      %v4462 = vmul.f32 %v4382, %v4421
      %v4463 = vmul.f32 %v4383, %v4425
      %v4464 = vmul.f32 %v4384, %v4429
      %v4465 = vmul.f32 %v4385, %v4433
      %v4466 = vmul.f32 %v4386, %v4437
      %v4467 = vmul.f32 %v4387, %v4441
      %v4468 = vmul.f32 %v4388, %v4445
      %v4469 = vmul.f32 %v4389, %v4449
      %v4470 = vmul.f32 %v4390, %v4453
      %vm4471 = vcmask 523648
      %4472 = vst.msk [vmem:[#allocation4] sm:$0xff] %vm4471, %v4455
      %4473 = vst.msk [vmem:[#allocation4 + $0x8] sm:$0xff] %vm4471, %v4456
      %4474 = vst.msk [vmem:[#allocation4 + $0x10] sm:$0xff] %vm4471, %v4457
      %4475 = vst.msk [vmem:[#allocation4 + $0x18] sm:$0xff] %vm4471, %v4458
      %4476 = vst.msk [vmem:[#allocation4 + $0x20] sm:$0xff] %vm4471, %v4459
      %4477 = vst.msk [vmem:[#allocation4 + $0x28] sm:$0xff] %vm4471, %v4460
      %4478 = vst.msk [vmem:[#allocation4 + $0x30] sm:$0xff] %vm4471, %v4461
      %4479 = vst.msk [vmem:[#allocation4 + $0x38] sm:$0xff] %vm4471, %v4462
      %4480 = vst.msk [vmem:[#allocation4 + $0x40] sm:$0xff] %vm4471, %v4463
      %4481 = vst.msk [vmem:[#allocation4 + $0x48] sm:$0xff] %vm4471, %v4464
      %4482 = vst.msk [vmem:[#allocation4 + $0x50] sm:$0xff] %vm4471, %v4465
      %4483 = vst.msk [vmem:[#allocation4 + $0x58] sm:$0xff] %vm4471, %v4466
      %4484 = vst.msk [vmem:[#allocation4 + $0x60] sm:$0xff] %vm4471, %v4467
      %4485 = vst.msk [vmem:[#allocation4 + $0x68] sm:$0xff] %vm4471, %v4468
      %4486 = vst.msk [vmem:[#allocation4 + $0x70] sm:$0xff] %vm4471, %v4469
      %4487 = vst.msk [vmem:[#allocation4 + $0x78] sm:$0xff] %vm4471, %v4470
      %v4488 = vld [vmem:[#allocation4] sm:$0xff]
      %v4489 = vld [vmem:[#allocation4 + $0x8] sm:$0xff]
      %v4490 = vld [vmem:[#allocation4 + $0x10] sm:$0xff]
      %v4491 = vld [vmem:[#allocation4 + $0x18] sm:$0xff]
      %v4492 = vld [vmem:[#allocation4 + $0x20] sm:$0xff]
      %v4493 = vld [vmem:[#allocation4 + $0x28] sm:$0xff]
      %v4494 = vld [vmem:[#allocation4 + $0x30] sm:$0xff]
      %v4495 = vld [vmem:[#allocation4 + $0x38] sm:$0xff]
      %v4496 = vld [vmem:[#allocation4 + $0x40] sm:$0xff]
      %v4497 = vld [vmem:[#allocation4 + $0x48] sm:$0xff]
      %v4498 = vld [vmem:[#allocation4 + $0x50] sm:$0xff]
      %v4499 = vld [vmem:[#allocation4 + $0x58] sm:$0xff]
      %v4500 = vld [vmem:[#allocation4 + $0x60] sm:$0xff]
      %v4501 = vld [vmem:[#allocation4 + $0x68] sm:$0xff]
      %v4502 = vld [vmem:[#allocation4 + $0x70] sm:$0xff]
      %v4503 = vld [vmem:[#allocation4 + $0x78] sm:$0xff]
      %vm4504 = vcmask 523264
      %4505 = vst.msk [vmem:[%s6] sm:$0xff] %vm4504, %v4488
      %4506 = vst.msk [vmem:[%s6 + $0x8] sm:$0xff] %vm4504, %v4489
      %4507 = vst.msk [vmem:[%s6 + $0x10] sm:$0xff] %vm4504, %v4490
      %4508 = vst.msk [vmem:[%s6 + $0x18] sm:$0xff] %vm4504, %v4491
      %4509 = vst.msk [vmem:[%s6 + $0x20] sm:$0xff] %vm4504, %v4492
      %4510 = vst.msk [vmem:[%s6 + $0x28] sm:$0xff] %vm4504, %v4493
      %4511 = vst.msk [vmem:[%s6 + $0x30] sm:$0xff] %vm4504, %v4494
      %4512 = vst.msk [vmem:[%s6 + $0x38] sm:$0xff] %vm4504, %v4495
      %4513 = vst.msk [vmem:[%s6 + $0x40] sm:$0xff] %vm4504, %v4496
      %4514 = vst.msk [vmem:[%s6 + $0x48] sm:$0xff] %vm4504, %v4497
      %4515 = vst.msk [vmem:[%s6 + $0x50] sm:$0xff] %vm4504, %v4498
      %4516 = vst.msk [vmem:[%s6 + $0x58] sm:$0xff] %vm4504, %v4499
      %4517 = vst.msk [vmem:[%s6 + $0x60] sm:$0xff] %vm4504, %v4500
      %4518 = vst.msk [vmem:[%s6 + $0x68] sm:$0xff] %vm4504, %v4501
      %4519 = vst.msk [vmem:[%s6 + $0x70] sm:$0xff] %vm4504, %v4502
      %4520 = vst.msk [vmem:[%s6 + $0x78] sm:$0xff] %vm4504, %v4503
      %v4521 = vld [vmem:[#allocation2] sm:$0xff]
      %v4522 = vld [vmem:[#allocation2 + $0x8] sm:$0xff]
      %v4523 = vld [vmem:[#allocation2 + $0x10] sm:$0xff]
      %v4524 = vld [vmem:[#allocation2 + $0x18] sm:$0xff]
      %v4525 = vld [vmem:[#allocation2 + $0x20] sm:$0xff]
      %v4526 = vld [vmem:[#allocation2 + $0x28] sm:$0xff]
      %v4527 = vld [vmem:[#allocation2 + $0x30] sm:$0xff]
      %v4528 = vld [vmem:[#allocation2 + $0x38] sm:$0xff]
      %v4529 = vld [vmem:[#allocation2 + $0x40] sm:$0xff]
      %v4530 = vld [vmem:[#allocation2 + $0x48] sm:$0xff]
      %v4531 = vld [vmem:[#allocation2 + $0x50] sm:$0xff]
      %v4532 = vld [vmem:[#allocation2 + $0x58] sm:$0xff]
      %v4533 = vld [vmem:[#allocation2 + $0x60] sm:$0xff]
      %v4534 = vld [vmem:[#allocation2 + $0x68] sm:$0xff]
      %v4535 = vld [vmem:[#allocation2 + $0x70] sm:$0xff]
      %v4536 = vld [vmem:[#allocation2 + $0x78] sm:$0xff]
      %vm4537 = vcmask 31744
      %4538 = vst.msk [vmem:[%s7] sm:$0xff] %vm4537, %v4521
      %4539 = vst.msk [vmem:[%s7 + $0x8] sm:$0xff] %vm4537, %v4522
      %4540 = vst.msk [vmem:[%s7 + $0x10] sm:$0xff] %vm4537, %v4523
      %4541 = vst.msk [vmem:[%s7 + $0x18] sm:$0xff] %vm4537, %v4524
      %4542 = vst.msk [vmem:[%s7 + $0x20] sm:$0xff] %vm4537, %v4525
      %4543 = vst.msk [vmem:[%s7 + $0x28] sm:$0xff] %vm4537, %v4526
      %4544 = vst.msk [vmem:[%s7 + $0x30] sm:$0xff] %vm4537, %v4527
      %4545 = vst.msk [vmem:[%s7 + $0x38] sm:$0xff] %vm4537, %v4528
      %4546 = vst.msk [vmem:[%s7 + $0x40] sm:$0xff] %vm4537, %v4529
      %4547 = vst.msk [vmem:[%s7 + $0x48] sm:$0xff] %vm4537, %v4530
      %4548 = vst.msk [vmem:[%s7 + $0x50] sm:$0xff] %vm4537, %v4531
      %4549 = vst.msk [vmem:[%s7 + $0x58] sm:$0xff] %vm4537, %v4532
      %4550 = vst.msk [vmem:[%s7 + $0x60] sm:$0xff] %vm4537, %v4533
      %4551 = vst.msk [vmem:[%s7 + $0x68] sm:$0xff] %vm4537, %v4534
      %4552 = vst.msk [vmem:[%s7 + $0x70] sm:$0xff] %vm4537, %v4535
      %4553 = vst.msk [vmem:[%s7 + $0x78] sm:$0xff] %vm4537, %v4536
      %v4554 = vld [vmem:[#allocation3] sm:$0xff]
      %v4555 = vld [vmem:[#allocation3 + $0x8] sm:$0xff]
      %v4556 = vld [vmem:[#allocation3 + $0x10] sm:$0xff]
      %v4557 = vld [vmem:[#allocation3 + $0x18] sm:$0xff]
      %v4558 = vld [vmem:[#allocation3 + $0x20] sm:$0xff]
      %v4559 = vld [vmem:[#allocation3 + $0x28] sm:$0xff]
      %v4560 = vld [vmem:[#allocation3 + $0x30] sm:$0xff]
      %v4561 = vld [vmem:[#allocation3 + $0x38] sm:$0xff]
      %v4562 = vld [vmem:[#allocation3 + $0x40] sm:$0xff]
      %v4563 = vld [vmem:[#allocation3 + $0x48] sm:$0xff]
      %v4564 = vld [vmem:[#allocation3 + $0x50] sm:$0xff]
      %v4565 = vld [vmem:[#allocation3 + $0x58] sm:$0xff]
      %v4566 = vld [vmem:[#allocation3 + $0x60] sm:$0xff]
      %v4567 = vld [vmem:[#allocation3 + $0x68] sm:$0xff]
      %v4568 = vld [vmem:[#allocation3 + $0x70] sm:$0xff]
      %v4569 = vld [vmem:[#allocation3 + $0x78] sm:$0xff]
      %4570 = vst.msk [vmem:[%s8] sm:$0xff] %vm4537, %v4554
      %4571 = vst.msk [vmem:[%s8 + $0x8] sm:$0xff] %vm4537, %v4555
      %4572 = vst.msk [vmem:[%s8 + $0x10] sm:$0xff] %vm4537, %v4556
      %4573 = vst.msk [vmem:[%s8 + $0x18] sm:$0xff] %vm4537, %v4557
      %4574 = vst.msk [vmem:[%s8 + $0x20] sm:$0xff] %vm4537, %v4558
      %4575 = vst.msk [vmem:[%s8 + $0x28] sm:$0xff] %vm4537, %v4559
      %4576 = vst.msk [vmem:[%s8 + $0x30] sm:$0xff] %vm4537, %v4560
      %4577 = vst.msk [vmem:[%s8 + $0x38] sm:$0xff] %vm4537, %v4561
      %4578 = vst.msk [vmem:[%s8 + $0x40] sm:$0xff] %vm4537, %v4562
      %4579 = vst.msk [vmem:[%s8 + $0x48] sm:$0xff] %vm4537, %v4563
      %4580 = vst.msk [vmem:[%s8 + $0x50] sm:$0xff] %vm4537, %v4564
      %4581 = vst.msk [vmem:[%s8 + $0x58] sm:$0xff] %vm4537, %v4565
      %4582 = vst.msk [vmem:[%s8 + $0x60] sm:$0xff] %vm4537, %v4566
      %4583 = vst.msk [vmem:[%s8 + $0x68] sm:$0xff] %vm4537, %v4567
      %4584 = vst.msk [vmem:[%s8 + $0x70] sm:$0xff] %vm4537, %v4568
      %4585 = vst.msk [vmem:[%s8 + $0x78] sm:$0xff] %vm4537, %v4569
    $region41: #{tpu_custom_call.1} parent=1 // pred_fallthru
      _
    // Predicated region
    $region42: #{tpu_custom_call.1} parent=1 // pred_check
      _
    $region43: #{tpu_custom_call.1} parent=1 // pred_check_branch
      %4587 = sbr.rel (0) target = $region45
    $region44: #{tpu_custom_call.1} parent=1 // pred_region
      _
    $region45: #{tpu_custom_call.1} parent=1 // pred_fallthru
      _
    // Predicated region
    $region46: #{tpu_custom_call.1} parent=1 // pred_check
      _
    $region47: #{tpu_custom_call.1} parent=1 // pred_check_branch
      %4589 = sbr.rel (0) target = $region49
    $region48: #{tpu_custom_call.1} parent=1 // pred_region
      _
    $region49: #{tpu_custom_call.1} parent=1 // pred_fallthru
      _
    // Predicated region
    $region50: #{tpu_custom_call.1} parent=1 // pred_check
      _
    $region51: #{tpu_custom_call.1} parent=1 // pred_check_branch
      %4591 = sbr.rel (0) target = $region53
    $region52: #{tpu_custom_call.1} parent=1 // pred_region
      _
    $region53: #{tpu_custom_call.1} parent=1 // pred_fallthru
      _
    // Predicated region
    $region54: #{tpu_custom_call.1} parent=1 // pred_check
      _
    $region55: #{tpu_custom_call.1} parent=1 // pred_check_branch
      %4593 = sbr.rel (0) target = $region57
    $region56: #{tpu_custom_call.1} parent=1 // pred_region
      _
    $region57: #{tpu_custom_call.1} parent=1 // pred_fallthru
      _
    // Predicated region
    $region58: #{tpu_custom_call.1} parent=1 // pred_check
      _
    $region59: #{tpu_custom_call.1} parent=1 // pred_check_branch
      %4595 = sbr.rel (0) target = $region61
    $region60: #{tpu_custom_call.1} parent=1 // pred_region
      _
    $region61: #{tpu_custom_call.1} parent=1 // pred_fallthru
      _
    // Predicated region
    $region62: #{tpu_custom_call.1} parent=1 // pred_check
      _
    $region63: #{tpu_custom_call.1} parent=1 // pred_check_branch
      %4597 = sbr.rel (0) target = $region65
    $region64: #{tpu_custom_call.1} parent=1 // pred_region
      _
    $region65: #{tpu_custom_call.1} parent=1 // pred_fallthru
      _
    %4598 = vsyncpa [#allocation7], 1

</llo_original>
